<compile_context>
chip_gen: v7x
topology: tpu7x:2x2x1
jax: 0.10.0
libtpu: 0.0.40
codegen_flags: <defaults>
</compile_context>

<pallas_src>
import jax
import jax.numpy as jnp
import numpy as np
from jax import lax
from jax.experimental import pallas as pl
from jax.experimental.pallas import tpu as pltpu

GATE = 128   # lane-aligned per-gate block width
HPAD = 128   # lane-padded hidden width carried through the kernel


# ----------------------------------------------------------------------------
# Fused Pallas kernel: conv1 -> conv2 -> fc -> GRU step -> critic, per grid step
# ----------------------------------------------------------------------------
def _fused_rollout_kernel(x_ref, h0_ref,
                          m1_ref, b1_ref, m2_ref, b2_ref,
                          fcw_ref, fcb_ref,
                          wih_ref, bih_ref, whh_ref, bhh_ref,
                          cw_ref, cb_ref,
                          val_ref, h_ref):
    f32 = jnp.float32
    t = pl.program_id(0)

    # h_ref (constant output block index) doubles as the VMEM-resident carry.
    @pl.when(t == 0)
    def _():
        h_ref[...] = h0_ref[...]                    # (N, 128) f32, lanes 32..127 == 0

    def mm_bf16(a, w_ref):
        # big conv/fc matmuls: bf16 MXU inputs, f32 accumulation
        return jnp.dot(a.astype(w_ref.dtype), w_ref[...],
                       preferred_element_type=f32)

    # encoder: conv1 + ReLU (unrolled conv == one lane-dense matmul)
    x = x_ref[...]                                              # (N, 1024) f32
    y1 = jnp.maximum(mm_bf16(x, m1_ref) + b1_ref[...], 0.0)     # (N, 512)
    # encoder: conv2 + ReLU
    y2 = jnp.maximum(mm_bf16(y1, m2_ref) + b2_ref[...], 0.0)    # (N, 256)
    # encoder: fc + ReLU
    enc = jnp.maximum(mm_bf16(y2, fcw_ref) + fcb_ref[...], 0.0)  # (N, 32)

    # core: one GRU step (PyTorch r, z, n semantics).  Gate matmuls kept f32
    # (tiny) so the recurrent state does not pick up bf16 drift.
    h = h_ref[...]                                              # (N, 128) f32
    gi = jnp.dot(enc, wih_ref[...], preferred_element_type=f32) + bih_ref[...]  # (N, 384)
    gh = jnp.dot(h, whh_ref[...], preferred_element_type=f32) + bhh_ref[...]    # (N, 384)
    r = jax.nn.sigmoid(gi[:, 0 * GATE:1 * GATE] + gh[:, 0 * GATE:1 * GATE])
    z = jax.nn.sigmoid(gi[:, 1 * GATE:2 * GATE] + gh[:, 1 * GATE:2 * GATE])
    n = jnp.tanh(gi[:, 2 * GATE:3 * GATE] + r * gh[:, 2 * GATE:3 * GATE])
    h_new = n + z * (h - n)                       # == (1-z)*n + z*h; pad lanes stay 0
    h_ref[...] = h_new

    # critic: Linear(32 -> 1) as VPU multiply + lane reduce (crit_w lane-padded)
    val_ref[...] = (jnp.sum(h_new * cw_ref[...], axis=1, keepdims=True)
                    + cb_ref[...]).astype(val_ref.dtype)


def _resident_spec(shape):
    nd = len(shape)
    return pl.BlockSpec(shape, lambda t, _nd=nd: (0,) * _nd)


def value_rnn_rollout(params, nobs_seq, rnn_states):
    """nobs_seq: (T, N, C, H, W) f32 NCHW, rnn_states: (N, hidden) f32.
    Returns (values (T, N, 1) f32, h_final (N, hidden) f32)."""
    T, N = nobs_seq.shape[0], nobs_seq.shape[1]
    hid = rnn_states.shape[1]
    x = nobs_seq.reshape(T, N, -1).astype(jnp.float32)   # NCHW row-major flatten
    h0 = jnp.pad(rnn_states.astype(jnp.float32), ((0, 0), (0, HPAD - hid)))

    weights = (params["m1"], params["b1"], params["m2"], params["b2"],
               params["fc_w"], params["fc_b"],
               params["w_ih"], params["b_ih"], params["w_hh"], params["b_hh"],
               params["crit_w"], params["crit_b"])

    in_specs = ([pl.BlockSpec((None, N, x.shape[2]), lambda t: (t, 0, 0)),
                 _resident_spec(h0.shape)]
                + [_resident_spec(w.shape) for w in weights])

    values, h_out = pl.pallas_call(
        _fused_rollout_kernel,
        out_shape=(jax.ShapeDtypeStruct((T, N, 1), jnp.float32),
                   jax.ShapeDtypeStruct((N, HPAD), jnp.float32)),
        grid=(T,),
        in_specs=in_specs,
        out_specs=(pl.BlockSpec((None, N, 1), lambda t: (t, 0, 0)),
                   pl.BlockSpec((N, HPAD), lambda t: (0, 0))),
        compiler_params=pltpu.CompilerParams(
            dimension_semantics=("arbitrary",)),      # recurrent carry: sequential
    )(x, h0, *weights)
    return values, h_out[:, :hid]


def value_rnn_forward(params, nobs, rnn_states):
    """Single-step forward matching the PyTorch module: nobs (N, C, H, W).
    Returns (value (N, 1), h_new (N, hidden)); the PyTorch module discards h_new."""
    values, h_new = value_rnn_rollout(params, nobs[None], rnn_states)
    return values[0], h_new


# ----------------------------------------------------------------------------
# Init-time parameter preprocessing
# ----------------------------------------------------------------------------
def unrolled_conv_matrix(w_oihw, h_in, w_in, stride, pad):
    """Dense M such that NCHW-flat(conv2d(x, w, stride, pad)) = NCHW-flat(x) @ M."""
    o_ch, c_ch, kh, kw = w_oihw.shape
    h_out = (h_in + 2 * pad - kh) // stride + 1
    w_out = (w_in + 2 * pad - kw) // stride + 1
    m = np.zeros((c_ch * h_in * w_in, o_ch * h_out * w_out), np.float32)
    for o in range(o_ch):
        for c in range(c_ch):
            for ki in range(kh):
                for kj in range(kw):
                    wval = w_oihw[o, c, ki, kj]
                    for i in range(h_out):
                        hh = stride * i + ki - pad
                        if hh < 0 or hh >= h_in:
                            continue
                        for j in range(w_out):
                            ww = stride * j + kj - pad
                            if ww < 0 or ww >= w_in:
                                continue
                            m[c * h_in * w_in + hh * w_in + ww,
                              o * h_out * w_out + i * w_out + j] += wval
    return m


def _gate_pad_cols(w_t, hidden):
    """(in_dim, 3*hidden) cols ordered [r|z|n] -> (in_dim, 3*GATE): each gate in
    its own 128-lane block, lanes hidden..127 zero."""
    out = np.zeros((w_t.shape[0], 3 * GATE), np.float32)
    for g in range(3):
        out[:, g * GATE:g * GATE + hidden] = w_t[:, g * hidden:(g + 1) * hidden]
    return out


def init_params(key, c_in=4, hidden=32):
    """Returns (kernel_params, raw_params).  raw_params mirror the PyTorch
    module tensors (used by the pure-JAX reference); kernel_params are the
    fused / pre-laid-out arrays consumed by the Pallas kernel."""
    ks = jax.random.split(key, 12)

    def u(k, shape, fan_in):
        bound = 1.0 / np.sqrt(fan_in)
        return np.asarray(jax.random.uniform(k, shape, jnp.float32, -bound, bound))

    c1, c2, ksz = 8, 16, 3
    conv1_w = u(ks[0], (c1, c_in, ksz, ksz), c_in * ksz * ksz)
    conv1_b = u(ks[1], (c1,), c_in * ksz * ksz)
    conv2_w = u(ks[2], (c2, c1, ksz, ksz), c1 * ksz * ksz)
    conv2_b = u(ks[3], (c2,), c1 * ksz * ksz)

    fc_in = c2 * 4 * 4                             # 16x16 -> /2 -> /2 = 4x4 spatial
    fc_w = u(ks[4], (hidden, fc_in), fc_in)        # PyTorch Linear: (out, in)
    fc_b = u(ks[5], (hidden,), fc_in)

    H = hidden
    w_ih = u(ks[6], (3 * H, H), H)                 # PyTorch GRU rows: [r | z | n]
    w_hh = u(ks[7], (3 * H, H), H)
    b_ih = u(ks[8], (3 * H,), H)
    b_hh = u(ks[9], (3 * H,), H)

    crit_w = u(ks[10], (1, H), H)
    crit_b = u(ks[11], (1,), H)

    raw = dict(conv1_w=conv1_w, conv1_b=conv1_b, conv2_w=conv2_w, conv2_b=conv2_b,
               fc_w=fc_w, fc_b=fc_b, w_ih=w_ih, w_hh=w_hh, b_ih=b_ih, b_hh=b_hh,
               crit_w=crit_w, crit_b=crit_b)

    bf16, f32 = jnp.bfloat16, jnp.float32
    m1 = unrolled_conv_matrix(conv1_w, 16, 16, stride=2, pad=1)   # (1024, 512)
    m2 = unrolled_conv_matrix(conv2_w, 8, 8, stride=2, pad=1)     # (512, 256)

    # GRU: (in, 3*hidden) then lane-block pad; w_hh rows padded to the
    # 128-lane-padded hidden carry (extra rows multiply zero pad lanes of h).
    w_ih_blk = _gate_pad_cols(w_ih.T, H)                           # (32, 384)
    w_hh_blk = np.zeros((HPAD, 3 * GATE), np.float32)              # (128, 384)
    w_hh_blk[:H] = _gate_pad_cols(w_hh.T, H)
    b_ih_blk = _gate_pad_cols(b_ih[None, :], H)                    # (1, 384)
    b_hh_blk = _gate_pad_cols(b_hh[None, :], H)                    # (1, 384)

    crit_pad = np.zeros((1, HPAD), np.float32)
    crit_pad[:, :H] = crit_w

    params = dict(
        m1=jnp.asarray(m1, bf16),
        b1=jnp.asarray(np.repeat(conv1_b, 8 * 8)[None, :], f32),   # (1, 512)
        m2=jnp.asarray(m2, bf16),
        b2=jnp.asarray(np.repeat(conv2_b, 4 * 4)[None, :], f32),   # (1, 256)
        fc_w=jnp.asarray(fc_w.T, bf16),                            # (256, 32)
        fc_b=jnp.asarray(fc_b[None, :], f32),                      # (1, 32)
        w_ih=jnp.asarray(w_ih_blk, f32),                           # (32, 384)
        b_ih=jnp.asarray(b_ih_blk, f32),                           # (1, 384)
        w_hh=jnp.asarray(w_hh_blk, f32),                           # (128, 384)
        b_hh=jnp.asarray(b_hh_blk, f32),                           # (1, 384)
        crit_w=jnp.asarray(crit_pad, f32),                         # (1, 128)
        crit_b=jnp.asarray(crit_b[None, :], f32),                  # (1, 1)
    )
    return params, raw


# ----------------------------------------------------------------------------
# Pure-JAX f32 reference (PyTorch semantics) for correctness checking
# ----------------------------------------------------------------------------
def value_rnn_reference_step(raw, nobs, h0):
    dn = ("NCHW", "OIHW", "NCHW")
    x = lax.conv_general_dilated(nobs, raw["conv1_w"], (2, 2), ((1, 1), (1, 1)),
                                 dimension_numbers=dn)
    x = jax.nn.relu(x + raw["conv1_b"][None, :, None, None])
    x = lax.conv_general_dilated(x, raw["conv2_w"], (2, 2), ((1, 1), (1, 1)),
                                 dimension_numbers=dn)
    x = jax.nn.relu(x + raw["conv2_b"][None, :, None, None])
    x = x.reshape(x.shape[0], -1)                                  # NCHW flatten
    enc = jax.nn.relu(x @ raw["fc_w"].T + raw["fc_b"])
    H = h0.shape[1]
    gi = enc @ raw["w_ih"].T + raw["b_ih"]
    gh = h0 @ raw["w_hh"].T + raw["b_hh"]
    r = jax.nn.sigmoid(gi[:, :H] + gh[:, :H])
    z = jax.nn.sigmoid(gi[:, H:2 * H] + gh[:, H:2 * H])
    n = jnp.tanh(gi[:, 2 * H:] + r * gh[:, 2 * H:])
    h_new = (1.0 - z) * n + z * h0
    return h_new @ raw["crit_w"].T + raw["crit_b"], h_new


def value_rnn_reference_rollout(raw, nobs_seq, h0):
    def body(h, obs):
        v, h_new = value_rnn_reference_step(raw, obs, h)
        return h_new, v
    h_final, values = lax.scan(body, h0, nobs_seq)
    return values, h_final


# ----------------------------------------------------------------------------
if __name__ == "__main__":
    key = jax.random.PRNGKey(0)
    k_obs, k_state, k_par = jax.random.split(key, 3)

    T, N, C, H, W, HID = 8, 2, 4, 16, 16, 32
    nobs_seq = jax.random.normal(k_obs, (T, N, C, H, W), jnp.float32)
    rnn_states = jax.random.normal(k_state, (N, HID), jnp.float32)
    params, raw = init_params(k_par, c_in=C, hidden=HID)

    # Multi-step rollout: weights DMA'd to VMEM once, h carried in VMEM.
    rollout = jax.jit(value_rnn_rollout)
    values, h_final = jax.block_until_ready(rollout(params, nobs_seq, rnn_states))
    assert values.shape == (T, N, 1) and values.dtype == jnp.float32
    assert h_final.shape == (N, HID)

    ref_values, ref_h = value_rnn_reference_rollout(raw, nobs_seq, rnn_states)
    ref_values = jax.block_until_ready(ref_values)
    err_v = float(np.max(np.abs(np.asarray(values) - np.asarray(ref_values))))
    err_h = float(np.max(np.abs(np.asarray(h_final) - np.asarray(ref_h))))
    assert err_v < 8e-2 and err_h < 8e-2, (err_v, err_h)

    # Single-step path with PyTorch-module semantics (T == 1).
    step = jax.jit(value_rnn_forward)
    v1, h1 = jax.block_until_ready(step(params, nobs_seq[0], rnn_states))
    ref_v1, ref_h1 = value_rnn_reference_step(raw, nobs_seq[0], rnn_states)
    assert float(np.max(np.abs(np.asarray(v1) - np.asarray(ref_v1)))) < 8e-2
    assert float(np.max(np.abs(np.asarray(h1) - np.asarray(ref_h1)))) < 8e-2

    print("KERNEL_OK")
</pallas_src>

<mosaic_0001>
module attributes {stable_mosaic.version = 11 : i64} {
  func.func @_fused_rollout_kernel(%arg0: i32, %arg1: memref<1x2x1024xf32, #tpu.memory_space<vmem>>, %arg2: memref<2x128xf32, #tpu.memory_space<vmem>>, %arg3: memref<1024x512xbf16, #tpu.memory_space<vmem>>, %arg4: memref<1x512xf32, #tpu.memory_space<vmem>>, %arg5: memref<512x256xbf16, #tpu.memory_space<vmem>>, %arg6: memref<1x256xf32, #tpu.memory_space<vmem>>, %arg7: memref<256x32xbf16, #tpu.memory_space<vmem>>, %arg8: memref<1x32xf32, #tpu.memory_space<vmem>>, %arg9: memref<32x384xf32, #tpu.memory_space<vmem>>, %arg10: memref<1x384xf32, #tpu.memory_space<vmem>>, %arg11: memref<128x384xf32, #tpu.memory_space<vmem>>, %arg12: memref<1x384xf32, #tpu.memory_space<vmem>>, %arg13: memref<1x128xf32, #tpu.memory_space<vmem>>, %arg14: memref<1x1xf32, #tpu.memory_space<vmem>>, %arg15: memref<1x2x1xf32, #tpu.memory_space<vmem>>, %arg16: memref<2x128xf32, #tpu.memory_space<vmem>>) attributes {dimension_semantics = [#tpu.dimension_semantics<arbitrary>], iteration_bounds = array<i64: 8>, scalar_prefetch = 0 : i64, scratch_operands = 0 : i64, tpu.core_type = #tpu.core_type<tc>, window_params = [{transform_indices = @transform_0, window_bounds = array<i64: 1, 2, 1024>}, {pipeline_mode = #tpu.pipeline_mode<synchronous>, transform_indices = @transform_1, window_bounds = array<i64: 2, 128>}, {pipeline_mode = #tpu.pipeline_mode<synchronous>, transform_indices = @transform_2, window_bounds = array<i64: 1024, 512>}, {pipeline_mode = #tpu.pipeline_mode<synchronous>, transform_indices = @transform_3, window_bounds = array<i64: 1, 512>}, {pipeline_mode = #tpu.pipeline_mode<synchronous>, transform_indices = @transform_4, window_bounds = array<i64: 512, 256>}, {pipeline_mode = #tpu.pipeline_mode<synchronous>, transform_indices = @transform_5, window_bounds = array<i64: 1, 256>}, {pipeline_mode = #tpu.pipeline_mode<synchronous>, transform_indices = @transform_6, window_bounds = array<i64: 256, 32>}, {pipeline_mode = #tpu.pipeline_mode<synchronous>, transform_indices = @transform_7, window_bounds = array<i64: 1, 32>}, {pipeline_mode = #tpu.pipeline_mode<synchronous>, transform_indices = @transform_8, window_bounds = array<i64: 32, 384>}, {pipeline_mode = #tpu.pipeline_mode<synchronous>, transform_indices = @transform_9, window_bounds = array<i64: 1, 384>}, {pipeline_mode = #tpu.pipeline_mode<synchronous>, transform_indices = @transform_10, window_bounds = array<i64: 128, 384>}, {pipeline_mode = #tpu.pipeline_mode<synchronous>, transform_indices = @transform_11, window_bounds = array<i64: 1, 384>}, {pipeline_mode = #tpu.pipeline_mode<synchronous>, transform_indices = @transform_12, window_bounds = array<i64: 1, 128>}, {pipeline_mode = #tpu.pipeline_mode<synchronous>, transform_indices = @transform_13, window_bounds = array<i64: 1, 1>}, {transform_indices = @transform_14, window_bounds = array<i64: 1, 2, 1>}, {pipeline_mode = #tpu.pipeline_mode<synchronous>, transform_indices = @transform_15, window_bounds = array<i64: 2, 128>}]} {
    %c0_i32 = arith.constant 0 : i32
    %0 = arith.cmpi eq, %arg0, %c0_i32 : i32
    %1 = arith.extui %0 : i1 to i32
    %c0_i32_0 = arith.constant 0 : i32
    %2 = arith.cmpi ne, %1, %c0_i32_0 : i32
    scf.if %2 {
      %c0_44 = arith.constant 0 : index
      %c0_45 = arith.constant 0 : index
      %76 = vector.load %arg2[%c0_44, %c0_45] : memref<2x128xf32, #tpu.memory_space<vmem>>, vector<2x128xf32>
      %c0_46 = arith.constant 0 : index
      %c0_47 = arith.constant 0 : index
      %77 = vector.load %arg16[%c0_46, %c0_47] : memref<2x128xf32, #tpu.memory_space<vmem>>, vector<2x128xf32>
      tpu.vector_store %arg16[%c0_46, %c0_47], %76 {strides = array<i32>} : memref<2x128xf32, #tpu.memory_space<vmem>>, vector<2x128xf32>,
    } else {
    }
    %c0 = arith.constant 0 : index
    %c0_1 = arith.constant 0 : index
    %c0_2 = arith.constant 0 : index
    %3 = vector.load %arg1[%c0, %c0_1, %c0_2] : memref<1x2x1024xf32, #tpu.memory_space<vmem>>, vector<1x2x1024xf32>
    %4 = vector.shape_cast %3 : vector<1x2x1024xf32> to vector<2x1024xf32>
    %5 = arith.truncf %4 : vector<2x1024xf32> to vector<2x1024xbf16>
    %c0_3 = arith.constant 0 : index
    %c0_4 = arith.constant 0 : index
    %6 = vector.load %arg3[%c0_3, %c0_4] : memref<1024x512xbf16, #tpu.memory_space<vmem>>, vector<1024x512xbf16>
    %cst = arith.constant dense<0.000000e+00> : vector<2x512xf32>
    %7 = tpu.matmul %5, %6, %cst {dimension_numbers = #tpu.dot_dimension_numbers<[1], [0], [0], [1], [0, 0, 1, 1], [], []>} : vector<2x1024xbf16>, vector<1024x512xbf16>, vector<2x512xf32> -> vector<2x512xf32>
    %c0_5 = arith.constant 0 : index
    %c0_6 = arith.constant 0 : index
    %8 = vector.load %arg4[%c0_5, %c0_6] : memref<1x512xf32, #tpu.memory_space<vmem>>, vector<1x512xf32>
    %9 = vector.broadcast %8 : vector<1x512xf32> to vector<2x512xf32>
    %10 = arith.addf %7, %9 : vector<2x512xf32>
    %cst_7 = arith.constant 0.000000e+00 : f32
    %11 = vector.broadcast %cst_7 : f32 to vector<2x512xf32>
    %12 = arith.maximumf %10, %11 : vector<2x512xf32>
    %13 = arith.truncf %12 : vector<2x512xf32> to vector<2x512xbf16>
    %c0_8 = arith.constant 0 : index
    %c0_9 = arith.constant 0 : index
    %14 = vector.load %arg5[%c0_8, %c0_9] : memref<512x256xbf16, #tpu.memory_space<vmem>>, vector<512x256xbf16>
    %cst_10 = arith.constant dense<0.000000e+00> : vector<2x256xf32>
    %15 = tpu.matmul %13, %14, %cst_10 {dimension_numbers = #tpu.dot_dimension_numbers<[1], [0], [0], [1], [0, 0, 1, 1], [], []>} : vector<2x512xbf16>, vector<512x256xbf16>, vector<2x256xf32> -> vector<2x256xf32>
    %c0_11 = arith.constant 0 : index
    %c0_12 = arith.constant 0 : index
    %16 = vector.load %arg6[%c0_11, %c0_12] : memref<1x256xf32, #tpu.memory_space<vmem>>, vector<1x256xf32>
    %17 = vector.broadcast %16 : vector<1x256xf32> to vector<2x256xf32>
    %18 = arith.addf %15, %17 : vector<2x256xf32>
    %cst_13 = arith.constant 0.000000e+00 : f32
    %19 = vector.broadcast %cst_13 : f32 to vector<2x256xf32>
    %20 = arith.maximumf %18, %19 : vector<2x256xf32>
    %21 = arith.truncf %20 : vector<2x256xf32> to vector<2x256xbf16>
    %c0_14 = arith.constant 0 : index
    %c0_15 = arith.constant 0 : index
    %22 = vector.load %arg7[%c0_14, %c0_15] : memref<256x32xbf16, #tpu.memory_space<vmem>>, vector<256x32xbf16>
    %cst_16 = arith.constant dense<0.000000e+00> : vector<2x32xf32>
    %23 = tpu.matmul %21, %22, %cst_16 {dimension_numbers = #tpu.dot_dimension_numbers<[1], [0], [0], [1], [0, 0, 1, 1], [], []>} : vector<2x256xbf16>, vector<256x32xbf16>, vector<2x32xf32> -> vector<2x32xf32>
    %c0_17 = arith.constant 0 : index
    %c0_18 = arith.constant 0 : index
    %24 = vector.load %arg8[%c0_17, %c0_18] : memref<1x32xf32, #tpu.memory_space<vmem>>, vector<1x32xf32>
    %25 = vector.broadcast %24 : vector<1x32xf32> to vector<2x32xf32>
    %26 = arith.addf %23, %25 : vector<2x32xf32>
    %cst_19 = arith.constant 0.000000e+00 : f32
    %27 = vector.broadcast %cst_19 : f32 to vector<2x32xf32>
    %28 = arith.maximumf %26, %27 : vector<2x32xf32>
    %c0_20 = arith.constant 0 : index
    %c0_21 = arith.constant 0 : index
    %29 = vector.load %arg16[%c0_20, %c0_21] : memref<2x128xf32, #tpu.memory_space<vmem>>, vector<2x128xf32>
    %c0_22 = arith.constant 0 : index
    %c0_23 = arith.constant 0 : index
    %30 = vector.load %arg9[%c0_22, %c0_23] : memref<32x384xf32, #tpu.memory_space<vmem>>, vector<32x384xf32>
    %cst_24 = arith.constant dense<0.000000e+00> : vector<2x384xf32>
    %31 = tpu.matmul %28, %30, %cst_24 {dimension_numbers = #tpu.dot_dimension_numbers<[1], [0], [0], [1], [0, 0, 1, 1], [], []>} : vector<2x32xf32>, vector<32x384xf32>, vector<2x384xf32> -> vector<2x384xf32>
    %c0_25 = arith.constant 0 : index
    %c0_26 = arith.constant 0 : index
    %32 = vector.load %arg10[%c0_25, %c0_26] : memref<1x384xf32, #tpu.memory_space<vmem>>, vector<1x384xf32>
    %33 = vector.broadcast %32 : vector<1x384xf32> to vector<2x384xf32>
    %34 = arith.addf %31, %33 : vector<2x384xf32>
    %c0_27 = arith.constant 0 : index
    %c0_28 = arith.constant 0 : index
    %35 = vector.load %arg11[%c0_27, %c0_28] : memref<128x384xf32, #tpu.memory_space<vmem>>, vector<128x384xf32>
    %cst_29 = arith.constant dense<0.000000e+00> : vector<2x384xf32>
    %36 = tpu.matmul %29, %35, %cst_29 {dimension_numbers = #tpu.dot_dimension_numbers<[1], [0], [0], [1], [0, 0, 1, 1], [], []>} : vector<2x128xf32>, vector<128x384xf32>, vector<2x384xf32> -> vector<2x384xf32>
    %c0_30 = arith.constant 0 : index
    %c0_31 = arith.constant 0 : index
    %37 = vector.load %arg12[%c0_30, %c0_31] : memref<1x384xf32, #tpu.memory_space<vmem>>, vector<1x384xf32>
    %38 = vector.broadcast %37 : vector<1x384xf32> to vector<2x384xf32>
    %39 = arith.addf %36, %38 : vector<2x384xf32>
    %40 = vector.extract_strided_slice %34 {offsets = [0, 0], sizes = [2, 128], strides = [1, 1]} : vector<2x384xf32> to vector<2x128xf32>
    %41 = vector.extract_strided_slice %39 {offsets = [0, 0], sizes = [2, 128], strides = [1, 1]} : vector<2x384xf32> to vector<2x128xf32>
    %42 = arith.addf %40, %41 : vector<2x128xf32>
    %43 = arith.negf %42 : vector<2x128xf32>
    %44 = math.exp %43 : vector<2x128xf32>
    %cst_32 = arith.constant 1.000000e+00 : f32
    %45 = vector.broadcast %cst_32 : f32 to vector<2x128xf32>
    %46 = arith.addf %45, %44 : vector<2x128xf32>
    %47 = arith.divf %45, %46 : vector<2x128xf32>
    %48 = vector.extract_strided_slice %34 {offsets = [0, 128], sizes = [2, 128], strides = [1, 1]} : vector<2x384xf32> to vector<2x128xf32>
    %49 = vector.extract_strided_slice %39 {offsets = [0, 128], sizes = [2, 128], strides = [1, 1]} : vector<2x384xf32> to vector<2x128xf32>
    %50 = arith.addf %48, %49 : vector<2x128xf32>
    %51 = arith.negf %50 : vector<2x128xf32>
    %52 = math.exp %51 : vector<2x128xf32>
    %cst_33 = arith.constant 1.000000e+00 : f32
    %53 = vector.broadcast %cst_33 : f32 to vector<2x128xf32>
    %54 = arith.addf %53, %52 : vector<2x128xf32>
    %55 = arith.divf %53, %54 : vector<2x128xf32>
    %56 = vector.extract_strided_slice %34 {offsets = [0, 256], sizes = [2, 128], strides = [1, 1]} : vector<2x384xf32> to vector<2x128xf32>
    %57 = vector.extract_strided_slice %39 {offsets = [0, 256], sizes = [2, 128], strides = [1, 1]} : vector<2x384xf32> to vector<2x128xf32>
    %58 = arith.mulf %47, %57 : vector<2x128xf32>
    %59 = arith.addf %56, %58 : vector<2x128xf32>
    %60 = math.tanh %59 : vector<2x128xf32>
    %61 = arith.subf %29, %60 : vector<2x128xf32>
    %62 = arith.mulf %55, %61 : vector<2x128xf32>
    %63 = arith.addf %60, %62 : vector<2x128xf32>
    %c0_34 = arith.constant 0 : index
    %c0_35 = arith.constant 0 : index
    %64 = vector.load %arg16[%c0_34, %c0_35] : memref<2x128xf32, #tpu.memory_space<vmem>>, vector<2x128xf32>
    tpu.vector_store %arg16[%c0_34, %c0_35], %63 {strides = array<i32>} : memref<2x128xf32, #tpu.memory_space<vmem>>, vector<2x128xf32>,
    %c0_36 = arith.constant 0 : index
    %c0_37 = arith.constant 0 : index
    %65 = vector.load %arg13[%c0_36, %c0_37] : memref<1x128xf32, #tpu.memory_space<vmem>>, vector<1x128xf32>
    %66 = vector.broadcast %65 : vector<1x128xf32> to vector<2x128xf32>
    %67 = arith.mulf %63, %66 : vector<2x128xf32>
    %cst_38 = arith.constant dense<0.000000e+00> : vector<2xf32>
    %68 = vector.multi_reduction <add>, %67, %cst_38 [1] : vector<2x128xf32> to vector<2xf32>
    %69 = vector.shape_cast %68 : vector<2xf32> to vector<2x1xf32>
    %c0_39 = arith.constant 0 : index
    %c0_40 = arith.constant 0 : index
    %70 = vector.load %arg14[%c0_39, %c0_40] : memref<1x1xf32, #tpu.memory_space<vmem>>, vector<1x1xf32>
    %71 = vector.broadcast %70 : vector<1x1xf32> to vector<2x1xf32>
    %72 = arith.addf %69, %71 : vector<2x1xf32>
    %c0_41 = arith.constant 0 : index
    %c0_42 = arith.constant 0 : index
    %c0_43 = arith.constant 0 : index
    %73 = vector.load %arg15[%c0_41, %c0_42, %c0_43] : memref<1x2x1xf32, #tpu.memory_space<vmem>>, vector<1x2x1xf32>
    %74 = vector.shape_cast %73 : vector<1x2x1xf32> to vector<2x1xf32>
    %75 = vector.shape_cast %72 : vector<2x1xf32> to vector<1x2x1xf32>
    tpu.vector_store %arg15[%c0_41, %c0_42, %c0_43], %75 {strides = array<i32>} : memref<1x2x1xf32, #tpu.memory_space<vmem>>, vector<1x2x1xf32>,
    return
  }
  func.func @transform_0(%arg0: i32) -> (i32, i32, i32) {
    %c0_i32 = arith.constant 0 : i32
    %c0_i32_0 = arith.constant 0 : i32
    %c0_i32_1 = arith.constant 0 : i32
    return %arg0, %c0_i32, %c0_i32_0 : i32, i32, i32
  }
  func.func @transform_1(%arg0: i32) -> (i32, i32) {
    %c0_i32 = arith.constant 0 : i32
    %c0_i32_0 = arith.constant 0 : i32
    %c0_i32_1 = arith.constant 0 : i32
    return %c0_i32, %c0_i32_0 : i32, i32
  }
  func.func @transform_2(%arg0: i32) -> (i32, i32) {
    %c0_i32 = arith.constant 0 : i32
    %c0_i32_0 = arith.constant 0 : i32
    %c0_i32_1 = arith.constant 0 : i32
    return %c0_i32, %c0_i32_0 : i32, i32
  }
  func.func @transform_3(%arg0: i32) -> (i32, i32) {
    %c0_i32 = arith.constant 0 : i32
    %c0_i32_0 = arith.constant 0 : i32
    %c0_i32_1 = arith.constant 0 : i32
    return %c0_i32, %c0_i32_0 : i32, i32
  }
  func.func @transform_4(%arg0: i32) -> (i32, i32) {
    %c0_i32 = arith.constant 0 : i32
    %c0_i32_0 = arith.constant 0 : i32
    %c0_i32_1 = arith.constant 0 : i32
    return %c0_i32, %c0_i32_0 : i32, i32
  }
  func.func @transform_5(%arg0: i32) -> (i32, i32) {
    %c0_i32 = arith.constant 0 : i32
    %c0_i32_0 = arith.constant 0 : i32
    %c0_i32_1 = arith.constant 0 : i32
    return %c0_i32, %c0_i32_0 : i32, i32
  }
  func.func @transform_6(%arg0: i32) -> (i32, i32) {
    %c0_i32 = arith.constant 0 : i32
    %c0_i32_0 = arith.constant 0 : i32
    %c0_i32_1 = arith.constant 0 : i32
    return %c0_i32, %c0_i32_0 : i32, i32
  }
  func.func @transform_7(%arg0: i32) -> (i32, i32) {
    %c0_i32 = arith.constant 0 : i32
    %c0_i32_0 = arith.constant 0 : i32
    %c0_i32_1 = arith.constant 0 : i32
    return %c0_i32, %c0_i32_0 : i32, i32
  }
  func.func @transform_8(%arg0: i32) -> (i32, i32) {
    %c0_i32 = arith.constant 0 : i32
    %c0_i32_0 = arith.constant 0 : i32
    %c0_i32_1 = arith.constant 0 : i32
    return %c0_i32, %c0_i32_0 : i32, i32
  }
  func.func @transform_9(%arg0: i32) -> (i32, i32) {
    %c0_i32 = arith.constant 0 : i32
    %c0_i32_0 = arith.constant 0 : i32
    %c0_i32_1 = arith.constant 0 : i32
    return %c0_i32, %c0_i32_0 : i32, i32
  }
  func.func @transform_10(%arg0: i32) -> (i32, i32) {
    %c0_i32 = arith.constant 0 : i32
    %c0_i32_0 = arith.constant 0 : i32
    %c0_i32_1 = arith.constant 0 : i32
    return %c0_i32, %c0_i32_0 : i32, i32
  }
  func.func @transform_11(%arg0: i32) -> (i32, i32) {
    %c0_i32 = arith.constant 0 : i32
    %c0_i32_0 = arith.constant 0 : i32
    %c0_i32_1 = arith.constant 0 : i32
    return %c0_i32, %c0_i32_0 : i32, i32
  }
  func.func @transform_12(%arg0: i32) -> (i32, i32) {
    %c0_i32 = arith.constant 0 : i32
    %c0_i32_0 = arith.constant 0 : i32
    %c0_i32_1 = arith.constant 0 : i32
    return %c0_i32, %c0_i32_0 : i32, i32
  }
  func.func @transform_13(%arg0: i32) -> (i32, i32) {
    %c0_i32 = arith.constant 0 : i32
    %c0_i32_0 = arith.constant 0 : i32
    %c0_i32_1 = arith.constant 0 : i32
    return %c0_i32, %c0_i32_0 : i32, i32
  }
  func.func @transform_14(%arg0: i32) -> (i32, i32, i32) {
    %c0_i32 = arith.constant 0 : i32
    %c0_i32_0 = arith.constant 0 : i32
    %c0_i32_1 = arith.constant 0 : i32
    return %arg0, %c0_i32, %c0_i32_0 : i32, i32, i32
  }
  func.func @transform_15(%arg0: i32) -> (i32, i32) {
    %c0_i32 = arith.constant 0 : i32
    %c0_i32_0 = arith.constant 0 : i32
    %c0_i32_1 = arith.constant 0 : i32
    return %c0_i32, %c0_i32_0 : i32, i32
  }
}

</mosaic_0001>

<llo_original>
// kernel: value_rnn_rollout.1
$region0: #{value_rnn_rollout.1}
  #allocation0 [shape = 'u32[]', space=smem, size = 0x4, offset = 0x4, fixed_abs, tag = 'smem constant byte address 0x4 - core index']
  #allocation1 [shape = 'u32[144,128]{1,0:T(1,128)}', space=vmem, size = 0x12000, scoped, tag = 'internal scratch']
  #allocation2 [shape = 'f32[1,1]{1,0:T(1,128)S(1)}', space=vmem, size = 0x200, scoped, tag = 'scoped memory for value_rnn_rollout.1']
  %s0 = inlined_call_operand.vmem [shape: f32[8,2,1024], index: 0, kind: input, shape index: {}]
  %s1 = inlined_call_operand.vmem [shape: f32[2,128], index: 1, kind: input, shape index: {}]
  %s2 = inlined_call_operand.hbm [shape: bf16[1024,512], index: 2, kind: input, shape index: {}]
  %s3 = inlined_call_operand.vmem [shape: f32[1,512], index: 3, kind: input, shape index: {}]
  %s4 = inlined_call_operand.vmem [shape: bf16[512,256], index: 4, kind: input, shape index: {}]
  %s5 = inlined_call_operand.vmem [shape: f32[1,256], index: 5, kind: input, shape index: {}]
  %s6 = inlined_call_operand.vmem [shape: bf16[256,32], index: 6, kind: input, shape index: {}]
  %s7 = inlined_call_operand.vmem [shape: f32[1,32], index: 7, kind: input, shape index: {}]
  %s8 = inlined_call_operand.vmem [shape: f32[32,384], index: 8, kind: input, shape index: {}]
  %s9 = inlined_call_operand.vmem [shape: f32[1,384], index: 9, kind: input, shape index: {}]
  %s10 = inlined_call_operand.vmem [shape: f32[128,384], index: 10, kind: input, shape index: {}]
  %s11 = inlined_call_operand.vmem [shape: f32[1,384], index: 11, kind: input, shape index: {}]
  %s12 = inlined_call_operand.vmem [shape: f32[1,128], index: 12, kind: input, shape index: {}]
  %s13 = inlined_call_operand.<no memory space> [shape: f32[1,1], index: 13, kind: input, shape index: {}]
  %s14 = inlined_call_operand.vmem [shape: f32[8,2,1], index: 14, kind: output, shape index: {0}]
  %s15 = inlined_call_operand.hbm [shape: f32[2,128], index: 15, kind: output, shape index: {1}]
  %16 = xla_tuple %s14, %s15
  %s17 = sld [smem:[#allocation0]]
  $region105: #{value_rnn_rollout.1} parent=0
    _
  %s19 = ssub.s32 1, %s17
  %s20 = scalar_select 0, %s19, %s17
  %v21 = vstv %s13
  %22 = vst [vmem:[#allocation2] sm:$0x1] %v21
  $region1: #{value_rnn_rollout.1} parent=0
    #allocation3 [shape = 'u8[1048576]{0}', space=vmem, size = 0x100000, scoped, tag = 'input window, operand 2, single buffered']
    #allocation4 [shape = 's32[2]{0}', space=sflag, size = 0x8, scoped, tag = 'scoped memory for value_rnn_rollout.1']
    #allocation5 [shape = 's32[2]{0}', space=sflag, size = 0x8, scoped, tag = 'scoped memory for value_rnn_rollout.1']
    #allocation6 [shape = 'u8[1024]{0}', space=vmem, size = 0x400, scoped, tag = 'output window, operand 1, single buffered']
    %23 = vsyncpa [#allocation4], 0
    %24 = vsyncpa [#allocation5], 0
    loop: start=0, step=1, limit=10
    $region2: #{value_rnn_rollout.1} parent=1 // loop_pre_header
      _
    $region3: #{value_rnn_rollout.1} parent=1 // loop_header
      %s26 = sphi 0, %s30
      %p27 = scmp.ge.s32.totalorder %s26, 10
      %s36 = sphi 0, %s38
      %s39 = sphi 0, %s36
      %s40 = sphi 0, %s39
      %s56 = sphi 0, %s40
      %s60 = sphi 0, %s60
      %s62 = sphi 0, %s60
      %s63 = sphi 0, %s62
      %s77 = sphi 0, %s63
      %s81 = sphi 0, %s81
      %s83 = sphi 0, %s81
      %s84 = sphi 0, %s83
      %s98 = sphi 0, %s84
      %s102 = sphi 0, %s102
      %s104 = sphi 0, %s102
      %s105 = sphi 0, %s104
      %s119 = sphi 0, %s105
      %s123 = sphi 0, %s123
      %s125 = sphi 0, %s123
      %s126 = sphi 0, %s125
      %s140 = sphi 0, %s126
      %s144 = sphi 0, %s144
      %s146 = sphi 0, %s144
      %s147 = sphi 0, %s146
      %s161 = sphi 0, %s147
      %s165 = sphi 0, %s165
      %s167 = sphi 0, %s165
      %s168 = sphi 0, %s167
      %s182 = sphi 0, %s168
      %s186 = sphi 0, %s186
      %s188 = sphi 0, %s186
      %s189 = sphi 0, %s188
      %s203 = sphi 0, %s189
      %s207 = sphi 0, %s207
      %s209 = sphi 0, %s207
      %s210 = sphi 0, %s209
      %s224 = sphi 0, %s210
      %s228 = sphi 0, %s228
      %s230 = sphi 0, %s228
      %s231 = sphi 0, %s230
      %s245 = sphi 0, %s231
      %s249 = sphi 0, %s249
      %s251 = sphi 0, %s249
      %s252 = sphi 0, %s251
      %s266 = sphi 0, %s252
      %s270 = sphi 0, %s270
      %s272 = sphi 0, %s270
      %s273 = sphi 0, %s272
      %s287 = sphi 0, %s273
      %s291 = sphi 0, %s291
      %s293 = sphi 0, %s291
      %s294 = sphi 0, %s293
      %s308 = sphi 0, %s294
      %s312 = sphi 0, %s312
      %s314 = sphi 0, %s312
      %s315 = sphi 0, %s314
      %s329 = sphi 0, %s315
      %s335 = sphi 0, %s337
      %s338 = sphi 0, %s335
      %s339 = sphi 0, %s338
      %s355 = sphi 0, %s339
      %s359 = sphi 0, %s359
      %s361 = sphi 0, %s359
      %s362 = sphi 0, %s361
      %s376 = sphi 0, %s362
    $region4: #{value_rnn_rollout.1} parent=1 // loop_header_branch
      %29 = sbr.rel (%p27) target = $region8
    $region5: #{value_rnn_rollout.1} parent=1 // loop_body
      %s31 = ssub.s32 %s26, 1
      %s32 = ssub.s32 %s26, 2
      %s33 = sadd.s32 %s26, 1
      %s34 = ssub.s32 %s26, %s33
      %p35 = scmp.eq.s32.totalorder %s34, 0
      %s37 = sadd.s32 %s36, 1
      %s38 = scalar_select %p35, %s36, %s37
      %p41 = pneg %p35
      %p42 = scmp.eq.s32.totalorder %s26, 7
      %p43 = por %p41, %p42
      %p44 = scmp.ne.s32.totalorder %s36, %s39
      %p45 = scmp.eq.s32.totalorder %s26, 0
      %p46 = por %p44, %p45
      %p47 = scmp.ne.s32.totalorder %s36, %s39
      %p48 = scmp.eq.s32.totalorder %s31, 7
      %p49 = por %p47, %p48
      %p50 = scmp.ne.s32.totalorder %s39, %s40
      %p51 = scmp.eq.s32.totalorder %s31, 0
      %p52 = por %p50, %p51
      %p53 = scmp.ne.s32.totalorder %s39, %s40
      %p54 = scmp.eq.s32.totalorder %s32, 7
      %p55 = por %p53, %p54
      %p57 = scmp.ne.s32.totalorder %s40, %s56
      %p58 = scmp.eq.s32.totalorder %s32, 0
      %p59 = por %p57, %p58
      %s61 = sadd.s32 %s60, 1
      %p64 = scmp.eq.s32.totalorder %s26, 7
      %p65 = scmp.ne.s32.totalorder %s60, %s62
      %p66 = scmp.eq.s32.totalorder %s26, 0
      %p67 = por %p65, %p66
      %p68 = scmp.ne.s32.totalorder %s60, %s62
      %p69 = scmp.eq.s32.totalorder %s31, 7
      %p70 = por %p68, %p69
      %p71 = scmp.ne.s32.totalorder %s62, %s63
      %p72 = scmp.eq.s32.totalorder %s31, 0
      %p73 = por %p71, %p72
      %p74 = scmp.ne.s32.totalorder %s62, %s63
      %p75 = scmp.eq.s32.totalorder %s32, 7
      %p76 = por %p74, %p75
      %p78 = scmp.ne.s32.totalorder %s63, %s77
      %p79 = scmp.eq.s32.totalorder %s32, 0
      %p80 = por %p78, %p79
      %s82 = sadd.s32 %s81, 1
      %p85 = scmp.eq.s32.totalorder %s26, 7
      %p86 = scmp.ne.s32.totalorder %s81, %s83
      %p87 = scmp.eq.s32.totalorder %s26, 0
      %p88 = por %p86, %p87
      %p89 = scmp.ne.s32.totalorder %s81, %s83
      %p90 = scmp.eq.s32.totalorder %s31, 7
      %p91 = por %p89, %p90
      %p92 = scmp.ne.s32.totalorder %s83, %s84
      %p93 = scmp.eq.s32.totalorder %s31, 0
      %p94 = por %p92, %p93
      %p95 = scmp.ne.s32.totalorder %s83, %s84
      %p96 = scmp.eq.s32.totalorder %s32, 7
      %p97 = por %p95, %p96
      %p99 = scmp.ne.s32.totalorder %s84, %s98
      %p100 = scmp.eq.s32.totalorder %s32, 0
      %p101 = por %p99, %p100
      %s103 = sadd.s32 %s102, 1
      %p106 = scmp.eq.s32.totalorder %s26, 7
      %p107 = scmp.ne.s32.totalorder %s102, %s104
      %p108 = scmp.eq.s32.totalorder %s26, 0
      %p109 = por %p107, %p108
      %p110 = scmp.ne.s32.totalorder %s102, %s104
      %p111 = scmp.eq.s32.totalorder %s31, 7
      %p112 = por %p110, %p111
      %p113 = scmp.ne.s32.totalorder %s104, %s105
      %p114 = scmp.eq.s32.totalorder %s31, 0
      %p115 = por %p113, %p114
      %p116 = scmp.ne.s32.totalorder %s104, %s105
      %p117 = scmp.eq.s32.totalorder %s32, 7
      %p118 = por %p116, %p117
      %p120 = scmp.ne.s32.totalorder %s105, %s119
      %p121 = scmp.eq.s32.totalorder %s32, 0
      %p122 = por %p120, %p121
      %s124 = sadd.s32 %s123, 1
      %p127 = scmp.eq.s32.totalorder %s26, 7
      %p128 = scmp.ne.s32.totalorder %s123, %s125
      %p129 = scmp.eq.s32.totalorder %s26, 0
      %p130 = por %p128, %p129
      %p131 = scmp.ne.s32.totalorder %s123, %s125
      %p132 = scmp.eq.s32.totalorder %s31, 7
      %p133 = por %p131, %p132
      %p134 = scmp.ne.s32.totalorder %s125, %s126
      %p135 = scmp.eq.s32.totalorder %s31, 0
      %p136 = por %p134, %p135
      %p137 = scmp.ne.s32.totalorder %s125, %s126
      %p138 = scmp.eq.s32.totalorder %s32, 7
      %p139 = por %p137, %p138
      %p141 = scmp.ne.s32.totalorder %s126, %s140
      %p142 = scmp.eq.s32.totalorder %s32, 0
      %p143 = por %p141, %p142
      %s145 = sadd.s32 %s144, 1
      %p148 = scmp.eq.s32.totalorder %s26, 7
      %p149 = scmp.ne.s32.totalorder %s144, %s146
      %p150 = scmp.eq.s32.totalorder %s26, 0
      %p151 = por %p149, %p150
      %p152 = scmp.ne.s32.totalorder %s144, %s146
      %p153 = scmp.eq.s32.totalorder %s31, 7
      %p154 = por %p152, %p153
      %p155 = scmp.ne.s32.totalorder %s146, %s147
      %p156 = scmp.eq.s32.totalorder %s31, 0
      %p157 = por %p155, %p156
      %p158 = scmp.ne.s32.totalorder %s146, %s147
      %p159 = scmp.eq.s32.totalorder %s32, 7
      %p160 = por %p158, %p159
      %p162 = scmp.ne.s32.totalorder %s147, %s161
      %p163 = scmp.eq.s32.totalorder %s32, 0
      %p164 = por %p162, %p163
      %s166 = sadd.s32 %s165, 1
      %p169 = scmp.eq.s32.totalorder %s26, 7
      %p170 = scmp.ne.s32.totalorder %s165, %s167
      %p171 = scmp.eq.s32.totalorder %s26, 0
      %p172 = por %p170, %p171
      %p173 = scmp.ne.s32.totalorder %s165, %s167
      %p174 = scmp.eq.s32.totalorder %s31, 7
      %p175 = por %p173, %p174
      %p176 = scmp.ne.s32.totalorder %s167, %s168
      %p177 = scmp.eq.s32.totalorder %s31, 0
      %p178 = por %p176, %p177
      %p179 = scmp.ne.s32.totalorder %s167, %s168
      %p180 = scmp.eq.s32.totalorder %s32, 7
      %p181 = por %p179, %p180
      %p183 = scmp.ne.s32.totalorder %s168, %s182
      %p184 = scmp.eq.s32.totalorder %s32, 0
      %p185 = por %p183, %p184
      %s187 = sadd.s32 %s186, 1
      %p190 = scmp.eq.s32.totalorder %s26, 7
      %p191 = scmp.ne.s32.totalorder %s186, %s188
      %p192 = scmp.eq.s32.totalorder %s26, 0
      %p193 = por %p191, %p192
      %p194 = scmp.ne.s32.totalorder %s186, %s188
      %p195 = scmp.eq.s32.totalorder %s31, 7
      %p196 = por %p194, %p195
      %p197 = scmp.ne.s32.totalorder %s188, %s189
      %p198 = scmp.eq.s32.totalorder %s31, 0
      %p199 = por %p197, %p198
      %p200 = scmp.ne.s32.totalorder %s188, %s189
      %p201 = scmp.eq.s32.totalorder %s32, 7
      %p202 = por %p200, %p201
      %p204 = scmp.ne.s32.totalorder %s189, %s203
      %p205 = scmp.eq.s32.totalorder %s32, 0
      %p206 = por %p204, %p205
      %s208 = sadd.s32 %s207, 1
      %p211 = scmp.eq.s32.totalorder %s26, 7
      %p212 = scmp.ne.s32.totalorder %s207, %s209
      %p213 = scmp.eq.s32.totalorder %s26, 0
      %p214 = por %p212, %p213
      %p215 = scmp.ne.s32.totalorder %s207, %s209
      %p216 = scmp.eq.s32.totalorder %s31, 7
      %p217 = por %p215, %p216
      %p218 = scmp.ne.s32.totalorder %s209, %s210
      %p219 = scmp.eq.s32.totalorder %s31, 0
      %p220 = por %p218, %p219
      %p221 = scmp.ne.s32.totalorder %s209, %s210
      %p222 = scmp.eq.s32.totalorder %s32, 7
      %p223 = por %p221, %p222
      %p225 = scmp.ne.s32.totalorder %s210, %s224
      %p226 = scmp.eq.s32.totalorder %s32, 0
      %p227 = por %p225, %p226
      %s229 = sadd.s32 %s228, 1
      %p232 = scmp.eq.s32.totalorder %s26, 7
      %p233 = scmp.ne.s32.totalorder %s228, %s230
      %p234 = scmp.eq.s32.totalorder %s26, 0
      %p235 = por %p233, %p234
      %p236 = scmp.ne.s32.totalorder %s228, %s230
      %p237 = scmp.eq.s32.totalorder %s31, 7
      %p238 = por %p236, %p237
      %p239 = scmp.ne.s32.totalorder %s230, %s231
      %p240 = scmp.eq.s32.totalorder %s31, 0
      %p241 = por %p239, %p240
      %p242 = scmp.ne.s32.totalorder %s230, %s231
      %p243 = scmp.eq.s32.totalorder %s32, 7
      %p244 = por %p242, %p243
      %p246 = scmp.ne.s32.totalorder %s231, %s245
      %p247 = scmp.eq.s32.totalorder %s32, 0
      %p248 = por %p246, %p247
      %s250 = sadd.s32 %s249, 1
      %p253 = scmp.eq.s32.totalorder %s26, 7
      %p254 = scmp.ne.s32.totalorder %s249, %s251
      %p255 = scmp.eq.s32.totalorder %s26, 0
      %p256 = por %p254, %p255
      %p257 = scmp.ne.s32.totalorder %s249, %s251
      %p258 = scmp.eq.s32.totalorder %s31, 7
      %p259 = por %p257, %p258
      %p260 = scmp.ne.s32.totalorder %s251, %s252
      %p261 = scmp.eq.s32.totalorder %s31, 0
      %p262 = por %p260, %p261
      %p263 = scmp.ne.s32.totalorder %s251, %s252
      %p264 = scmp.eq.s32.totalorder %s32, 7
      %p265 = por %p263, %p264
      %p267 = scmp.ne.s32.totalorder %s252, %s266
      %p268 = scmp.eq.s32.totalorder %s32, 0
      %p269 = por %p267, %p268
      %s271 = sadd.s32 %s270, 1
      %p274 = scmp.eq.s32.totalorder %s26, 7
      %p275 = scmp.ne.s32.totalorder %s270, %s272
      %p276 = scmp.eq.s32.totalorder %s26, 0
      %p277 = por %p275, %p276
      %p278 = scmp.ne.s32.totalorder %s270, %s272
      %p279 = scmp.eq.s32.totalorder %s31, 7
      %p280 = por %p278, %p279
      %p281 = scmp.ne.s32.totalorder %s272, %s273
      %p282 = scmp.eq.s32.totalorder %s31, 0
      %p283 = por %p281, %p282
      %p284 = scmp.ne.s32.totalorder %s272, %s273
      %p285 = scmp.eq.s32.totalorder %s32, 7
      %p286 = por %p284, %p285
      %p288 = scmp.ne.s32.totalorder %s273, %s287
      %p289 = scmp.eq.s32.totalorder %s32, 0
      %p290 = por %p288, %p289
      %s292 = sadd.s32 %s291, 1
      %p295 = scmp.eq.s32.totalorder %s26, 7
      %p296 = scmp.ne.s32.totalorder %s291, %s293
      %p297 = scmp.eq.s32.totalorder %s26, 0
      %p298 = por %p296, %p297
      %p299 = scmp.ne.s32.totalorder %s291, %s293
      %p300 = scmp.eq.s32.totalorder %s31, 7
      %p301 = por %p299, %p300
      %p302 = scmp.ne.s32.totalorder %s293, %s294
      %p303 = scmp.eq.s32.totalorder %s31, 0
      %p304 = por %p302, %p303
      %p305 = scmp.ne.s32.totalorder %s293, %s294
      %p306 = scmp.eq.s32.totalorder %s32, 7
      %p307 = por %p305, %p306
      %p309 = scmp.ne.s32.totalorder %s294, %s308
      %p310 = scmp.eq.s32.totalorder %s32, 0
      %p311 = por %p309, %p310
      %s313 = sadd.s32 %s312, 1
      %p316 = scmp.eq.s32.totalorder %s26, 7
      %p317 = scmp.ne.s32.totalorder %s312, %s314
      %p318 = scmp.eq.s32.totalorder %s26, 0
      %p319 = por %p317, %p318
      %p320 = scmp.ne.s32.totalorder %s312, %s314
      %p321 = scmp.eq.s32.totalorder %s31, 7
      %p322 = por %p320, %p321
      %p323 = scmp.ne.s32.totalorder %s314, %s315
      %p324 = scmp.eq.s32.totalorder %s31, 0
      %p325 = por %p323, %p324
      %p326 = scmp.ne.s32.totalorder %s314, %s315
      %p327 = scmp.eq.s32.totalorder %s32, 7
      %p328 = por %p326, %p327
      %p330 = scmp.ne.s32.totalorder %s315, %s329
      %p331 = scmp.eq.s32.totalorder %s32, 0
      %p332 = por %p330, %p331
      %s333 = ssub.s32 %s26, %s33
      %p334 = scmp.eq.s32.totalorder %s333, 0
      %s336 = sadd.s32 %s335, 1
      %s337 = scalar_select %p334, %s335, %s336
      %p340 = pneg %p334
      %p341 = scmp.eq.s32.totalorder %s26, 7
      %p342 = por %p340, %p341
      %p343 = scmp.ne.s32.totalorder %s335, %s338
      %p344 = scmp.eq.s32.totalorder %s26, 0
      %p345 = por %p343, %p344
      %p346 = scmp.ne.s32.totalorder %s335, %s338
      %p347 = scmp.eq.s32.totalorder %s31, 7
      %p348 = por %p346, %p347
      %p349 = scmp.ne.s32.totalorder %s338, %s339
      %p350 = scmp.eq.s32.totalorder %s31, 0
      %p351 = por %p349, %p350
      %p352 = scmp.ne.s32.totalorder %s338, %s339
      %p353 = scmp.eq.s32.totalorder %s32, 7
      %p354 = por %p352, %p353
      %p356 = scmp.ne.s32.totalorder %s339, %s355
      %p357 = scmp.eq.s32.totalorder %s32, 0
      %p358 = por %p356, %p357
      %s360 = sadd.s32 %s359, 1
      %p363 = scmp.eq.s32.totalorder %s26, 7
      %p364 = scmp.ne.s32.totalorder %s359, %s361
      %p365 = scmp.eq.s32.totalorder %s26, 0
      %p366 = por %p364, %p365
      %p367 = scmp.ne.s32.totalorder %s359, %s361
      %p368 = scmp.eq.s32.totalorder %s31, 7
      %p369 = por %p367, %p368
      %p370 = scmp.ne.s32.totalorder %s361, %s362
      %p371 = scmp.eq.s32.totalorder %s31, 0
      %p372 = por %p370, %p371
      %p373 = scmp.ne.s32.totalorder %s361, %s362
      %p374 = scmp.eq.s32.totalorder %s32, 7
      %p375 = por %p373, %p374
      %p377 = scmp.ne.s32.totalorder %s362, %s376
      %p378 = scmp.eq.s32.totalorder %s32, 0
      %p379 = por %p377, %p378
      %p380 = scmp.le.s32.totalorder 1, %s26
      %p381 = scmp.lt.s32.totalorder %s26, 9
      %p382 = pnand %p380, %p381
      %p383 = pneg %p382
      // Predicated region
      $region9: #{value_rnn_rollout.1} parent=5 // pred_check
        _
      $region10: #{value_rnn_rollout.1} parent=5 // pred_check_branch
        %385 = sbr.rel (%p382) target = $region12
      $region11: #{value_rnn_rollout.1} parent=5 // pred_region
        %s386 = ssub.s32 %s26, 1
        // Predicated region
        $region13: #{value_rnn_rollout.1} parent=11 // pred_check
          %p387 = pneg %p73
        $region14: #{value_rnn_rollout.1} parent=11 // pred_check_branch
          %389 = sbr.rel (%p387) target = $region16
        $region15: #{value_rnn_rollout.1} parent=11 // pred_region
          _
        $region16: #{value_rnn_rollout.1} parent=11 // pred_fallthru
          _
        // Predicated region
        $region17: #{value_rnn_rollout.1} parent=11 // pred_check
          %p390 = pneg %p94
        $region18: #{value_rnn_rollout.1} parent=11 // pred_check_branch
          %392 = sbr.rel (%p390) target = $region20
        $region19: #{value_rnn_rollout.1} parent=11 // pred_region
          %s394 = ssub.s32 32768, 32768
          %395 = vsyncadd [#allocation4], %s394
          %s396 = sshll.u32 [#allocation3], 4
          %s397 = int_to_ptr.vmem [resolvable:$true] %s396
          %402 = dma.hbm_to_vmem [thread:$0]  %s2, 32768, %s397, [#allocation4], 256, 256, 16
        $region20: #{value_rnn_rollout.1} parent=11 // pred_fallthru
          _
        // Predicated region
        $region21: #{value_rnn_rollout.1} parent=11 // pred_check
          %p403 = pneg %p115
        $region22: #{value_rnn_rollout.1} parent=11 // pred_check_branch
          %405 = sbr.rel (%p403) target = $region24
        $region23: #{value_rnn_rollout.1} parent=11 // pred_region
          _
        $region24: #{value_rnn_rollout.1} parent=11 // pred_fallthru
          _
        // Predicated region
        $region25: #{value_rnn_rollout.1} parent=11 // pred_check
          %p406 = pneg %p136
        $region26: #{value_rnn_rollout.1} parent=11 // pred_check_branch
          %408 = sbr.rel (%p406) target = $region28
        $region27: #{value_rnn_rollout.1} parent=11 // pred_region
          _
        $region28: #{value_rnn_rollout.1} parent=11 // pred_fallthru
          _
        // Predicated region
        $region29: #{value_rnn_rollout.1} parent=11 // pred_check
          %p409 = pneg %p157
        $region30: #{value_rnn_rollout.1} parent=11 // pred_check_branch
          %411 = sbr.rel (%p409) target = $region32
        $region31: #{value_rnn_rollout.1} parent=11 // pred_region
          _
        $region32: #{value_rnn_rollout.1} parent=11 // pred_fallthru
          _
        // Predicated region
        $region33: #{value_rnn_rollout.1} parent=11 // pred_check
          %p412 = pneg %p178
        $region34: #{value_rnn_rollout.1} parent=11 // pred_check_branch
          %414 = sbr.rel (%p412) target = $region36
        $region35: #{value_rnn_rollout.1} parent=11 // pred_region
          _
        $region36: #{value_rnn_rollout.1} parent=11 // pred_fallthru
          _
        // Predicated region
        $region37: #{value_rnn_rollout.1} parent=11 // pred_check
          %p415 = pneg %p199
        $region38: #{value_rnn_rollout.1} parent=11 // pred_check_branch
          %417 = sbr.rel (%p415) target = $region40
        $region39: #{value_rnn_rollout.1} parent=11 // pred_region
          _
        $region40: #{value_rnn_rollout.1} parent=11 // pred_fallthru
          _
        // Predicated region
        $region41: #{value_rnn_rollout.1} parent=11 // pred_check
          %p418 = pneg %p220
        $region42: #{value_rnn_rollout.1} parent=11 // pred_check_branch
          %420 = sbr.rel (%p418) target = $region44
        $region43: #{value_rnn_rollout.1} parent=11 // pred_region
          _
        $region44: #{value_rnn_rollout.1} parent=11 // pred_fallthru
          _
        // Predicated region
        $region45: #{value_rnn_rollout.1} parent=11 // pred_check
          %p421 = pneg %p241
        $region46: #{value_rnn_rollout.1} parent=11 // pred_check_branch
          %423 = sbr.rel (%p421) target = $region48
        $region47: #{value_rnn_rollout.1} parent=11 // pred_region
          _
        $region48: #{value_rnn_rollout.1} parent=11 // pred_fallthru
          _
        // Predicated region
        $region49: #{value_rnn_rollout.1} parent=11 // pred_check
          %p424 = pneg %p262
        $region50: #{value_rnn_rollout.1} parent=11 // pred_check_branch
          %426 = sbr.rel (%p424) target = $region52
        $region51: #{value_rnn_rollout.1} parent=11 // pred_region
          _
        $region52: #{value_rnn_rollout.1} parent=11 // pred_fallthru
          _
        // Predicated region
        $region53: #{value_rnn_rollout.1} parent=11 // pred_check
          %p427 = pneg %p283
        $region54: #{value_rnn_rollout.1} parent=11 // pred_check_branch
          %429 = sbr.rel (%p427) target = $region56
        $region55: #{value_rnn_rollout.1} parent=11 // pred_region
          _
        $region56: #{value_rnn_rollout.1} parent=11 // pred_fallthru
          _
        // Predicated region
        $region57: #{value_rnn_rollout.1} parent=11 // pred_check
          %p430 = pneg %p304
        $region58: #{value_rnn_rollout.1} parent=11 // pred_check_branch
          %432 = sbr.rel (%p430) target = $region60
        $region59: #{value_rnn_rollout.1} parent=11 // pred_region
          _
        $region60: #{value_rnn_rollout.1} parent=11 // pred_fallthru
          _
        // Predicated region
        $region61: #{value_rnn_rollout.1} parent=11 // pred_check
          %p433 = pneg %p325
        $region62: #{value_rnn_rollout.1} parent=11 // pred_check_branch
          %435 = sbr.rel (%p433) target = $region64
        $region63: #{value_rnn_rollout.1} parent=11 // pred_region
          _
        $region64: #{value_rnn_rollout.1} parent=11 // pred_fallthru
          _
      $region12: #{value_rnn_rollout.1} parent=5 // pred_fallthru
        _
      %p436 = scmp.lt.s32.totalorder %s26, 8
      // Predicated region
      $region65: #{value_rnn_rollout.1} parent=5 // pred_check
        %p437 = pneg %p436
      $region66: #{value_rnn_rollout.1} parent=5 // pred_check_branch
        %439 = sbr.rel (%p437) target = $region68
      $region67: #{value_rnn_rollout.1} parent=5 // pred_region
        // Predicated region
        $region69: #{value_rnn_rollout.1} parent=67 // pred_check
          %p440 = pneg %p46
        $region70: #{value_rnn_rollout.1} parent=67 // pred_check_branch
          %442 = sbr.rel (%p440) target = $region72
        $region71: #{value_rnn_rollout.1} parent=67 // pred_region
          %p443 = scmp.lt.s32.totalorder %s26, 7
          %s444 = scalar_select %p443, %s26, 7
          %s445 = smul.addr %s444, 8
          %s446 = smul.addr %s445, 2
          %s447 = scalar_lea.vmem %s0, %s446
        $region72: #{value_rnn_rollout.1} parent=67 // pred_fallthru
          _
      $region68: #{value_rnn_rollout.1} parent=5 // pred_fallthru
        _
      %p448 = scmp.le.s32.totalorder 1, %s26
      %p449 = scmp.lt.s32.totalorder %s26, 9
      %p450 = pnand %p448, %p449
      %p451 = pneg %p450
      // Predicated region
      $region73: #{value_rnn_rollout.1} parent=5 // pred_check
        _
      $region74: #{value_rnn_rollout.1} parent=5 // pred_check_branch
        %453 = sbr.rel (%p450) target = $region76
      $region75: #{value_rnn_rollout.1} parent=5 // pred_region
        %s454 = ssub.s32 %s26, 1
        // Predicated region
        $region77: #{value_rnn_rollout.1} parent=75 // pred_check
          %p455 = pneg %p94
        $region78: #{value_rnn_rollout.1} parent=75 // pred_check_branch
          %457 = sbr.rel (%p455) target = $region80
        $region79: #{value_rnn_rollout.1} parent=75 // pred_region
          %458 = dma.done [#allocation4], 32768
        $region80: #{value_rnn_rollout.1} parent=75 // pred_fallthru
          _
        %p459 = scmp.lt.s32.totalorder %s31, 7
        %s460 = scalar_select %p459, %s31, 7
        %s461 = smul.addr %s460, 8
        %s462 = smul.addr %s461, 2
        %s463 = scalar_lea.vmem %s0, %s462
        %p464 = pneg %p52
        %p465 = pneg %p49
        %p466 = pneg %p73
        %p467 = pneg %p70
        %p468 = pneg %p94
        %p469 = pneg %p91
        %p470 = pneg %p115
        %p471 = pneg %p112
        %p472 = pneg %p136
        %p473 = pneg %p133
        %p474 = pneg %p157
        %p475 = pneg %p154
        %p476 = pneg %p178
        %p477 = pneg %p175
        %p478 = pneg %p199
        %p479 = pneg %p196
        %p480 = pneg %p220
        %p481 = pneg %p217
        %p482 = pneg %p241
        %p483 = pneg %p238
        %p484 = pneg %p262
        %p485 = pneg %p259
        %p486 = pneg %p283
        %p487 = pneg %p280
        %p488 = pneg %p304
        %p489 = pneg %p301
        %p490 = pneg %p325
        %p491 = pneg %p322
        %p492 = pneg %p351
        %p493 = pneg %p348
        %p494 = scmp.lt.s32.totalorder %s31, 7
        %s495 = scalar_select %p494, %s31, 7
        %s496 = smul.addr %s495, 2
        %s497 = scalar_lea.vmem %s14, %s496
        %p498 = pneg %p372
        %p499 = pneg %p369
        %p500 = scmp.lt.s32.totalorder %s31, 7
        %s501 = scalar_select %p500, %s31, 7
        %s502 = smul.addr %s501, 8
        %s503 = smul.addr %s502, 2
        %s504 = scalar_lea.vmem %s0, %s503
        %p505 = scmp.lt.s32.totalorder %s31, 7
        %s506 = scalar_select %p505, %s31, 7
        %s507 = smul.addr %s506, 2
        %s508 = scalar_lea.vmem %s14, %s507
        %p510 = scmp.eq.s32.totalorder %s31, 0
        // Predicated region
        $region81: #{value_rnn_rollout.1} parent=75 // pred_check
          %p511 = pneg %p510
        $region82: #{value_rnn_rollout.1} parent=75 // pred_check_branch
          %513 = sbr.rel (%p511) target = $region84
        $region83: #{value_rnn_rollout.1} parent=75 // pred_region
          %v514 = vld [vmem:[%s1] sm:$0x3]
          %515 = vst [vmem:[#allocation6] sm:$0x3] %v514
        $region84: #{value_rnn_rollout.1} parent=75 // pred_fallthru
          _
        %v516 = vld [vmem:[%s504] sm:$0xff]
        %v517 = vld [vmem:[%s504 + $0x8] sm:$0xff]
        %v520 = vcombine.high %v516, %v516
        %v522 = vunpack.c.l.s4 1983009808
        %v523 = vunpack.c.0.s8 %v522
        %v524 = vlaneseq
        %v525 = vshrl.u32 %v524, 7
        %v526 = vsub.s32 %v523, %v525
        %v527 = vrot.slane %v516, %v526
        %v529 = vunpack.c.l.s4 1983009808
        %v530 = vunpack.c.0.s8 %v529
        %v531 = vlaneseq
        %v532 = vshrl.u32 %v531, 7
        %v533 = vsub.s32 %v530, %v532
        %v534 = vrot.slane %v520, %v533
        %v535 = vcombine.high %v527, %v527
        %v536 = vcombine.high %v534, %v534
        %v537 = vcombine.high %v517, %v517
        %v539 = vunpack.c.l.s4 1983009808
        %v540 = vunpack.c.0.s8 %v539
        %v541 = vlaneseq
        %v542 = vshrl.u32 %v541, 7
        %v543 = vsub.s32 %v540, %v542
        %v544 = vrot.slane %v517, %v543
        %v546 = vunpack.c.l.s4 1983009808
        %v547 = vunpack.c.0.s8 %v546
        %v548 = vlaneseq
        %v549 = vshrl.u32 %v548, 7
        %v550 = vsub.s32 %v547, %v549
        %v551 = vrot.slane %v537, %v550
        %v552 = vcombine.high %v544, %v544
        %v553 = vcombine.high %v551, %v551
        %v562 = vpack.c.bf16 %v527, %v527
        %v563 = vpack.c.bf16 %v535, %v535
        %v564 = vpack.c.bf16 %v534, %v534
        %v565 = vpack.c.bf16 %v536, %v536
        %v566 = vpack.c.bf16 %v544, %v544
        %v567 = vpack.c.bf16 %v552, %v552
        %v568 = vpack.c.bf16 %v551, %v551
        %v569 = vpack.c.bf16 %v553, %v553
        %v570 = vld [vmem:[#allocation3] sm:$0xff]
        %v571 = vld [vmem:[#allocation3 + $0x8] sm:$0xff]
        %v572 = vld [vmem:[#allocation3 + $0x10] sm:$0xff]
        %v573 = vld [vmem:[#allocation3 + $0x18] sm:$0xff]
        %v574 = vld [vmem:[#allocation3 + $0x20] sm:$0xff]
        %v575 = vld [vmem:[#allocation3 + $0x28] sm:$0xff]
        %v576 = vld [vmem:[#allocation3 + $0x30] sm:$0xff]
        %v577 = vld [vmem:[#allocation3 + $0x38] sm:$0xff]
        %v578 = vld [vmem:[#allocation3 + $0x40] sm:$0xff]
        %v579 = vld [vmem:[#allocation3 + $0x48] sm:$0xff]
        %v580 = vld [vmem:[#allocation3 + $0x50] sm:$0xff]
        %v581 = vld [vmem:[#allocation3 + $0x58] sm:$0xff]
        %v582 = vld [vmem:[#allocation3 + $0x60] sm:$0xff]
        %v583 = vld [vmem:[#allocation3 + $0x68] sm:$0xff]
        %v584 = vld [vmem:[#allocation3 + $0x70] sm:$0xff]
        %v585 = vld [vmem:[#allocation3 + $0x78] sm:$0xff]
        %v586 = vld [vmem:[#allocation3 + $0x80] sm:$0xff]
        %v587 = vld [vmem:[#allocation3 + $0x88] sm:$0xff]
        %v588 = vld [vmem:[#allocation3 + $0x90] sm:$0xff]
        %v589 = vld [vmem:[#allocation3 + $0x98] sm:$0xff]
        %v590 = vld [vmem:[#allocation3 + $0xa0] sm:$0xff]
        %v591 = vld [vmem:[#allocation3 + $0xa8] sm:$0xff]
        %v592 = vld [vmem:[#allocation3 + $0xb0] sm:$0xff]
        %v593 = vld [vmem:[#allocation3 + $0xb8] sm:$0xff]
        %v594 = vld [vmem:[#allocation3 + $0xc0] sm:$0xff]
        %v595 = vld [vmem:[#allocation3 + $0xc8] sm:$0xff]
        %v596 = vld [vmem:[#allocation3 + $0xd0] sm:$0xff]
        %v597 = vld [vmem:[#allocation3 + $0xd8] sm:$0xff]
        %v598 = vld [vmem:[#allocation3 + $0xe0] sm:$0xff]
        %v599 = vld [vmem:[#allocation3 + $0xe8] sm:$0xff]
        %v600 = vld [vmem:[#allocation3 + $0xf0] sm:$0xff]
        %v601 = vld [vmem:[#allocation3 + $0xf8] sm:$0xff]
        %v602 = vld [vmem:[#allocation3 + $0x100] sm:$0xff]
        %v603 = vld [vmem:[#allocation3 + $0x108] sm:$0xff]
        %v604 = vld [vmem:[#allocation3 + $0x110] sm:$0xff]
        %v605 = vld [vmem:[#allocation3 + $0x118] sm:$0xff]
        %v606 = vld [vmem:[#allocation3 + $0x120] sm:$0xff]
        %v607 = vld [vmem:[#allocation3 + $0x128] sm:$0xff]
        %v608 = vld [vmem:[#allocation3 + $0x130] sm:$0xff]
        %v609 = vld [vmem:[#allocation3 + $0x138] sm:$0xff]
        %v610 = vld [vmem:[#allocation3 + $0x140] sm:$0xff]
        %v611 = vld [vmem:[#allocation3 + $0x148] sm:$0xff]
        %v612 = vld [vmem:[#allocation3 + $0x150] sm:$0xff]
        %v613 = vld [vmem:[#allocation3 + $0x158] sm:$0xff]
        %v614 = vld [vmem:[#allocation3 + $0x160] sm:$0xff]
        %v615 = vld [vmem:[#allocation3 + $0x168] sm:$0xff]
        %v616 = vld [vmem:[#allocation3 + $0x170] sm:$0xff]
        %v617 = vld [vmem:[#allocation3 + $0x178] sm:$0xff]
        %v618 = vld [vmem:[#allocation3 + $0x180] sm:$0xff]
        %v619 = vld [vmem:[#allocation3 + $0x188] sm:$0xff]
        %v620 = vld [vmem:[#allocation3 + $0x190] sm:$0xff]
        %v621 = vld [vmem:[#allocation3 + $0x198] sm:$0xff]
        %v622 = vld [vmem:[#allocation3 + $0x1a0] sm:$0xff]
        %v623 = vld [vmem:[#allocation3 + $0x1a8] sm:$0xff]
        %v624 = vld [vmem:[#allocation3 + $0x1b0] sm:$0xff]
        %v625 = vld [vmem:[#allocation3 + $0x1b8] sm:$0xff]
        %v626 = vld [vmem:[#allocation3 + $0x1c0] sm:$0xff]
        %v627 = vld [vmem:[#allocation3 + $0x1c8] sm:$0xff]
        %v628 = vld [vmem:[#allocation3 + $0x1d0] sm:$0xff]
        %v629 = vld [vmem:[#allocation3 + $0x1d8] sm:$0xff]
        %v630 = vld [vmem:[#allocation3 + $0x1e0] sm:$0xff]
        %v631 = vld [vmem:[#allocation3 + $0x1e8] sm:$0xff]
        %v632 = vld [vmem:[#allocation3 + $0x1f0] sm:$0xff]
        %v633 = vld [vmem:[#allocation3 + $0x1f8] sm:$0xff]
        %v634 = vld [vmem:[#allocation3 + $0x200] sm:$0xff]
        %v635 = vld [vmem:[#allocation3 + $0x208] sm:$0xff]
        %v636 = vld [vmem:[#allocation3 + $0x210] sm:$0xff]
        %v637 = vld [vmem:[#allocation3 + $0x218] sm:$0xff]
        %v638 = vld [vmem:[#allocation3 + $0x220] sm:$0xff]
        %v639 = vld [vmem:[#allocation3 + $0x228] sm:$0xff]
        %v640 = vld [vmem:[#allocation3 + $0x230] sm:$0xff]
        %v641 = vld [vmem:[#allocation3 + $0x238] sm:$0xff]
        %v642 = vld [vmem:[#allocation3 + $0x240] sm:$0xff]
        %v643 = vld [vmem:[#allocation3 + $0x248] sm:$0xff]
        %v644 = vld [vmem:[#allocation3 + $0x250] sm:$0xff]
        %v645 = vld [vmem:[#allocation3 + $0x258] sm:$0xff]
        %v646 = vld [vmem:[#allocation3 + $0x260] sm:$0xff]
        %v647 = vld [vmem:[#allocation3 + $0x268] sm:$0xff]
        %v648 = vld [vmem:[#allocation3 + $0x270] sm:$0xff]
        %v649 = vld [vmem:[#allocation3 + $0x278] sm:$0xff]
        %v650 = vld [vmem:[#allocation3 + $0x280] sm:$0xff]
        %v651 = vld [vmem:[#allocation3 + $0x288] sm:$0xff]
        %v652 = vld [vmem:[#allocation3 + $0x290] sm:$0xff]
        %v653 = vld [vmem:[#allocation3 + $0x298] sm:$0xff]
        %v654 = vld [vmem:[#allocation3 + $0x2a0] sm:$0xff]
        %v655 = vld [vmem:[#allocation3 + $0x2a8] sm:$0xff]
        %v656 = vld [vmem:[#allocation3 + $0x2b0] sm:$0xff]
        %v657 = vld [vmem:[#allocation3 + $0x2b8] sm:$0xff]
        %v658 = vld [vmem:[#allocation3 + $0x2c0] sm:$0xff]
        %v659 = vld [vmem:[#allocation3 + $0x2c8] sm:$0xff]
        %v660 = vld [vmem:[#allocation3 + $0x2d0] sm:$0xff]
        %v661 = vld [vmem:[#allocation3 + $0x2d8] sm:$0xff]
        %v662 = vld [vmem:[#allocation3 + $0x2e0] sm:$0xff]
        %v663 = vld [vmem:[#allocation3 + $0x2e8] sm:$0xff]
        %v664 = vld [vmem:[#allocation3 + $0x2f0] sm:$0xff]
        %v665 = vld [vmem:[#allocation3 + $0x2f8] sm:$0xff]
        %v666 = vld [vmem:[#allocation3 + $0x300] sm:$0xff]
        %v667 = vld [vmem:[#allocation3 + $0x308] sm:$0xff]
        %v668 = vld [vmem:[#allocation3 + $0x310] sm:$0xff]
        %v669 = vld [vmem:[#allocation3 + $0x318] sm:$0xff]
        %v670 = vld [vmem:[#allocation3 + $0x320] sm:$0xff]
        %v671 = vld [vmem:[#allocation3 + $0x328] sm:$0xff]
        %v672 = vld [vmem:[#allocation3 + $0x330] sm:$0xff]
        %v673 = vld [vmem:[#allocation3 + $0x338] sm:$0xff]
        %v674 = vld [vmem:[#allocation3 + $0x340] sm:$0xff]
        %v675 = vld [vmem:[#allocation3 + $0x348] sm:$0xff]
        %v676 = vld [vmem:[#allocation3 + $0x350] sm:$0xff]
        %v677 = vld [vmem:[#allocation3 + $0x358] sm:$0xff]
        %v678 = vld [vmem:[#allocation3 + $0x360] sm:$0xff]
        %v679 = vld [vmem:[#allocation3 + $0x368] sm:$0xff]
        %v680 = vld [vmem:[#allocation3 + $0x370] sm:$0xff]
        %v681 = vld [vmem:[#allocation3 + $0x378] sm:$0xff]
        %v682 = vld [vmem:[#allocation3 + $0x380] sm:$0xff]
        %v683 = vld [vmem:[#allocation3 + $0x388] sm:$0xff]
        %v684 = vld [vmem:[#allocation3 + $0x390] sm:$0xff]
        %v685 = vld [vmem:[#allocation3 + $0x398] sm:$0xff]
        %v686 = vld [vmem:[#allocation3 + $0x3a0] sm:$0xff]
        %v687 = vld [vmem:[#allocation3 + $0x3a8] sm:$0xff]
        %v688 = vld [vmem:[#allocation3 + $0x3b0] sm:$0xff]
        %v689 = vld [vmem:[#allocation3 + $0x3b8] sm:$0xff]
        %v690 = vld [vmem:[#allocation3 + $0x3c0] sm:$0xff]
        %v691 = vld [vmem:[#allocation3 + $0x3c8] sm:$0xff]
        %v692 = vld [vmem:[#allocation3 + $0x3d0] sm:$0xff]
        %v693 = vld [vmem:[#allocation3 + $0x3d8] sm:$0xff]
        %v694 = vld [vmem:[#allocation3 + $0x3e0] sm:$0xff]
        %v695 = vld [vmem:[#allocation3 + $0x3e8] sm:$0xff]
        %v696 = vld [vmem:[#allocation3 + $0x3f0] sm:$0xff]
        %v697 = vld [vmem:[#allocation3 + $0x3f8] sm:$0xff]
        %v698 = vld [vmem:[#allocation3 + $0x400] sm:$0xff]
        %v699 = vld [vmem:[#allocation3 + $0x408] sm:$0xff]
        %v700 = vld [vmem:[#allocation3 + $0x410] sm:$0xff]
        %v701 = vld [vmem:[#allocation3 + $0x418] sm:$0xff]
        %v702 = vld [vmem:[#allocation3 + $0x420] sm:$0xff]
        %v703 = vld [vmem:[#allocation3 + $0x428] sm:$0xff]
        %v704 = vld [vmem:[#allocation3 + $0x430] sm:$0xff]
        %v705 = vld [vmem:[#allocation3 + $0x438] sm:$0xff]
        %v706 = vld [vmem:[#allocation3 + $0x440] sm:$0xff]
        %v707 = vld [vmem:[#allocation3 + $0x448] sm:$0xff]
        %v708 = vld [vmem:[#allocation3 + $0x450] sm:$0xff]
        %v709 = vld [vmem:[#allocation3 + $0x458] sm:$0xff]
        %v710 = vld [vmem:[#allocation3 + $0x460] sm:$0xff]
        %v711 = vld [vmem:[#allocation3 + $0x468] sm:$0xff]
        %v712 = vld [vmem:[#allocation3 + $0x470] sm:$0xff]
        %v713 = vld [vmem:[#allocation3 + $0x478] sm:$0xff]
        %v714 = vld [vmem:[#allocation3 + $0x480] sm:$0xff]
        %v715 = vld [vmem:[#allocation3 + $0x488] sm:$0xff]
        %v716 = vld [vmem:[#allocation3 + $0x490] sm:$0xff]
        %v717 = vld [vmem:[#allocation3 + $0x498] sm:$0xff]
        %v718 = vld [vmem:[#allocation3 + $0x4a0] sm:$0xff]
        %v719 = vld [vmem:[#allocation3 + $0x4a8] sm:$0xff]
        %v720 = vld [vmem:[#allocation3 + $0x4b0] sm:$0xff]
        %v721 = vld [vmem:[#allocation3 + $0x4b8] sm:$0xff]
        %v722 = vld [vmem:[#allocation3 + $0x4c0] sm:$0xff]
        %v723 = vld [vmem:[#allocation3 + $0x4c8] sm:$0xff]
        %v724 = vld [vmem:[#allocation3 + $0x4d0] sm:$0xff]
        %v725 = vld [vmem:[#allocation3 + $0x4d8] sm:$0xff]
        %v726 = vld [vmem:[#allocation3 + $0x4e0] sm:$0xff]
        %v727 = vld [vmem:[#allocation3 + $0x4e8] sm:$0xff]
        %v728 = vld [vmem:[#allocation3 + $0x4f0] sm:$0xff]
        %v729 = vld [vmem:[#allocation3 + $0x4f8] sm:$0xff]
        %v730 = vld [vmem:[#allocation3 + $0x500] sm:$0xff]
        %v731 = vld [vmem:[#allocation3 + $0x508] sm:$0xff]
        %v732 = vld [vmem:[#allocation3 + $0x510] sm:$0xff]
        %v733 = vld [vmem:[#allocation3 + $0x518] sm:$0xff]
        %v734 = vld [vmem:[#allocation3 + $0x520] sm:$0xff]
        %v735 = vld [vmem:[#allocation3 + $0x528] sm:$0xff]
        %v736 = vld [vmem:[#allocation3 + $0x530] sm:$0xff]
        %v737 = vld [vmem:[#allocation3 + $0x538] sm:$0xff]
        %v738 = vld [vmem:[#allocation3 + $0x540] sm:$0xff]
        %v739 = vld [vmem:[#allocation3 + $0x548] sm:$0xff]
        %v740 = vld [vmem:[#allocation3 + $0x550] sm:$0xff]
        %v741 = vld [vmem:[#allocation3 + $0x558] sm:$0xff]
        %v742 = vld [vmem:[#allocation3 + $0x560] sm:$0xff]
        %v743 = vld [vmem:[#allocation3 + $0x568] sm:$0xff]
        %v744 = vld [vmem:[#allocation3 + $0x570] sm:$0xff]
        %v745 = vld [vmem:[#allocation3 + $0x578] sm:$0xff]
        %v746 = vld [vmem:[#allocation3 + $0x580] sm:$0xff]
        %v747 = vld [vmem:[#allocation3 + $0x588] sm:$0xff]
        %v748 = vld [vmem:[#allocation3 + $0x590] sm:$0xff]
        %v749 = vld [vmem:[#allocation3 + $0x598] sm:$0xff]
        %v750 = vld [vmem:[#allocation3 + $0x5a0] sm:$0xff]
        %v751 = vld [vmem:[#allocation3 + $0x5a8] sm:$0xff]
        %v752 = vld [vmem:[#allocation3 + $0x5b0] sm:$0xff]
        %v753 = vld [vmem:[#allocation3 + $0x5b8] sm:$0xff]
        %v754 = vld [vmem:[#allocation3 + $0x5c0] sm:$0xff]
        %v755 = vld [vmem:[#allocation3 + $0x5c8] sm:$0xff]
        %v756 = vld [vmem:[#allocation3 + $0x5d0] sm:$0xff]
        %v757 = vld [vmem:[#allocation3 + $0x5d8] sm:$0xff]
        %v758 = vld [vmem:[#allocation3 + $0x5e0] sm:$0xff]
        %v759 = vld [vmem:[#allocation3 + $0x5e8] sm:$0xff]
        %v760 = vld [vmem:[#allocation3 + $0x5f0] sm:$0xff]
        %v761 = vld [vmem:[#allocation3 + $0x5f8] sm:$0xff]
        %v762 = vld [vmem:[#allocation3 + $0x600] sm:$0xff]
        %v763 = vld [vmem:[#allocation3 + $0x608] sm:$0xff]
        %v764 = vld [vmem:[#allocation3 + $0x610] sm:$0xff]
        %v765 = vld [vmem:[#allocation3 + $0x618] sm:$0xff]
        %v766 = vld [vmem:[#allocation3 + $0x620] sm:$0xff]
        %v767 = vld [vmem:[#allocation3 + $0x628] sm:$0xff]
        %v768 = vld [vmem:[#allocation3 + $0x630] sm:$0xff]
        %v769 = vld [vmem:[#allocation3 + $0x638] sm:$0xff]
        %v770 = vld [vmem:[#allocation3 + $0x640] sm:$0xff]
        %v771 = vld [vmem:[#allocation3 + $0x648] sm:$0xff]
        %v772 = vld [vmem:[#allocation3 + $0x650] sm:$0xff]
        %v773 = vld [vmem:[#allocation3 + $0x658] sm:$0xff]
        %v774 = vld [vmem:[#allocation3 + $0x660] sm:$0xff]
        %v775 = vld [vmem:[#allocation3 + $0x668] sm:$0xff]
        %v776 = vld [vmem:[#allocation3 + $0x670] sm:$0xff]
        %v777 = vld [vmem:[#allocation3 + $0x678] sm:$0xff]
        %v778 = vld [vmem:[#allocation3 + $0x680] sm:$0xff]
        %v779 = vld [vmem:[#allocation3 + $0x688] sm:$0xff]
        %v780 = vld [vmem:[#allocation3 + $0x690] sm:$0xff]
        %v781 = vld [vmem:[#allocation3 + $0x698] sm:$0xff]
        %v782 = vld [vmem:[#allocation3 + $0x6a0] sm:$0xff]
        %v783 = vld [vmem:[#allocation3 + $0x6a8] sm:$0xff]
        %v784 = vld [vmem:[#allocation3 + $0x6b0] sm:$0xff]
        %v785 = vld [vmem:[#allocation3 + $0x6b8] sm:$0xff]
        %v786 = vld [vmem:[#allocation3 + $0x6c0] sm:$0xff]
        %v787 = vld [vmem:[#allocation3 + $0x6c8] sm:$0xff]
        %v788 = vld [vmem:[#allocation3 + $0x6d0] sm:$0xff]
        %v789 = vld [vmem:[#allocation3 + $0x6d8] sm:$0xff]
        %v790 = vld [vmem:[#allocation3 + $0x6e0] sm:$0xff]
        %v791 = vld [vmem:[#allocation3 + $0x6e8] sm:$0xff]
        %v792 = vld [vmem:[#allocation3 + $0x6f0] sm:$0xff]
        %v793 = vld [vmem:[#allocation3 + $0x6f8] sm:$0xff]
        %v794 = vld [vmem:[#allocation3 + $0x700] sm:$0xff]
        %v795 = vld [vmem:[#allocation3 + $0x708] sm:$0xff]
        %v796 = vld [vmem:[#allocation3 + $0x710] sm:$0xff]
        %v797 = vld [vmem:[#allocation3 + $0x718] sm:$0xff]
        %v798 = vld [vmem:[#allocation3 + $0x720] sm:$0xff]
        %v799 = vld [vmem:[#allocation3 + $0x728] sm:$0xff]
        %v800 = vld [vmem:[#allocation3 + $0x730] sm:$0xff]
        %v801 = vld [vmem:[#allocation3 + $0x738] sm:$0xff]
        %v802 = vld [vmem:[#allocation3 + $0x740] sm:$0xff]
        %v803 = vld [vmem:[#allocation3 + $0x748] sm:$0xff]
        %v804 = vld [vmem:[#allocation3 + $0x750] sm:$0xff]
        %v805 = vld [vmem:[#allocation3 + $0x758] sm:$0xff]
        %v806 = vld [vmem:[#allocation3 + $0x760] sm:$0xff]
        %v807 = vld [vmem:[#allocation3 + $0x768] sm:$0xff]
        %v808 = vld [vmem:[#allocation3 + $0x770] sm:$0xff]
        %v809 = vld [vmem:[#allocation3 + $0x778] sm:$0xff]
        %v810 = vld [vmem:[#allocation3 + $0x780] sm:$0xff]
        %v811 = vld [vmem:[#allocation3 + $0x788] sm:$0xff]
        %v812 = vld [vmem:[#allocation3 + $0x790] sm:$0xff]
        %v813 = vld [vmem:[#allocation3 + $0x798] sm:$0xff]
        %v814 = vld [vmem:[#allocation3 + $0x7a0] sm:$0xff]
        %v815 = vld [vmem:[#allocation3 + $0x7a8] sm:$0xff]
        %v816 = vld [vmem:[#allocation3 + $0x7b0] sm:$0xff]
        %v817 = vld [vmem:[#allocation3 + $0x7b8] sm:$0xff]
        %v818 = vld [vmem:[#allocation3 + $0x7c0] sm:$0xff]
        %v819 = vld [vmem:[#allocation3 + $0x7c8] sm:$0xff]
        %v820 = vld [vmem:[#allocation3 + $0x7d0] sm:$0xff]
        %v821 = vld [vmem:[#allocation3 + $0x7d8] sm:$0xff]
        %v822 = vld [vmem:[#allocation3 + $0x7e0] sm:$0xff]
        %v823 = vld [vmem:[#allocation3 + $0x7e8] sm:$0xff]
        %v824 = vld [vmem:[#allocation3 + $0x7f0] sm:$0xff]
        %v825 = vld [vmem:[#allocation3 + $0x7f8] sm:$0xff]
        %v826 = vld [vmem:[%s3] sm:$0xf]
        %v828 = vlaneseq
        %v829 = vshrl.u32 %v828, 7
        %v830 = vsub.s32 0, %v829
        %v831 = vrot.slane %v826, %v830
        %v832 = vlaneseq
        %v833 = vshrl.u32 %v832, 7
        %v834 = vsub.s32 1, %v833
        %v835 = vrot.slane %v826, %v834
        %v836 = vlaneseq
        %v837 = vshrl.u32 %v836, 7
        %v838 = vsub.s32 2, %v837
        %v839 = vrot.slane %v826, %v838
        %v840 = vlaneseq
        %v841 = vshrl.u32 %v840, 7
        %v842 = vsub.s32 3, %v841
        %v843 = vrot.slane %v826, %v842
        %v1104 = vunpack.c.l.b16 %v570
        %v1105 = vunpack.c.h.b16 %v570
        %v1106 = vunpack.c.l.b16 %v571
        %v1107 = vunpack.c.h.b16 %v571
        %v1108 = vunpack.c.l.b16 %v572
        %v1109 = vunpack.c.h.b16 %v572
        %v1110 = vunpack.c.l.b16 %v573
        %v1111 = vunpack.c.h.b16 %v573
        %v1112 = vunpack.c.l.b16 %v574
        %v1113 = vunpack.c.h.b16 %v574
        %v1114 = vunpack.c.l.b16 %v575
        %v1115 = vunpack.c.h.b16 %v575
        %v1116 = vunpack.c.l.b16 %v576
        %v1117 = vunpack.c.h.b16 %v576
        %v1118 = vunpack.c.l.b16 %v577
        %v1119 = vunpack.c.h.b16 %v577
        %v1120 = vunpack.c.l.b16 %v578
        %v1121 = vunpack.c.h.b16 %v578
        %v1122 = vunpack.c.l.b16 %v579
        %v1123 = vunpack.c.h.b16 %v579
        %v1124 = vunpack.c.l.b16 %v580
        %v1125 = vunpack.c.h.b16 %v580
        %v1126 = vunpack.c.l.b16 %v581
        %v1127 = vunpack.c.h.b16 %v581
        %v1128 = vunpack.c.l.b16 %v582
        %v1129 = vunpack.c.h.b16 %v582
        %v1130 = vunpack.c.l.b16 %v583
        %v1131 = vunpack.c.h.b16 %v583
        %v1132 = vunpack.c.l.b16 %v584
        %v1133 = vunpack.c.h.b16 %v584
        %v1134 = vunpack.c.l.b16 %v585
        %v1135 = vunpack.c.h.b16 %v585
        %v1136 = vunpack.c.l.b16 %v586
        %v1137 = vunpack.c.h.b16 %v586
        %v1138 = vunpack.c.l.b16 %v587
        %v1139 = vunpack.c.h.b16 %v587
        %v1140 = vunpack.c.l.b16 %v588
        %v1141 = vunpack.c.h.b16 %v588
        %v1142 = vunpack.c.l.b16 %v589
        %v1143 = vunpack.c.h.b16 %v589
        %v1144 = vunpack.c.l.b16 %v590
        %v1145 = vunpack.c.h.b16 %v590
        %v1146 = vunpack.c.l.b16 %v591
        %v1147 = vunpack.c.h.b16 %v591
        %v1148 = vunpack.c.l.b16 %v592
        %v1149 = vunpack.c.h.b16 %v592
        %v1150 = vunpack.c.l.b16 %v593
        %v1151 = vunpack.c.h.b16 %v593
        %v1152 = vunpack.c.l.b16 %v594
        %v1153 = vunpack.c.h.b16 %v594
        %v1154 = vunpack.c.l.b16 %v595
        %v1155 = vunpack.c.h.b16 %v595
        %v1156 = vunpack.c.l.b16 %v596
        %v1157 = vunpack.c.h.b16 %v596
        %v1158 = vunpack.c.l.b16 %v597
        %v1159 = vunpack.c.h.b16 %v597
        %v1160 = vunpack.c.l.b16 %v598
        %v1161 = vunpack.c.h.b16 %v598
        %v1162 = vunpack.c.l.b16 %v599
        %v1163 = vunpack.c.h.b16 %v599
        %v1164 = vunpack.c.l.b16 %v600
        %v1165 = vunpack.c.h.b16 %v600
        %v1166 = vunpack.c.l.b16 %v601
        %v1167 = vunpack.c.h.b16 %v601
        %v1168 = vunpack.c.l.b16 %v602
        %v1169 = vunpack.c.h.b16 %v602
        %v1170 = vunpack.c.l.b16 %v603
        %v1171 = vunpack.c.h.b16 %v603
        %v1172 = vunpack.c.l.b16 %v604
        %v1173 = vunpack.c.h.b16 %v604
        %v1174 = vunpack.c.l.b16 %v605
        %v1175 = vunpack.c.h.b16 %v605
        %v1176 = vunpack.c.l.b16 %v606
        %v1177 = vunpack.c.h.b16 %v606
        %v1178 = vunpack.c.l.b16 %v607
        %v1179 = vunpack.c.h.b16 %v607
        %v1180 = vunpack.c.l.b16 %v608
        %v1181 = vunpack.c.h.b16 %v608
        %v1182 = vunpack.c.l.b16 %v609
        %v1183 = vunpack.c.h.b16 %v609
        %v1184 = vunpack.c.l.b16 %v610
        %v1185 = vunpack.c.h.b16 %v610
        %v1186 = vunpack.c.l.b16 %v611
        %v1187 = vunpack.c.h.b16 %v611
        %v1188 = vunpack.c.l.b16 %v612
        %v1189 = vunpack.c.h.b16 %v612
        %v1190 = vunpack.c.l.b16 %v613
        %v1191 = vunpack.c.h.b16 %v613
        %v1192 = vunpack.c.l.b16 %v614
        %v1193 = vunpack.c.h.b16 %v614
        %v1194 = vunpack.c.l.b16 %v615
        %v1195 = vunpack.c.h.b16 %v615
        %v1196 = vunpack.c.l.b16 %v616
        %v1197 = vunpack.c.h.b16 %v616
        %v1198 = vunpack.c.l.b16 %v617
        %v1199 = vunpack.c.h.b16 %v617
        %v1200 = vunpack.c.l.b16 %v618
        %v1201 = vunpack.c.h.b16 %v618
        %v1202 = vunpack.c.l.b16 %v619
        %v1203 = vunpack.c.h.b16 %v619
        %v1204 = vunpack.c.l.b16 %v620
        %v1205 = vunpack.c.h.b16 %v620
        %v1206 = vunpack.c.l.b16 %v621
        %v1207 = vunpack.c.h.b16 %v621
        %v1208 = vunpack.c.l.b16 %v622
        %v1209 = vunpack.c.h.b16 %v622
        %v1210 = vunpack.c.l.b16 %v623
        %v1211 = vunpack.c.h.b16 %v623
        %v1212 = vunpack.c.l.b16 %v624
        %v1213 = vunpack.c.h.b16 %v624
        %v1214 = vunpack.c.l.b16 %v625
        %v1215 = vunpack.c.h.b16 %v625
        %v1216 = vunpack.c.l.b16 %v626
        %v1217 = vunpack.c.h.b16 %v626
        %v1218 = vunpack.c.l.b16 %v627
        %v1219 = vunpack.c.h.b16 %v627
        %v1220 = vunpack.c.l.b16 %v628
        %v1221 = vunpack.c.h.b16 %v628
        %v1222 = vunpack.c.l.b16 %v629
        %v1223 = vunpack.c.h.b16 %v629
        %v1224 = vunpack.c.l.b16 %v630
        %v1225 = vunpack.c.h.b16 %v630
        %v1226 = vunpack.c.l.b16 %v631
        %v1227 = vunpack.c.h.b16 %v631
        %v1228 = vunpack.c.l.b16 %v632
        %v1229 = vunpack.c.h.b16 %v632
        %v1230 = vunpack.c.l.b16 %v633
        %v1231 = vunpack.c.h.b16 %v633
        %v1232 = vunpack.c.l.b16 %v634
        %v1233 = vunpack.c.h.b16 %v634
        %v1234 = vunpack.c.l.b16 %v635
        %v1235 = vunpack.c.h.b16 %v635
        %v1236 = vunpack.c.l.b16 %v636
        %v1237 = vunpack.c.h.b16 %v636
        %v1238 = vunpack.c.l.b16 %v637
        %v1239 = vunpack.c.h.b16 %v637
        %v1240 = vunpack.c.l.b16 %v638
        %v1241 = vunpack.c.h.b16 %v638
        %v1242 = vunpack.c.l.b16 %v639
        %v1243 = vunpack.c.h.b16 %v639
        %v1244 = vunpack.c.l.b16 %v640
        %v1245 = vunpack.c.h.b16 %v640
        %v1246 = vunpack.c.l.b16 %v641
        %v1247 = vunpack.c.h.b16 %v641
        %v1248 = vunpack.c.l.b16 %v642
        %v1249 = vunpack.c.h.b16 %v642
        %v1250 = vunpack.c.l.b16 %v643
        %v1251 = vunpack.c.h.b16 %v643
        %v1252 = vunpack.c.l.b16 %v644
        %v1253 = vunpack.c.h.b16 %v644
        %v1254 = vunpack.c.l.b16 %v645
        %v1255 = vunpack.c.h.b16 %v645
        %v1256 = vunpack.c.l.b16 %v646
        %v1257 = vunpack.c.h.b16 %v646
        %v1258 = vunpack.c.l.b16 %v647
        %v1259 = vunpack.c.h.b16 %v647
        %v1260 = vunpack.c.l.b16 %v648
        %v1261 = vunpack.c.h.b16 %v648
        %v1262 = vunpack.c.l.b16 %v649
        %v1263 = vunpack.c.h.b16 %v649
        %v1264 = vunpack.c.l.b16 %v650
        %v1265 = vunpack.c.h.b16 %v650
        %v1266 = vunpack.c.l.b16 %v651
        %v1267 = vunpack.c.h.b16 %v651
        %v1268 = vunpack.c.l.b16 %v652
        %v1269 = vunpack.c.h.b16 %v652
        %v1270 = vunpack.c.l.b16 %v653
        %v1271 = vunpack.c.h.b16 %v653
        %v1272 = vunpack.c.l.b16 %v654
        %v1273 = vunpack.c.h.b16 %v654
        %v1274 = vunpack.c.l.b16 %v655
        %v1275 = vunpack.c.h.b16 %v655
        %v1276 = vunpack.c.l.b16 %v656
        %v1277 = vunpack.c.h.b16 %v656
        %v1278 = vunpack.c.l.b16 %v657
        %v1279 = vunpack.c.h.b16 %v657
        %v1280 = vunpack.c.l.b16 %v658
        %v1281 = vunpack.c.h.b16 %v658
        %v1282 = vunpack.c.l.b16 %v659
        %v1283 = vunpack.c.h.b16 %v659
        %v1284 = vunpack.c.l.b16 %v660
        %v1285 = vunpack.c.h.b16 %v660
        %v1286 = vunpack.c.l.b16 %v661
        %v1287 = vunpack.c.h.b16 %v661
        %v1288 = vunpack.c.l.b16 %v662
        %v1289 = vunpack.c.h.b16 %v662
        %v1290 = vunpack.c.l.b16 %v663
        %v1291 = vunpack.c.h.b16 %v663
        %v1292 = vunpack.c.l.b16 %v664
        %v1293 = vunpack.c.h.b16 %v664
        %v1294 = vunpack.c.l.b16 %v665
        %v1295 = vunpack.c.h.b16 %v665
        %v1296 = vunpack.c.l.b16 %v666
        %v1297 = vunpack.c.h.b16 %v666
        %v1298 = vunpack.c.l.b16 %v667
        %v1299 = vunpack.c.h.b16 %v667
        %v1300 = vunpack.c.l.b16 %v668
        %v1301 = vunpack.c.h.b16 %v668
        %v1302 = vunpack.c.l.b16 %v669
        %v1303 = vunpack.c.h.b16 %v669
        %v1304 = vunpack.c.l.b16 %v670
        %v1305 = vunpack.c.h.b16 %v670
        %v1306 = vunpack.c.l.b16 %v671
        %v1307 = vunpack.c.h.b16 %v671
        %v1308 = vunpack.c.l.b16 %v672
        %v1309 = vunpack.c.h.b16 %v672
        %v1310 = vunpack.c.l.b16 %v673
        %v1311 = vunpack.c.h.b16 %v673
        %v1312 = vunpack.c.l.b16 %v674
        %v1313 = vunpack.c.h.b16 %v674
        %v1314 = vunpack.c.l.b16 %v675
        %v1315 = vunpack.c.h.b16 %v675
        %v1316 = vunpack.c.l.b16 %v676
        %v1317 = vunpack.c.h.b16 %v676
        %v1318 = vunpack.c.l.b16 %v677
        %v1319 = vunpack.c.h.b16 %v677
        %v1320 = vunpack.c.l.b16 %v678
        %v1321 = vunpack.c.h.b16 %v678
        %v1322 = vunpack.c.l.b16 %v679
        %v1323 = vunpack.c.h.b16 %v679
        %v1324 = vunpack.c.l.b16 %v680
        %v1325 = vunpack.c.h.b16 %v680
        %v1326 = vunpack.c.l.b16 %v681
        %v1327 = vunpack.c.h.b16 %v681
        %v1328 = vunpack.c.l.b16 %v682
        %v1329 = vunpack.c.h.b16 %v682
        %v1330 = vunpack.c.l.b16 %v683
        %v1331 = vunpack.c.h.b16 %v683
        %v1332 = vunpack.c.l.b16 %v684
        %v1333 = vunpack.c.h.b16 %v684
        %v1334 = vunpack.c.l.b16 %v685
        %v1335 = vunpack.c.h.b16 %v685
        %v1336 = vunpack.c.l.b16 %v686
        %v1337 = vunpack.c.h.b16 %v686
        %v1338 = vunpack.c.l.b16 %v687
        %v1339 = vunpack.c.h.b16 %v687
        %v1340 = vunpack.c.l.b16 %v688
        %v1341 = vunpack.c.h.b16 %v688
        %v1342 = vunpack.c.l.b16 %v689
        %v1343 = vunpack.c.h.b16 %v689
        %v1344 = vunpack.c.l.b16 %v690
        %v1345 = vunpack.c.h.b16 %v690
        %v1346 = vunpack.c.l.b16 %v691
        %v1347 = vunpack.c.h.b16 %v691
        %v1348 = vunpack.c.l.b16 %v692
        %v1349 = vunpack.c.h.b16 %v692
        %v1350 = vunpack.c.l.b16 %v693
        %v1351 = vunpack.c.h.b16 %v693
        %v1352 = vunpack.c.l.b16 %v694
        %v1353 = vunpack.c.h.b16 %v694
        %v1354 = vunpack.c.l.b16 %v695
        %v1355 = vunpack.c.h.b16 %v695
        %v1356 = vunpack.c.l.b16 %v696
        %v1357 = vunpack.c.h.b16 %v696
        %v1358 = vunpack.c.l.b16 %v697
        %v1359 = vunpack.c.h.b16 %v697
        %v1360 = vunpack.c.l.b16 %v698
        %v1361 = vunpack.c.h.b16 %v698
        %v1362 = vunpack.c.l.b16 %v699
        %v1363 = vunpack.c.h.b16 %v699
        %v1364 = vunpack.c.l.b16 %v700
        %v1365 = vunpack.c.h.b16 %v700
        %v1366 = vunpack.c.l.b16 %v701
        %v1367 = vunpack.c.h.b16 %v701
        %v1368 = vunpack.c.l.b16 %v702
        %v1369 = vunpack.c.h.b16 %v702
        %v1370 = vunpack.c.l.b16 %v703
        %v1371 = vunpack.c.h.b16 %v703
        %v1372 = vunpack.c.l.b16 %v704
        %v1373 = vunpack.c.h.b16 %v704
        %v1374 = vunpack.c.l.b16 %v705
        %v1375 = vunpack.c.h.b16 %v705
        %v1376 = vunpack.c.l.b16 %v706
        %v1377 = vunpack.c.h.b16 %v706
        %v1378 = vunpack.c.l.b16 %v707
        %v1379 = vunpack.c.h.b16 %v707
        %v1380 = vunpack.c.l.b16 %v708
        %v1381 = vunpack.c.h.b16 %v708
        %v1382 = vunpack.c.l.b16 %v709
        %v1383 = vunpack.c.h.b16 %v709
        %v1384 = vunpack.c.l.b16 %v710
        %v1385 = vunpack.c.h.b16 %v710
        %v1386 = vunpack.c.l.b16 %v711
        %v1387 = vunpack.c.h.b16 %v711
        %v1388 = vunpack.c.l.b16 %v712
        %v1389 = vunpack.c.h.b16 %v712
        %v1390 = vunpack.c.l.b16 %v713
        %v1391 = vunpack.c.h.b16 %v713
        %v1392 = vunpack.c.l.b16 %v714
        %v1393 = vunpack.c.h.b16 %v714
        %v1394 = vunpack.c.l.b16 %v715
        %v1395 = vunpack.c.h.b16 %v715
        %v1396 = vunpack.c.l.b16 %v716
        %v1397 = vunpack.c.h.b16 %v716
        %v1398 = vunpack.c.l.b16 %v717
        %v1399 = vunpack.c.h.b16 %v717
        %v1400 = vunpack.c.l.b16 %v718
        %v1401 = vunpack.c.h.b16 %v718
        %v1402 = vunpack.c.l.b16 %v719
        %v1403 = vunpack.c.h.b16 %v719
        %v1404 = vunpack.c.l.b16 %v720
        %v1405 = vunpack.c.h.b16 %v720
        %v1406 = vunpack.c.l.b16 %v721
        %v1407 = vunpack.c.h.b16 %v721
        %v1408 = vunpack.c.l.b16 %v722
        %v1409 = vunpack.c.h.b16 %v722
        %v1410 = vunpack.c.l.b16 %v723
        %v1411 = vunpack.c.h.b16 %v723
        %v1412 = vunpack.c.l.b16 %v724
        %v1413 = vunpack.c.h.b16 %v724
        %v1414 = vunpack.c.l.b16 %v725
        %v1415 = vunpack.c.h.b16 %v725
        %v1416 = vunpack.c.l.b16 %v726
        %v1417 = vunpack.c.h.b16 %v726
        %v1418 = vunpack.c.l.b16 %v727
        %v1419 = vunpack.c.h.b16 %v727
        %v1420 = vunpack.c.l.b16 %v728
        %v1421 = vunpack.c.h.b16 %v728
        %v1422 = vunpack.c.l.b16 %v729
        %v1423 = vunpack.c.h.b16 %v729
        %v1424 = vunpack.c.l.b16 %v730
        %v1425 = vunpack.c.h.b16 %v730
        %v1426 = vunpack.c.l.b16 %v731
        %v1427 = vunpack.c.h.b16 %v731
        %v1428 = vunpack.c.l.b16 %v732
        %v1429 = vunpack.c.h.b16 %v732
        %v1430 = vunpack.c.l.b16 %v733
        %v1431 = vunpack.c.h.b16 %v733
        %v1432 = vunpack.c.l.b16 %v734
        %v1433 = vunpack.c.h.b16 %v734
        %v1434 = vunpack.c.l.b16 %v735
        %v1435 = vunpack.c.h.b16 %v735
        %v1436 = vunpack.c.l.b16 %v736
        %v1437 = vunpack.c.h.b16 %v736
        %v1438 = vunpack.c.l.b16 %v737
        %v1439 = vunpack.c.h.b16 %v737
        %v1440 = vunpack.c.l.b16 %v738
        %v1441 = vunpack.c.h.b16 %v738
        %v1442 = vunpack.c.l.b16 %v739
        %v1443 = vunpack.c.h.b16 %v739
        %v1444 = vunpack.c.l.b16 %v740
        %v1445 = vunpack.c.h.b16 %v740
        %v1446 = vunpack.c.l.b16 %v741
        %v1447 = vunpack.c.h.b16 %v741
        %v1448 = vunpack.c.l.b16 %v742
        %v1449 = vunpack.c.h.b16 %v742
        %v1450 = vunpack.c.l.b16 %v743
        %v1451 = vunpack.c.h.b16 %v743
        %v1452 = vunpack.c.l.b16 %v744
        %v1453 = vunpack.c.h.b16 %v744
        %v1454 = vunpack.c.l.b16 %v745
        %v1455 = vunpack.c.h.b16 %v745
        %v1456 = vunpack.c.l.b16 %v746
        %v1457 = vunpack.c.h.b16 %v746
        %v1458 = vunpack.c.l.b16 %v747
        %v1459 = vunpack.c.h.b16 %v747
        %v1460 = vunpack.c.l.b16 %v748
        %v1461 = vunpack.c.h.b16 %v748
        %v1462 = vunpack.c.l.b16 %v749
        %v1463 = vunpack.c.h.b16 %v749
        %v1464 = vunpack.c.l.b16 %v750
        %v1465 = vunpack.c.h.b16 %v750
        %v1466 = vunpack.c.l.b16 %v751
        %v1467 = vunpack.c.h.b16 %v751
        %v1468 = vunpack.c.l.b16 %v752
        %v1469 = vunpack.c.h.b16 %v752
        %v1470 = vunpack.c.l.b16 %v753
        %v1471 = vunpack.c.h.b16 %v753
        %v1472 = vunpack.c.l.b16 %v754
        %v1473 = vunpack.c.h.b16 %v754
        %v1474 = vunpack.c.l.b16 %v755
        %v1475 = vunpack.c.h.b16 %v755
        %v1476 = vunpack.c.l.b16 %v756
        %v1477 = vunpack.c.h.b16 %v756
        %v1478 = vunpack.c.l.b16 %v757
        %v1479 = vunpack.c.h.b16 %v757
        %v1480 = vunpack.c.l.b16 %v758
        %v1481 = vunpack.c.h.b16 %v758
        %v1482 = vunpack.c.l.b16 %v759
        %v1483 = vunpack.c.h.b16 %v759
        %v1484 = vunpack.c.l.b16 %v760
        %v1485 = vunpack.c.h.b16 %v760
        %v1486 = vunpack.c.l.b16 %v761
        %v1487 = vunpack.c.h.b16 %v761
        %v1488 = vunpack.c.l.b16 %v762
        %v1489 = vunpack.c.h.b16 %v762
        %v1490 = vunpack.c.l.b16 %v763
        %v1491 = vunpack.c.h.b16 %v763
        %v1492 = vunpack.c.l.b16 %v764
        %v1493 = vunpack.c.h.b16 %v764
        %v1494 = vunpack.c.l.b16 %v765
        %v1495 = vunpack.c.h.b16 %v765
        %v1496 = vunpack.c.l.b16 %v766
        %v1497 = vunpack.c.h.b16 %v766
        %v1498 = vunpack.c.l.b16 %v767
        %v1499 = vunpack.c.h.b16 %v767
        %v1500 = vunpack.c.l.b16 %v768
        %v1501 = vunpack.c.h.b16 %v768
        %v1502 = vunpack.c.l.b16 %v769
        %v1503 = vunpack.c.h.b16 %v769
        %v1504 = vunpack.c.l.b16 %v770
        %v1505 = vunpack.c.h.b16 %v770
        %v1506 = vunpack.c.l.b16 %v771
        %v1507 = vunpack.c.h.b16 %v771
        %v1508 = vunpack.c.l.b16 %v772
        %v1509 = vunpack.c.h.b16 %v772
        %v1510 = vunpack.c.l.b16 %v773
        %v1511 = vunpack.c.h.b16 %v773
        %v1512 = vunpack.c.l.b16 %v774
        %v1513 = vunpack.c.h.b16 %v774
        %v1514 = vunpack.c.l.b16 %v775
        %v1515 = vunpack.c.h.b16 %v775
        %v1516 = vunpack.c.l.b16 %v776
        %v1517 = vunpack.c.h.b16 %v776
        %v1518 = vunpack.c.l.b16 %v777
        %v1519 = vunpack.c.h.b16 %v777
        %v1520 = vunpack.c.l.b16 %v778
        %v1521 = vunpack.c.h.b16 %v778
        %v1522 = vunpack.c.l.b16 %v779
        %v1523 = vunpack.c.h.b16 %v779
        %v1524 = vunpack.c.l.b16 %v780
        %v1525 = vunpack.c.h.b16 %v780
        %v1526 = vunpack.c.l.b16 %v781
        %v1527 = vunpack.c.h.b16 %v781
        %v1528 = vunpack.c.l.b16 %v782
        %v1529 = vunpack.c.h.b16 %v782
        %v1530 = vunpack.c.l.b16 %v783
        %v1531 = vunpack.c.h.b16 %v783
        %v1532 = vunpack.c.l.b16 %v784
        %v1533 = vunpack.c.h.b16 %v784
        %v1534 = vunpack.c.l.b16 %v785
        %v1535 = vunpack.c.h.b16 %v785
        %v1536 = vunpack.c.l.b16 %v786
        %v1537 = vunpack.c.h.b16 %v786
        %v1538 = vunpack.c.l.b16 %v787
        %v1539 = vunpack.c.h.b16 %v787
        %v1540 = vunpack.c.l.b16 %v788
        %v1541 = vunpack.c.h.b16 %v788
        %v1542 = vunpack.c.l.b16 %v789
        %v1543 = vunpack.c.h.b16 %v789
        %v1544 = vunpack.c.l.b16 %v790
        %v1545 = vunpack.c.h.b16 %v790
        %v1546 = vunpack.c.l.b16 %v791
        %v1547 = vunpack.c.h.b16 %v791
        %v1548 = vunpack.c.l.b16 %v792
        %v1549 = vunpack.c.h.b16 %v792
        %v1550 = vunpack.c.l.b16 %v793
        %v1551 = vunpack.c.h.b16 %v793
        %v1552 = vunpack.c.l.b16 %v794
        %v1553 = vunpack.c.h.b16 %v794
        %v1554 = vunpack.c.l.b16 %v795
        %v1555 = vunpack.c.h.b16 %v795
        %v1556 = vunpack.c.l.b16 %v796
        %v1557 = vunpack.c.h.b16 %v796
        %v1558 = vunpack.c.l.b16 %v797
        %v1559 = vunpack.c.h.b16 %v797
        %v1560 = vunpack.c.l.b16 %v798
        %v1561 = vunpack.c.h.b16 %v798
        %v1562 = vunpack.c.l.b16 %v799
        %v1563 = vunpack.c.h.b16 %v799
        %v1564 = vunpack.c.l.b16 %v800
        %v1565 = vunpack.c.h.b16 %v800
        %v1566 = vunpack.c.l.b16 %v801
        %v1567 = vunpack.c.h.b16 %v801
        %v1568 = vunpack.c.l.b16 %v802
        %v1569 = vunpack.c.h.b16 %v802
        %v1570 = vunpack.c.l.b16 %v803
        %v1571 = vunpack.c.h.b16 %v803
        %v1572 = vunpack.c.l.b16 %v804
        %v1573 = vunpack.c.h.b16 %v804
        %v1574 = vunpack.c.l.b16 %v805
        %v1575 = vunpack.c.h.b16 %v805
        %v1576 = vunpack.c.l.b16 %v806
        %v1577 = vunpack.c.h.b16 %v806
        %v1578 = vunpack.c.l.b16 %v807
        %v1579 = vunpack.c.h.b16 %v807
        %v1580 = vunpack.c.l.b16 %v808
        %v1581 = vunpack.c.h.b16 %v808
        %v1582 = vunpack.c.l.b16 %v809
        %v1583 = vunpack.c.h.b16 %v809
        %v1584 = vunpack.c.l.b16 %v810
        %v1585 = vunpack.c.h.b16 %v810
        %v1586 = vunpack.c.l.b16 %v811
        %v1587 = vunpack.c.h.b16 %v811
        %v1588 = vunpack.c.l.b16 %v812
        %v1589 = vunpack.c.h.b16 %v812
        %v1590 = vunpack.c.l.b16 %v813
        %v1591 = vunpack.c.h.b16 %v813
        %v1592 = vunpack.c.l.b16 %v814
        %v1593 = vunpack.c.h.b16 %v814
        %v1594 = vunpack.c.l.b16 %v815
        %v1595 = vunpack.c.h.b16 %v815
        %v1596 = vunpack.c.l.b16 %v816
        %v1597 = vunpack.c.h.b16 %v816
        %v1598 = vunpack.c.l.b16 %v817
        %v1599 = vunpack.c.h.b16 %v817
        %v1600 = vunpack.c.l.b16 %v818
        %v1601 = vunpack.c.h.b16 %v818
        %v1602 = vunpack.c.l.b16 %v819
        %v1603 = vunpack.c.h.b16 %v819
        %v1604 = vunpack.c.l.b16 %v820
        %v1605 = vunpack.c.h.b16 %v820
        %v1606 = vunpack.c.l.b16 %v821
        %v1607 = vunpack.c.h.b16 %v821
        %v1608 = vunpack.c.l.b16 %v822
        %v1609 = vunpack.c.h.b16 %v822
        %v1610 = vunpack.c.l.b16 %v823
        %v1611 = vunpack.c.h.b16 %v823
        %v1612 = vunpack.c.l.b16 %v824
        %v1613 = vunpack.c.h.b16 %v824
        %v1614 = vunpack.c.l.b16 %v825
        %v1615 = vunpack.c.h.b16 %v825
        %v1616 = vpack.c.b16 %v1108, %v1104
        %v1617 = vpack.c.b16 %v1109, %v1105
        %v1618 = vpack.c.b16 %v1110, %v1106
        %v1619 = vpack.c.b16 %v1111, %v1107
        %v1620 = vpack.c.b16 %v1116, %v1112
        %v1621 = vpack.c.b16 %v1117, %v1113
        %v1622 = vpack.c.b16 %v1118, %v1114
        %v1623 = vpack.c.b16 %v1119, %v1115
        %v1624 = vpack.c.b16 %v1124, %v1120
        %v1625 = vpack.c.b16 %v1125, %v1121
        %v1626 = vpack.c.b16 %v1126, %v1122
        %v1627 = vpack.c.b16 %v1127, %v1123
        %v1628 = vpack.c.b16 %v1132, %v1128
        %v1629 = vpack.c.b16 %v1133, %v1129
        %v1630 = vpack.c.b16 %v1134, %v1130
        %v1631 = vpack.c.b16 %v1135, %v1131
        %v1632 = vpack.c.b16 %v1140, %v1136
        %v1633 = vpack.c.b16 %v1141, %v1137
        %v1634 = vpack.c.b16 %v1142, %v1138
        %v1635 = vpack.c.b16 %v1143, %v1139
        %v1636 = vpack.c.b16 %v1148, %v1144
        %v1637 = vpack.c.b16 %v1149, %v1145
        %v1638 = vpack.c.b16 %v1150, %v1146
        %v1639 = vpack.c.b16 %v1151, %v1147
        %v1640 = vpack.c.b16 %v1156, %v1152
        %v1641 = vpack.c.b16 %v1157, %v1153
        %v1642 = vpack.c.b16 %v1158, %v1154
        %v1643 = vpack.c.b16 %v1159, %v1155
        %v1644 = vpack.c.b16 %v1164, %v1160
        %v1645 = vpack.c.b16 %v1165, %v1161
        %v1646 = vpack.c.b16 %v1166, %v1162
        %v1647 = vpack.c.b16 %v1167, %v1163
        %v1648 = vpack.c.b16 %v1172, %v1168
        %v1649 = vpack.c.b16 %v1173, %v1169
        %v1650 = vpack.c.b16 %v1174, %v1170
        %v1651 = vpack.c.b16 %v1175, %v1171
        %v1652 = vpack.c.b16 %v1180, %v1176
        %v1653 = vpack.c.b16 %v1181, %v1177
        %v1654 = vpack.c.b16 %v1182, %v1178
        %v1655 = vpack.c.b16 %v1183, %v1179
        %v1656 = vpack.c.b16 %v1188, %v1184
        %v1657 = vpack.c.b16 %v1189, %v1185
        %v1658 = vpack.c.b16 %v1190, %v1186
        %v1659 = vpack.c.b16 %v1191, %v1187
        %v1660 = vpack.c.b16 %v1196, %v1192
        %v1661 = vpack.c.b16 %v1197, %v1193
        %v1662 = vpack.c.b16 %v1198, %v1194
        %v1663 = vpack.c.b16 %v1199, %v1195
        %v1664 = vpack.c.b16 %v1204, %v1200
        %v1665 = vpack.c.b16 %v1205, %v1201
        %v1666 = vpack.c.b16 %v1206, %v1202
        %v1667 = vpack.c.b16 %v1207, %v1203
        %v1668 = vpack.c.b16 %v1212, %v1208
        %v1669 = vpack.c.b16 %v1213, %v1209
        %v1670 = vpack.c.b16 %v1214, %v1210
        %v1671 = vpack.c.b16 %v1215, %v1211
        %v1672 = vpack.c.b16 %v1220, %v1216
        %v1673 = vpack.c.b16 %v1221, %v1217
        %v1674 = vpack.c.b16 %v1222, %v1218
        %v1675 = vpack.c.b16 %v1223, %v1219
        %v1676 = vpack.c.b16 %v1228, %v1224
        %v1677 = vpack.c.b16 %v1229, %v1225
        %v1678 = vpack.c.b16 %v1230, %v1226
        %v1679 = vpack.c.b16 %v1231, %v1227
        %v1680 = vpack.c.b16 %v1236, %v1232
        %v1681 = vpack.c.b16 %v1237, %v1233
        %v1682 = vpack.c.b16 %v1238, %v1234
        %v1683 = vpack.c.b16 %v1239, %v1235
        %v1684 = vpack.c.b16 %v1244, %v1240
        %v1685 = vpack.c.b16 %v1245, %v1241
        %v1686 = vpack.c.b16 %v1246, %v1242
        %v1687 = vpack.c.b16 %v1247, %v1243
        %v1688 = vpack.c.b16 %v1252, %v1248
        %v1689 = vpack.c.b16 %v1253, %v1249
        %v1690 = vpack.c.b16 %v1254, %v1250
        %v1691 = vpack.c.b16 %v1255, %v1251
        %v1692 = vpack.c.b16 %v1260, %v1256
        %v1693 = vpack.c.b16 %v1261, %v1257
        %v1694 = vpack.c.b16 %v1262, %v1258
        %v1695 = vpack.c.b16 %v1263, %v1259
        %v1696 = vpack.c.b16 %v1268, %v1264
        %v1697 = vpack.c.b16 %v1269, %v1265
        %v1698 = vpack.c.b16 %v1270, %v1266
        %v1699 = vpack.c.b16 %v1271, %v1267
        %v1700 = vpack.c.b16 %v1276, %v1272
        %v1701 = vpack.c.b16 %v1277, %v1273
        %v1702 = vpack.c.b16 %v1278, %v1274
        %v1703 = vpack.c.b16 %v1279, %v1275
        %v1704 = vpack.c.b16 %v1284, %v1280
        %v1705 = vpack.c.b16 %v1285, %v1281
        %v1706 = vpack.c.b16 %v1286, %v1282
        %v1707 = vpack.c.b16 %v1287, %v1283
        %v1708 = vpack.c.b16 %v1292, %v1288
        %v1709 = vpack.c.b16 %v1293, %v1289
        %v1710 = vpack.c.b16 %v1294, %v1290
        %v1711 = vpack.c.b16 %v1295, %v1291
        %v1712 = vpack.c.b16 %v1300, %v1296
        %v1713 = vpack.c.b16 %v1301, %v1297
        %v1714 = vpack.c.b16 %v1302, %v1298
        %v1715 = vpack.c.b16 %v1303, %v1299
        %v1716 = vpack.c.b16 %v1308, %v1304
        %v1717 = vpack.c.b16 %v1309, %v1305
        %v1718 = vpack.c.b16 %v1310, %v1306
        %v1719 = vpack.c.b16 %v1311, %v1307
        %v1720 = vpack.c.b16 %v1316, %v1312
        %v1721 = vpack.c.b16 %v1317, %v1313
        %v1722 = vpack.c.b16 %v1318, %v1314
        %v1723 = vpack.c.b16 %v1319, %v1315
        %v1724 = vpack.c.b16 %v1324, %v1320
        %v1725 = vpack.c.b16 %v1325, %v1321
        %v1726 = vpack.c.b16 %v1326, %v1322
        %v1727 = vpack.c.b16 %v1327, %v1323
        %v1728 = vpack.c.b16 %v1332, %v1328
        %v1729 = vpack.c.b16 %v1333, %v1329
        %v1730 = vpack.c.b16 %v1334, %v1330
        %v1731 = vpack.c.b16 %v1335, %v1331
        %v1732 = vpack.c.b16 %v1340, %v1336
        %v1733 = vpack.c.b16 %v1341, %v1337
        %v1734 = vpack.c.b16 %v1342, %v1338
        %v1735 = vpack.c.b16 %v1343, %v1339
        %v1736 = vpack.c.b16 %v1348, %v1344
        %v1737 = vpack.c.b16 %v1349, %v1345
        %v1738 = vpack.c.b16 %v1350, %v1346
        %v1739 = vpack.c.b16 %v1351, %v1347
        %v1740 = vpack.c.b16 %v1356, %v1352
        %v1741 = vpack.c.b16 %v1357, %v1353
        %v1742 = vpack.c.b16 %v1358, %v1354
        %v1743 = vpack.c.b16 %v1359, %v1355
        %v1744 = vpack.c.b16 %v1364, %v1360
        %v1745 = vpack.c.b16 %v1365, %v1361
        %v1746 = vpack.c.b16 %v1366, %v1362
        %v1747 = vpack.c.b16 %v1367, %v1363
        %v1748 = vpack.c.b16 %v1372, %v1368
        %v1749 = vpack.c.b16 %v1373, %v1369
        %v1750 = vpack.c.b16 %v1374, %v1370
        %v1751 = vpack.c.b16 %v1375, %v1371
        %v1752 = vpack.c.b16 %v1380, %v1376
        %v1753 = vpack.c.b16 %v1381, %v1377
        %v1754 = vpack.c.b16 %v1382, %v1378
        %v1755 = vpack.c.b16 %v1383, %v1379
        %v1756 = vpack.c.b16 %v1388, %v1384
        %v1757 = vpack.c.b16 %v1389, %v1385
        %v1758 = vpack.c.b16 %v1390, %v1386
        %v1759 = vpack.c.b16 %v1391, %v1387
        %v1760 = vpack.c.b16 %v1396, %v1392
        %v1761 = vpack.c.b16 %v1397, %v1393
        %v1762 = vpack.c.b16 %v1398, %v1394
        %v1763 = vpack.c.b16 %v1399, %v1395
        %v1764 = vpack.c.b16 %v1404, %v1400
        %v1765 = vpack.c.b16 %v1405, %v1401
        %v1766 = vpack.c.b16 %v1406, %v1402
        %v1767 = vpack.c.b16 %v1407, %v1403
        %v1768 = vpack.c.b16 %v1412, %v1408
        %v1769 = vpack.c.b16 %v1413, %v1409
        %v1770 = vpack.c.b16 %v1414, %v1410
        %v1771 = vpack.c.b16 %v1415, %v1411
        %v1772 = vpack.c.b16 %v1420, %v1416
        %v1773 = vpack.c.b16 %v1421, %v1417
        %v1774 = vpack.c.b16 %v1422, %v1418
        %v1775 = vpack.c.b16 %v1423, %v1419
        %v1776 = vpack.c.b16 %v1428, %v1424
        %v1777 = vpack.c.b16 %v1429, %v1425
        %v1778 = vpack.c.b16 %v1430, %v1426
        %v1779 = vpack.c.b16 %v1431, %v1427
        %v1780 = vpack.c.b16 %v1436, %v1432
        %v1781 = vpack.c.b16 %v1437, %v1433
        %v1782 = vpack.c.b16 %v1438, %v1434
        %v1783 = vpack.c.b16 %v1439, %v1435
        %v1784 = vpack.c.b16 %v1444, %v1440
        %v1785 = vpack.c.b16 %v1445, %v1441
        %v1786 = vpack.c.b16 %v1446, %v1442
        %v1787 = vpack.c.b16 %v1447, %v1443
        %v1788 = vpack.c.b16 %v1452, %v1448
        %v1789 = vpack.c.b16 %v1453, %v1449
        %v1790 = vpack.c.b16 %v1454, %v1450
        %v1791 = vpack.c.b16 %v1455, %v1451
        %v1792 = vpack.c.b16 %v1460, %v1456
        %v1793 = vpack.c.b16 %v1461, %v1457
        %v1794 = vpack.c.b16 %v1462, %v1458
        %v1795 = vpack.c.b16 %v1463, %v1459
        %v1796 = vpack.c.b16 %v1468, %v1464
        %v1797 = vpack.c.b16 %v1469, %v1465
        %v1798 = vpack.c.b16 %v1470, %v1466
        %v1799 = vpack.c.b16 %v1471, %v1467
        %v1800 = vpack.c.b16 %v1476, %v1472
        %v1801 = vpack.c.b16 %v1477, %v1473
        %v1802 = vpack.c.b16 %v1478, %v1474
        %v1803 = vpack.c.b16 %v1479, %v1475
        %v1804 = vpack.c.b16 %v1484, %v1480
        %v1805 = vpack.c.b16 %v1485, %v1481
        %v1806 = vpack.c.b16 %v1486, %v1482
        %v1807 = vpack.c.b16 %v1487, %v1483
        %v1808 = vpack.c.b16 %v1492, %v1488
        %v1809 = vpack.c.b16 %v1493, %v1489
        %v1810 = vpack.c.b16 %v1494, %v1490
        %v1811 = vpack.c.b16 %v1495, %v1491
        %v1812 = vpack.c.b16 %v1500, %v1496
        %v1813 = vpack.c.b16 %v1501, %v1497
        %v1814 = vpack.c.b16 %v1502, %v1498
        %v1815 = vpack.c.b16 %v1503, %v1499
        %v1816 = vpack.c.b16 %v1508, %v1504
        %v1817 = vpack.c.b16 %v1509, %v1505
        %v1818 = vpack.c.b16 %v1510, %v1506
        %v1819 = vpack.c.b16 %v1511, %v1507
        %v1820 = vpack.c.b16 %v1516, %v1512
        %v1821 = vpack.c.b16 %v1517, %v1513
        %v1822 = vpack.c.b16 %v1518, %v1514
        %v1823 = vpack.c.b16 %v1519, %v1515
        %v1824 = vpack.c.b16 %v1524, %v1520
        %v1825 = vpack.c.b16 %v1525, %v1521
        %v1826 = vpack.c.b16 %v1526, %v1522
        %v1827 = vpack.c.b16 %v1527, %v1523
        %v1828 = vpack.c.b16 %v1532, %v1528
        %v1829 = vpack.c.b16 %v1533, %v1529
        %v1830 = vpack.c.b16 %v1534, %v1530
        %v1831 = vpack.c.b16 %v1535, %v1531
        %v1832 = vpack.c.b16 %v1540, %v1536
        %v1833 = vpack.c.b16 %v1541, %v1537
        %v1834 = vpack.c.b16 %v1542, %v1538
        %v1835 = vpack.c.b16 %v1543, %v1539
        %v1836 = vpack.c.b16 %v1548, %v1544
        %v1837 = vpack.c.b16 %v1549, %v1545
        %v1838 = vpack.c.b16 %v1550, %v1546
        %v1839 = vpack.c.b16 %v1551, %v1547
        %v1840 = vpack.c.b16 %v1556, %v1552
        %v1841 = vpack.c.b16 %v1557, %v1553
        %v1842 = vpack.c.b16 %v1558, %v1554
        %v1843 = vpack.c.b16 %v1559, %v1555
        %v1844 = vpack.c.b16 %v1564, %v1560
        %v1845 = vpack.c.b16 %v1565, %v1561
        %v1846 = vpack.c.b16 %v1566, %v1562
        %v1847 = vpack.c.b16 %v1567, %v1563
        %v1848 = vpack.c.b16 %v1572, %v1568
        %v1849 = vpack.c.b16 %v1573, %v1569
        %v1850 = vpack.c.b16 %v1574, %v1570
        %v1851 = vpack.c.b16 %v1575, %v1571
        %v1852 = vpack.c.b16 %v1580, %v1576
        %v1853 = vpack.c.b16 %v1581, %v1577
        %v1854 = vpack.c.b16 %v1582, %v1578
        %v1855 = vpack.c.b16 %v1583, %v1579
        %v1856 = vpack.c.b16 %v1588, %v1584
        %v1857 = vpack.c.b16 %v1589, %v1585
        %v1858 = vpack.c.b16 %v1590, %v1586
        %v1859 = vpack.c.b16 %v1591, %v1587
        %v1860 = vpack.c.b16 %v1596, %v1592
        %v1861 = vpack.c.b16 %v1597, %v1593
        %v1862 = vpack.c.b16 %v1598, %v1594
        %v1863 = vpack.c.b16 %v1599, %v1595
        %v1864 = vpack.c.b16 %v1604, %v1600
        %v1865 = vpack.c.b16 %v1605, %v1601
        %v1866 = vpack.c.b16 %v1606, %v1602
        %v1867 = vpack.c.b16 %v1607, %v1603
        %v1868 = vpack.c.b16 %v1612, %v1608
        %v1869 = vpack.c.b16 %v1613, %v1609
        %v1870 = vpack.c.b16 %v1614, %v1610
        %v1871 = vpack.c.b16 %v1615, %v1611
        %2128 = vmatprep.subr.bf16.mxu0 %v1617
        %2129 = vmatpush1.bf16.msra.mxu0 %v1616
        %2130 = vmatprep.subr.bf16.mxu0 %v1621
        %2131 = vmatpush1.bf16.msra.mxu0 %v1620
        %2132 = vmatprep.subr.bf16.mxu0 %v1625
        %2133 = vmatpush1.bf16.msra.mxu0 %v1624
        %2134 = vmatprep.subr.bf16.mxu0 %v1629
        %2135 = vmatpush1.bf16.msra.mxu0 %v1628
        %2136 = vmatprep.subr.bf16.mxu0 %v1633
        %2137 = vmatpush1.bf16.msra.mxu0 %v1632
        %2138 = vmatprep.subr.bf16.mxu0 %v1637
        %2139 = vmatpush1.bf16.msra.mxu0 %v1636
        %2140 = vmatprep.subr.bf16.mxu0 %v1641
        %2141 = vmatpush1.bf16.msra.mxu0 %v1640
        %2142 = vmatprep.subr.bf16.mxu0 %v1645
        %2143 = vmatpush1.bf16.msra.mxu0 %v1644
        %2144 = vmatprep.subr.bf16.mxu0 %v1649
        %2145 = vmatpush1.bf16.msra.mxu0 %v1648
        %2146 = vmatprep.subr.bf16.mxu0 %v1653
        %2147 = vmatpush1.bf16.msra.mxu0 %v1652
        %2148 = vmatprep.subr.bf16.mxu0 %v1657
        %2149 = vmatpush1.bf16.msra.mxu0 %v1656
        %2150 = vmatprep.subr.bf16.mxu0 %v1661
        %2151 = vmatpush1.bf16.msra.mxu0 %v1660
        %2152 = vmatprep.subr.bf16.mxu0 %v1665
        %2153 = vmatpush1.bf16.msra.mxu0 %v1664
        %2154 = vmatprep.subr.bf16.mxu0 %v1669
        %2155 = vmatpush1.bf16.msra.mxu0 %v1668
        %2156 = vmatprep.subr.bf16.mxu0 %v1673
        %2157 = vmatpush1.bf16.msra.mxu0 %v1672
        %2158 = vmatprep.subr.bf16.mxu0 %v1677
        %2159 = vmatpush1.bf16.msra.mxu0 %v1676
        %2160 = vmatprep.mubr.bf16.mxu0 %v563
        %2161 = vmatmul.mubr.bf16.gmra.mrb[0].mxu0 %v562
        %v2162 = vpop.f32.mrb[0].mxu0
        %v2163 = vadd.f32 %v831, %v2162
        %v2164 = vpop.f32.mrb[0].mxu0
        %v2165 = vadd.f32 %v835, %v2164
        %v2166 = vpop.f32.mrb[0].mxu0
        %v2167 = vpop.f32.mrb[0].mxu0
        %2168 = vdwg.mxu0
        %2169 = vmatprep.subr.bf16.mxu0 %v1681
        %2170 = vmatpush1.bf16.msra.mxu0 %v1680
        %2171 = vmatprep.subr.bf16.mxu0 %v1685
        %2172 = vmatpush1.bf16.msra.mxu0 %v1684
        %2173 = vmatprep.subr.bf16.mxu0 %v1689
        %2174 = vmatpush1.bf16.msra.mxu0 %v1688
        %2175 = vmatprep.subr.bf16.mxu0 %v1693
        %2176 = vmatpush1.bf16.msra.mxu0 %v1692
        %2177 = vmatprep.subr.bf16.mxu0 %v1697
        %2178 = vmatpush1.bf16.msra.mxu0 %v1696
        %2179 = vmatprep.subr.bf16.mxu0 %v1701
        %2180 = vmatpush1.bf16.msra.mxu0 %v1700
        %2181 = vmatprep.subr.bf16.mxu0 %v1705
        %2182 = vmatpush1.bf16.msra.mxu0 %v1704
        %2183 = vmatprep.subr.bf16.mxu0 %v1709
        %2184 = vmatpush1.bf16.msra.mxu0 %v1708
        %2185 = vmatprep.subr.bf16.mxu0 %v1713
        %2186 = vmatpush1.bf16.msra.mxu0 %v1712
        %2187 = vmatprep.subr.bf16.mxu0 %v1717
        %2188 = vmatpush1.bf16.msra.mxu0 %v1716
        %2189 = vmatprep.subr.bf16.mxu0 %v1721
        %2190 = vmatpush1.bf16.msra.mxu0 %v1720
        %2191 = vmatprep.subr.bf16.mxu0 %v1725
        %2192 = vmatpush1.bf16.msra.mxu0 %v1724
        %2193 = vmatprep.subr.bf16.mxu0 %v1729
        %2194 = vmatpush1.bf16.msra.mxu0 %v1728
        %2195 = vmatprep.subr.bf16.mxu0 %v1733
        %2196 = vmatpush1.bf16.msra.mxu0 %v1732
        %2197 = vmatprep.subr.bf16.mxu0 %v1737
        %2198 = vmatpush1.bf16.msra.mxu0 %v1736
        %2199 = vmatprep.subr.bf16.mxu0 %v1741
        %2200 = vmatpush1.bf16.msra.mxu0 %v1740
        %2201 = vmatprep.mubr.bf16.mxu0 %v565
        %2202 = vmatmul.mubr.bf16.gmra.mrb[0].mxu0 %v564
        %v2203 = vpop.f32.mrb[0].mxu0
        %v2204 = vadd.f32 %v2163, %v2203
        %v2205 = vpop.f32.mrb[0].mxu0
        %v2206 = vadd.f32 %v2165, %v2205
        %v2207 = vpop.f32.mrb[0].mxu0
        %v2208 = vpop.f32.mrb[0].mxu0
        %2209 = vdwg.mxu0
        %2210 = vmatprep.subr.bf16.mxu0 %v1745
        %2211 = vmatpush1.bf16.msra.mxu0 %v1744
        %2212 = vmatprep.subr.bf16.mxu0 %v1749
        %2213 = vmatpush1.bf16.msra.mxu0 %v1748
        %2214 = vmatprep.subr.bf16.mxu0 %v1753
        %2215 = vmatpush1.bf16.msra.mxu0 %v1752
        %2216 = vmatprep.subr.bf16.mxu0 %v1757
        %2217 = vmatpush1.bf16.msra.mxu0 %v1756
        %2218 = vmatprep.subr.bf16.mxu0 %v1761
        %2219 = vmatpush1.bf16.msra.mxu0 %v1760
        %2220 = vmatprep.subr.bf16.mxu0 %v1765
        %2221 = vmatpush1.bf16.msra.mxu0 %v1764
        %2222 = vmatprep.subr.bf16.mxu0 %v1769
        %2223 = vmatpush1.bf16.msra.mxu0 %v1768
        %2224 = vmatprep.subr.bf16.mxu0 %v1773
        %2225 = vmatpush1.bf16.msra.mxu0 %v1772
        %2226 = vmatprep.subr.bf16.mxu0 %v1777
        %2227 = vmatpush1.bf16.msra.mxu0 %v1776
        %2228 = vmatprep.subr.bf16.mxu0 %v1781
        %2229 = vmatpush1.bf16.msra.mxu0 %v1780
        %2230 = vmatprep.subr.bf16.mxu0 %v1785
        %2231 = vmatpush1.bf16.msra.mxu0 %v1784
        %2232 = vmatprep.subr.bf16.mxu0 %v1789
        %2233 = vmatpush1.bf16.msra.mxu0 %v1788
        %2234 = vmatprep.subr.bf16.mxu0 %v1793
        %2235 = vmatpush1.bf16.msra.mxu0 %v1792
        %2236 = vmatprep.subr.bf16.mxu0 %v1797
        %2237 = vmatpush1.bf16.msra.mxu0 %v1796
        %2238 = vmatprep.subr.bf16.mxu0 %v1801
        %2239 = vmatpush1.bf16.msra.mxu0 %v1800
        %2240 = vmatprep.subr.bf16.mxu0 %v1805
        %2241 = vmatpush1.bf16.msra.mxu0 %v1804
        %2242 = vmatprep.mubr.bf16.mxu0 %v567
        %2243 = vmatmul.mubr.bf16.gmra.mrb[0].mxu0 %v566
        %v2244 = vpop.f32.mrb[0].mxu0
        %v2245 = vadd.f32 %v2204, %v2244
        %v2246 = vpop.f32.mrb[0].mxu0
        %v2247 = vadd.f32 %v2206, %v2246
        %v2248 = vpop.f32.mrb[0].mxu0
        %v2249 = vpop.f32.mrb[0].mxu0
        %2250 = vdwg.mxu0
        %2251 = vmatprep.subr.bf16.mxu0 %v1809
        %2252 = vmatpush1.bf16.msra.mxu0 %v1808
        %2253 = vmatprep.subr.bf16.mxu0 %v1813
        %2254 = vmatpush1.bf16.msra.mxu0 %v1812
        %2255 = vmatprep.subr.bf16.mxu0 %v1817
        %2256 = vmatpush1.bf16.msra.mxu0 %v1816
        %2257 = vmatprep.subr.bf16.mxu0 %v1821
        %2258 = vmatpush1.bf16.msra.mxu0 %v1820
        %2259 = vmatprep.subr.bf16.mxu0 %v1825
        %2260 = vmatpush1.bf16.msra.mxu0 %v1824
        %2261 = vmatprep.subr.bf16.mxu0 %v1829
        %2262 = vmatpush1.bf16.msra.mxu0 %v1828
        %2263 = vmatprep.subr.bf16.mxu0 %v1833
        %2264 = vmatpush1.bf16.msra.mxu0 %v1832
        %2265 = vmatprep.subr.bf16.mxu0 %v1837
        %2266 = vmatpush1.bf16.msra.mxu0 %v1836
        %2267 = vmatprep.subr.bf16.mxu0 %v1841
        %2268 = vmatpush1.bf16.msra.mxu0 %v1840
        %2269 = vmatprep.subr.bf16.mxu0 %v1845
        %2270 = vmatpush1.bf16.msra.mxu0 %v1844
        %2271 = vmatprep.subr.bf16.mxu0 %v1849
        %2272 = vmatpush1.bf16.msra.mxu0 %v1848
        %2273 = vmatprep.subr.bf16.mxu0 %v1853
        %2274 = vmatpush1.bf16.msra.mxu0 %v1852
        %2275 = vmatprep.subr.bf16.mxu0 %v1857
        %2276 = vmatpush1.bf16.msra.mxu0 %v1856
        %2277 = vmatprep.subr.bf16.mxu0 %v1861
        %2278 = vmatpush1.bf16.msra.mxu0 %v1860
        %2279 = vmatprep.subr.bf16.mxu0 %v1865
        %2280 = vmatpush1.bf16.msra.mxu0 %v1864
        %2281 = vmatprep.subr.bf16.mxu0 %v1869
        %2282 = vmatpush1.bf16.msra.mxu0 %v1868
        %2283 = vmatprep.mubr.bf16.mxu0 %v569
        %2284 = vmatmul.mubr.bf16.gmra.mrb[0].mxu0 %v568
        %v2285 = vpop.f32.mrb[0].mxu0
        %v2286 = vadd.f32 %v2245, %v2285
        %v2287 = vpop.f32.mrb[0].mxu0
        %v2288 = vadd.f32 %v2247, %v2287
        %v2289 = vpop.f32.mrb[0].mxu0
        %v2290 = vpop.f32.mrb[0].mxu0
        %2291 = vdwg.mxu0
        %2292 = vmatprep.subr.bf16.mxu0 %v1619
        %2293 = vmatpush1.bf16.msra.mxu0 %v1618
        %2294 = vmatprep.subr.bf16.mxu0 %v1623
        %2295 = vmatpush1.bf16.msra.mxu0 %v1622
        %2296 = vmatprep.subr.bf16.mxu0 %v1627
        %2297 = vmatpush1.bf16.msra.mxu0 %v1626
        %2298 = vmatprep.subr.bf16.mxu0 %v1631
        %2299 = vmatpush1.bf16.msra.mxu0 %v1630
        %2300 = vmatprep.subr.bf16.mxu0 %v1635
        %2301 = vmatpush1.bf16.msra.mxu0 %v1634
        %2302 = vmatprep.subr.bf16.mxu0 %v1639
        %2303 = vmatpush1.bf16.msra.mxu0 %v1638
        %2304 = vmatprep.subr.bf16.mxu0 %v1643
        %2305 = vmatpush1.bf16.msra.mxu0 %v1642
        %2306 = vmatprep.subr.bf16.mxu0 %v1647
        %2307 = vmatpush1.bf16.msra.mxu0 %v1646
        %2308 = vmatprep.subr.bf16.mxu0 %v1651
        %2309 = vmatpush1.bf16.msra.mxu0 %v1650
        %2310 = vmatprep.subr.bf16.mxu0 %v1655
        %2311 = vmatpush1.bf16.msra.mxu0 %v1654
        %2312 = vmatprep.subr.bf16.mxu0 %v1659
        %2313 = vmatpush1.bf16.msra.mxu0 %v1658
        %2314 = vmatprep.subr.bf16.mxu0 %v1663
        %2315 = vmatpush1.bf16.msra.mxu0 %v1662
        %2316 = vmatprep.subr.bf16.mxu0 %v1667
        %2317 = vmatpush1.bf16.msra.mxu0 %v1666
        %2318 = vmatprep.subr.bf16.mxu0 %v1671
        %2319 = vmatpush1.bf16.msra.mxu0 %v1670
        %2320 = vmatprep.subr.bf16.mxu0 %v1675
        %2321 = vmatpush1.bf16.msra.mxu0 %v1674
        %2322 = vmatprep.subr.bf16.mxu0 %v1679
        %2323 = vmatpush1.bf16.msra.mxu0 %v1678
        %2324 = vmatprep.mubr.bf16.mxu0 %v563
        %2325 = vmatmul.mubr.bf16.gmra.mrb[0].mxu0 %v562
        %v2326 = vpop.f32.mrb[0].mxu0
        %v2327 = vadd.f32 %v839, %v2326
        %v2328 = vpop.f32.mrb[0].mxu0
        %v2329 = vadd.f32 %v843, %v2328
        %v2330 = vpop.f32.mrb[0].mxu0
        %v2331 = vpop.f32.mrb[0].mxu0
        %2332 = vdwg.mxu0
        %2333 = vmatprep.subr.bf16.mxu0 %v1683
        %2334 = vmatpush1.bf16.msra.mxu0 %v1682
        %2335 = vmatprep.subr.bf16.mxu0 %v1687
        %2336 = vmatpush1.bf16.msra.mxu0 %v1686
        %2337 = vmatprep.subr.bf16.mxu0 %v1691
        %2338 = vmatpush1.bf16.msra.mxu0 %v1690
        %2339 = vmatprep.subr.bf16.mxu0 %v1695
        %2340 = vmatpush1.bf16.msra.mxu0 %v1694
        %2341 = vmatprep.subr.bf16.mxu0 %v1699
        %2342 = vmatpush1.bf16.msra.mxu0 %v1698
        %2343 = vmatprep.subr.bf16.mxu0 %v1703
        %2344 = vmatpush1.bf16.msra.mxu0 %v1702
        %2345 = vmatprep.subr.bf16.mxu0 %v1707
        %2346 = vmatpush1.bf16.msra.mxu0 %v1706
        %2347 = vmatprep.subr.bf16.mxu0 %v1711
        %2348 = vmatpush1.bf16.msra.mxu0 %v1710
        %2349 = vmatprep.subr.bf16.mxu0 %v1715
        %2350 = vmatpush1.bf16.msra.mxu0 %v1714
        %2351 = vmatprep.subr.bf16.mxu0 %v1719
        %2352 = vmatpush1.bf16.msra.mxu0 %v1718
        %2353 = vmatprep.subr.bf16.mxu0 %v1723
        %2354 = vmatpush1.bf16.msra.mxu0 %v1722
        %2355 = vmatprep.subr.bf16.mxu0 %v1727
        %2356 = vmatpush1.bf16.msra.mxu0 %v1726
        %2357 = vmatprep.subr.bf16.mxu0 %v1731
        %2358 = vmatpush1.bf16.msra.mxu0 %v1730
        %2359 = vmatprep.subr.bf16.mxu0 %v1735
        %2360 = vmatpush1.bf16.msra.mxu0 %v1734
        %2361 = vmatprep.subr.bf16.mxu0 %v1739
        %2362 = vmatpush1.bf16.msra.mxu0 %v1738
        %2363 = vmatprep.subr.bf16.mxu0 %v1743
        %2364 = vmatpush1.bf16.msra.mxu0 %v1742
        %2365 = vmatprep.mubr.bf16.mxu0 %v565
        %2366 = vmatmul.mubr.bf16.gmra.mrb[0].mxu0 %v564
        %v2367 = vpop.f32.mrb[0].mxu0
        %v2368 = vadd.f32 %v2327, %v2367
        %v2369 = vpop.f32.mrb[0].mxu0
        %v2370 = vadd.f32 %v2329, %v2369
        %v2371 = vpop.f32.mrb[0].mxu0
        %v2372 = vpop.f32.mrb[0].mxu0
        %2373 = vdwg.mxu0
        %2374 = vmatprep.subr.bf16.mxu0 %v1747
        %2375 = vmatpush1.bf16.msra.mxu0 %v1746
        %2376 = vmatprep.subr.bf16.mxu0 %v1751
        %2377 = vmatpush1.bf16.msra.mxu0 %v1750
        %2378 = vmatprep.subr.bf16.mxu0 %v1755
        %2379 = vmatpush1.bf16.msra.mxu0 %v1754
        %2380 = vmatprep.subr.bf16.mxu0 %v1759
        %2381 = vmatpush1.bf16.msra.mxu0 %v1758
        %2382 = vmatprep.subr.bf16.mxu0 %v1763
        %2383 = vmatpush1.bf16.msra.mxu0 %v1762
        %2384 = vmatprep.subr.bf16.mxu0 %v1767
        %2385 = vmatpush1.bf16.msra.mxu0 %v1766
        %2386 = vmatprep.subr.bf16.mxu0 %v1771
        %2387 = vmatpush1.bf16.msra.mxu0 %v1770
        %2388 = vmatprep.subr.bf16.mxu0 %v1775
        %2389 = vmatpush1.bf16.msra.mxu0 %v1774
        %2390 = vmatprep.subr.bf16.mxu0 %v1779
        %2391 = vmatpush1.bf16.msra.mxu0 %v1778
        %2392 = vmatprep.subr.bf16.mxu0 %v1783
        %2393 = vmatpush1.bf16.msra.mxu0 %v1782
        %2394 = vmatprep.subr.bf16.mxu0 %v1787
        %2395 = vmatpush1.bf16.msra.mxu0 %v1786
        %2396 = vmatprep.subr.bf16.mxu0 %v1791
        %2397 = vmatpush1.bf16.msra.mxu0 %v1790
        %2398 = vmatprep.subr.bf16.mxu0 %v1795
        %2399 = vmatpush1.bf16.msra.mxu0 %v1794
        %2400 = vmatprep.subr.bf16.mxu0 %v1799
        %2401 = vmatpush1.bf16.msra.mxu0 %v1798
        %2402 = vmatprep.subr.bf16.mxu0 %v1803
        %2403 = vmatpush1.bf16.msra.mxu0 %v1802
        %2404 = vmatprep.subr.bf16.mxu0 %v1807
        %2405 = vmatpush1.bf16.msra.mxu0 %v1806
        %2406 = vmatprep.mubr.bf16.mxu0 %v567
        %2407 = vmatmul.mubr.bf16.gmra.mrb[0].mxu0 %v566
        %v2408 = vpop.f32.mrb[0].mxu0
        %v2409 = vadd.f32 %v2368, %v2408
        %v2410 = vpop.f32.mrb[0].mxu0
        %v2411 = vadd.f32 %v2370, %v2410
        %v2412 = vpop.f32.mrb[0].mxu0
        %v2413 = vpop.f32.mrb[0].mxu0
        %2414 = vdwg.mxu0
        %2415 = vmatprep.subr.bf16.mxu0 %v1811
        %2416 = vmatpush1.bf16.msra.mxu0 %v1810
        %2417 = vmatprep.subr.bf16.mxu0 %v1815
        %2418 = vmatpush1.bf16.msra.mxu0 %v1814
        %2419 = vmatprep.subr.bf16.mxu0 %v1819
        %2420 = vmatpush1.bf16.msra.mxu0 %v1818
        %2421 = vmatprep.subr.bf16.mxu0 %v1823
        %2422 = vmatpush1.bf16.msra.mxu0 %v1822
        %2423 = vmatprep.subr.bf16.mxu0 %v1827
        %2424 = vmatpush1.bf16.msra.mxu0 %v1826
        %2425 = vmatprep.subr.bf16.mxu0 %v1831
        %2426 = vmatpush1.bf16.msra.mxu0 %v1830
        %2427 = vmatprep.subr.bf16.mxu0 %v1835
        %2428 = vmatpush1.bf16.msra.mxu0 %v1834
        %2429 = vmatprep.subr.bf16.mxu0 %v1839
        %2430 = vmatpush1.bf16.msra.mxu0 %v1838
        %2431 = vmatprep.subr.bf16.mxu0 %v1843
        %2432 = vmatpush1.bf16.msra.mxu0 %v1842
        %2433 = vmatprep.subr.bf16.mxu0 %v1847
        %2434 = vmatpush1.bf16.msra.mxu0 %v1846
        %2435 = vmatprep.subr.bf16.mxu0 %v1851
        %2436 = vmatpush1.bf16.msra.mxu0 %v1850
        %2437 = vmatprep.subr.bf16.mxu0 %v1855
        %2438 = vmatpush1.bf16.msra.mxu0 %v1854
        %2439 = vmatprep.subr.bf16.mxu0 %v1859
        %2440 = vmatpush1.bf16.msra.mxu0 %v1858
        %2441 = vmatprep.subr.bf16.mxu0 %v1863
        %2442 = vmatpush1.bf16.msra.mxu0 %v1862
        %2443 = vmatprep.subr.bf16.mxu0 %v1867
        %2444 = vmatpush1.bf16.msra.mxu0 %v1866
        %2445 = vmatprep.subr.bf16.mxu0 %v1871
        %2446 = vmatpush1.bf16.msra.mxu0 %v1870
        %2447 = vmatprep.mubr.bf16.mxu0 %v569
        %2448 = vmatmul.mubr.bf16.gmra.mrb[0].mxu0 %v568
        %v2449 = vpop.f32.mrb[0].mxu0
        %v2450 = vadd.f32 %v2409, %v2449
        %v2451 = vpop.f32.mrb[0].mxu0
        %v2452 = vadd.f32 %v2411, %v2451
        %v2453 = vpop.f32.mrb[0].mxu0
        %v2454 = vpop.f32.mrb[0].mxu0
        %2455 = vdwg.mxu0
        %v2456 = vmax.f32 %v2286, 0.0
        %v2457 = vmax.f32 %v2288, 0.0
        %v2458 = vmax.f32 %v2450, 0.0
        %v2459 = vmax.f32 %v2452, 0.0
        %v2460 = vpack.c.bf16 %v2456, %v2456
        %v2461 = vpack.c.bf16 %v2457, %v2457
        %v2462 = vpack.c.bf16 %v2458, %v2458
        %v2463 = vpack.c.bf16 %v2459, %v2459
        %v2464 = vld [vmem:[%s4] sm:$0xff]
        %v2465 = vld [vmem:[%s4 + $0x8] sm:$0xff]
        %v2466 = vld [vmem:[%s4 + $0x10] sm:$0xff]
        %v2467 = vld [vmem:[%s4 + $0x18] sm:$0xff]
        %v2468 = vld [vmem:[%s4 + $0x20] sm:$0xff]
        %v2469 = vld [vmem:[%s4 + $0x28] sm:$0xff]
        %v2470 = vld [vmem:[%s4 + $0x30] sm:$0xff]
        %v2471 = vld [vmem:[%s4 + $0x38] sm:$0xff]
        %v2472 = vld [vmem:[%s4 + $0x40] sm:$0xff]
        %v2473 = vld [vmem:[%s4 + $0x48] sm:$0xff]
        %v2474 = vld [vmem:[%s4 + $0x50] sm:$0xff]
        %v2475 = vld [vmem:[%s4 + $0x58] sm:$0xff]
        %v2476 = vld [vmem:[%s4 + $0x60] sm:$0xff]
        %v2477 = vld [vmem:[%s4 + $0x68] sm:$0xff]
        %v2478 = vld [vmem:[%s4 + $0x70] sm:$0xff]
        %v2479 = vld [vmem:[%s4 + $0x78] sm:$0xff]
        %v2480 = vld [vmem:[%s4 + $0x80] sm:$0xff]
        %v2481 = vld [vmem:[%s4 + $0x88] sm:$0xff]
        %v2482 = vld [vmem:[%s4 + $0x90] sm:$0xff]
        %v2483 = vld [vmem:[%s4 + $0x98] sm:$0xff]
        %v2484 = vld [vmem:[%s4 + $0xa0] sm:$0xff]
        %v2485 = vld [vmem:[%s4 + $0xa8] sm:$0xff]
        %v2486 = vld [vmem:[%s4 + $0xb0] sm:$0xff]
        %v2487 = vld [vmem:[%s4 + $0xb8] sm:$0xff]
        %v2488 = vld [vmem:[%s4 + $0xc0] sm:$0xff]
        %v2489 = vld [vmem:[%s4 + $0xc8] sm:$0xff]
        %v2490 = vld [vmem:[%s4 + $0xd0] sm:$0xff]
        %v2491 = vld [vmem:[%s4 + $0xd8] sm:$0xff]
        %v2492 = vld [vmem:[%s4 + $0xe0] sm:$0xff]
        %v2493 = vld [vmem:[%s4 + $0xe8] sm:$0xff]
        %v2494 = vld [vmem:[%s4 + $0xf0] sm:$0xff]
        %v2495 = vld [vmem:[%s4 + $0xf8] sm:$0xff]
        %v2496 = vld [vmem:[%s4 + $0x100] sm:$0xff]
        %v2497 = vld [vmem:[%s4 + $0x108] sm:$0xff]
        %v2498 = vld [vmem:[%s4 + $0x110] sm:$0xff]
        %v2499 = vld [vmem:[%s4 + $0x118] sm:$0xff]
        %v2500 = vld [vmem:[%s4 + $0x120] sm:$0xff]
        %v2501 = vld [vmem:[%s4 + $0x128] sm:$0xff]
        %v2502 = vld [vmem:[%s4 + $0x130] sm:$0xff]
        %v2503 = vld [vmem:[%s4 + $0x138] sm:$0xff]
        %v2504 = vld [vmem:[%s4 + $0x140] sm:$0xff]
        %v2505 = vld [vmem:[%s4 + $0x148] sm:$0xff]
        %v2506 = vld [vmem:[%s4 + $0x150] sm:$0xff]
        %v2507 = vld [vmem:[%s4 + $0x158] sm:$0xff]
        %v2508 = vld [vmem:[%s4 + $0x160] sm:$0xff]
        %v2509 = vld [vmem:[%s4 + $0x168] sm:$0xff]
        %v2510 = vld [vmem:[%s4 + $0x170] sm:$0xff]
        %v2511 = vld [vmem:[%s4 + $0x178] sm:$0xff]
        %v2512 = vld [vmem:[%s4 + $0x180] sm:$0xff]
        %v2513 = vld [vmem:[%s4 + $0x188] sm:$0xff]
        %v2514 = vld [vmem:[%s4 + $0x190] sm:$0xff]
        %v2515 = vld [vmem:[%s4 + $0x198] sm:$0xff]
        %v2516 = vld [vmem:[%s4 + $0x1a0] sm:$0xff]
        %v2517 = vld [vmem:[%s4 + $0x1a8] sm:$0xff]
        %v2518 = vld [vmem:[%s4 + $0x1b0] sm:$0xff]
        %v2519 = vld [vmem:[%s4 + $0x1b8] sm:$0xff]
        %v2520 = vld [vmem:[%s4 + $0x1c0] sm:$0xff]
        %v2521 = vld [vmem:[%s4 + $0x1c8] sm:$0xff]
        %v2522 = vld [vmem:[%s4 + $0x1d0] sm:$0xff]
        %v2523 = vld [vmem:[%s4 + $0x1d8] sm:$0xff]
        %v2524 = vld [vmem:[%s4 + $0x1e0] sm:$0xff]
        %v2525 = vld [vmem:[%s4 + $0x1e8] sm:$0xff]
        %v2526 = vld [vmem:[%s4 + $0x1f0] sm:$0xff]
        %v2527 = vld [vmem:[%s4 + $0x1f8] sm:$0xff]
        %v2528 = vld [vmem:[%s5] sm:$0x3]
        %v2530 = vlaneseq
        %v2531 = vshrl.u32 %v2530, 7
        %v2532 = vsub.s32 0, %v2531
        %v2533 = vrot.slane %v2528, %v2532
        %v2534 = vlaneseq
        %v2535 = vshrl.u32 %v2534, 7
        %v2536 = vsub.s32 1, %v2535
        %v2537 = vrot.slane %v2528, %v2536
        %v2604 = vunpack.c.l.b16 %v2464
        %v2605 = vunpack.c.h.b16 %v2464
        %v2606 = vunpack.c.l.b16 %v2465
        %v2607 = vunpack.c.h.b16 %v2465
        %v2608 = vunpack.c.l.b16 %v2466
        %v2609 = vunpack.c.h.b16 %v2466
        %v2610 = vunpack.c.l.b16 %v2467
        %v2611 = vunpack.c.h.b16 %v2467
        %v2612 = vunpack.c.l.b16 %v2468
        %v2613 = vunpack.c.h.b16 %v2468
        %v2614 = vunpack.c.l.b16 %v2469
        %v2615 = vunpack.c.h.b16 %v2469
        %v2616 = vunpack.c.l.b16 %v2470
        %v2617 = vunpack.c.h.b16 %v2470
        %v2618 = vunpack.c.l.b16 %v2471
        %v2619 = vunpack.c.h.b16 %v2471
        %v2620 = vunpack.c.l.b16 %v2472
        %v2621 = vunpack.c.h.b16 %v2472
        %v2622 = vunpack.c.l.b16 %v2473
        %v2623 = vunpack.c.h.b16 %v2473
        %v2624 = vunpack.c.l.b16 %v2474
        %v2625 = vunpack.c.h.b16 %v2474
        %v2626 = vunpack.c.l.b16 %v2475
        %v2627 = vunpack.c.h.b16 %v2475
        %v2628 = vunpack.c.l.b16 %v2476
        %v2629 = vunpack.c.h.b16 %v2476
        %v2630 = vunpack.c.l.b16 %v2477
        %v2631 = vunpack.c.h.b16 %v2477
        %v2632 = vunpack.c.l.b16 %v2478
        %v2633 = vunpack.c.h.b16 %v2478
        %v2634 = vunpack.c.l.b16 %v2479
        %v2635 = vunpack.c.h.b16 %v2479
        %v2636 = vunpack.c.l.b16 %v2480
        %v2637 = vunpack.c.h.b16 %v2480
        %v2638 = vunpack.c.l.b16 %v2481
        %v2639 = vunpack.c.h.b16 %v2481
        %v2640 = vunpack.c.l.b16 %v2482
        %v2641 = vunpack.c.h.b16 %v2482
        %v2642 = vunpack.c.l.b16 %v2483
        %v2643 = vunpack.c.h.b16 %v2483
        %v2644 = vunpack.c.l.b16 %v2484
        %v2645 = vunpack.c.h.b16 %v2484
        %v2646 = vunpack.c.l.b16 %v2485
        %v2647 = vunpack.c.h.b16 %v2485
        %v2648 = vunpack.c.l.b16 %v2486
        %v2649 = vunpack.c.h.b16 %v2486
        %v2650 = vunpack.c.l.b16 %v2487
        %v2651 = vunpack.c.h.b16 %v2487
        %v2652 = vunpack.c.l.b16 %v2488
        %v2653 = vunpack.c.h.b16 %v2488
        %v2654 = vunpack.c.l.b16 %v2489
        %v2655 = vunpack.c.h.b16 %v2489
        %v2656 = vunpack.c.l.b16 %v2490
        %v2657 = vunpack.c.h.b16 %v2490
        %v2658 = vunpack.c.l.b16 %v2491
        %v2659 = vunpack.c.h.b16 %v2491
        %v2660 = vunpack.c.l.b16 %v2492
        %v2661 = vunpack.c.h.b16 %v2492
        %v2662 = vunpack.c.l.b16 %v2493
        %v2663 = vunpack.c.h.b16 %v2493
        %v2664 = vunpack.c.l.b16 %v2494
        %v2665 = vunpack.c.h.b16 %v2494
        %v2666 = vunpack.c.l.b16 %v2495
        %v2667 = vunpack.c.h.b16 %v2495
        %v2668 = vunpack.c.l.b16 %v2496
        %v2669 = vunpack.c.h.b16 %v2496
        %v2670 = vunpack.c.l.b16 %v2497
        %v2671 = vunpack.c.h.b16 %v2497
        %v2672 = vunpack.c.l.b16 %v2498
        %v2673 = vunpack.c.h.b16 %v2498
        %v2674 = vunpack.c.l.b16 %v2499
        %v2675 = vunpack.c.h.b16 %v2499
        %v2676 = vunpack.c.l.b16 %v2500
        %v2677 = vunpack.c.h.b16 %v2500
        %v2678 = vunpack.c.l.b16 %v2501
        %v2679 = vunpack.c.h.b16 %v2501
        %v2680 = vunpack.c.l.b16 %v2502
        %v2681 = vunpack.c.h.b16 %v2502
        %v2682 = vunpack.c.l.b16 %v2503
        %v2683 = vunpack.c.h.b16 %v2503
        %v2684 = vunpack.c.l.b16 %v2504
        %v2685 = vunpack.c.h.b16 %v2504
        %v2686 = vunpack.c.l.b16 %v2505
        %v2687 = vunpack.c.h.b16 %v2505
        %v2688 = vunpack.c.l.b16 %v2506
        %v2689 = vunpack.c.h.b16 %v2506
        %v2690 = vunpack.c.l.b16 %v2507
        %v2691 = vunpack.c.h.b16 %v2507
        %v2692 = vunpack.c.l.b16 %v2508
        %v2693 = vunpack.c.h.b16 %v2508
        %v2694 = vunpack.c.l.b16 %v2509
        %v2695 = vunpack.c.h.b16 %v2509
        %v2696 = vunpack.c.l.b16 %v2510
        %v2697 = vunpack.c.h.b16 %v2510
        %v2698 = vunpack.c.l.b16 %v2511
        %v2699 = vunpack.c.h.b16 %v2511
        %v2700 = vunpack.c.l.b16 %v2512
        %v2701 = vunpack.c.h.b16 %v2512
        %v2702 = vunpack.c.l.b16 %v2513
        %v2703 = vunpack.c.h.b16 %v2513
        %v2704 = vunpack.c.l.b16 %v2514
        %v2705 = vunpack.c.h.b16 %v2514
        %v2706 = vunpack.c.l.b16 %v2515
        %v2707 = vunpack.c.h.b16 %v2515
        %v2708 = vunpack.c.l.b16 %v2516
        %v2709 = vunpack.c.h.b16 %v2516
        %v2710 = vunpack.c.l.b16 %v2517
        %v2711 = vunpack.c.h.b16 %v2517
        %v2712 = vunpack.c.l.b16 %v2518
        %v2713 = vunpack.c.h.b16 %v2518
        %v2714 = vunpack.c.l.b16 %v2519
        %v2715 = vunpack.c.h.b16 %v2519
        %v2716 = vunpack.c.l.b16 %v2520
        %v2717 = vunpack.c.h.b16 %v2520
        %v2718 = vunpack.c.l.b16 %v2521
        %v2719 = vunpack.c.h.b16 %v2521
        %v2720 = vunpack.c.l.b16 %v2522
        %v2721 = vunpack.c.h.b16 %v2522
        %v2722 = vunpack.c.l.b16 %v2523
        %v2723 = vunpack.c.h.b16 %v2523
        %v2724 = vunpack.c.l.b16 %v2524
        %v2725 = vunpack.c.h.b16 %v2524
        %v2726 = vunpack.c.l.b16 %v2525
        %v2727 = vunpack.c.h.b16 %v2525
        %v2728 = vunpack.c.l.b16 %v2526
        %v2729 = vunpack.c.h.b16 %v2526
        %v2730 = vunpack.c.l.b16 %v2527
        %v2731 = vunpack.c.h.b16 %v2527
        %v2732 = vpack.c.b16 %v2606, %v2604
        %v2733 = vpack.c.b16 %v2607, %v2605
        %v2734 = vpack.c.b16 %v2610, %v2608
        %v2735 = vpack.c.b16 %v2611, %v2609
        %v2736 = vpack.c.b16 %v2614, %v2612
        %v2737 = vpack.c.b16 %v2615, %v2613
        %v2738 = vpack.c.b16 %v2618, %v2616
        %v2739 = vpack.c.b16 %v2619, %v2617
        %v2740 = vpack.c.b16 %v2622, %v2620
        %v2741 = vpack.c.b16 %v2623, %v2621
        %v2742 = vpack.c.b16 %v2626, %v2624
        %v2743 = vpack.c.b16 %v2627, %v2625
        %v2744 = vpack.c.b16 %v2630, %v2628
        %v2745 = vpack.c.b16 %v2631, %v2629
        %v2746 = vpack.c.b16 %v2634, %v2632
        %v2747 = vpack.c.b16 %v2635, %v2633
        %v2748 = vpack.c.b16 %v2638, %v2636
        %v2749 = vpack.c.b16 %v2639, %v2637
        %v2750 = vpack.c.b16 %v2642, %v2640
        %v2751 = vpack.c.b16 %v2643, %v2641
        %v2752 = vpack.c.b16 %v2646, %v2644
        %v2753 = vpack.c.b16 %v2647, %v2645
        %v2754 = vpack.c.b16 %v2650, %v2648
        %v2755 = vpack.c.b16 %v2651, %v2649
        %v2756 = vpack.c.b16 %v2654, %v2652
        %v2757 = vpack.c.b16 %v2655, %v2653
        %v2758 = vpack.c.b16 %v2658, %v2656
        %v2759 = vpack.c.b16 %v2659, %v2657
        %v2760 = vpack.c.b16 %v2662, %v2660
        %v2761 = vpack.c.b16 %v2663, %v2661
        %v2762 = vpack.c.b16 %v2666, %v2664
        %v2763 = vpack.c.b16 %v2667, %v2665
        %v2764 = vpack.c.b16 %v2670, %v2668
        %v2765 = vpack.c.b16 %v2671, %v2669
        %v2766 = vpack.c.b16 %v2674, %v2672
        %v2767 = vpack.c.b16 %v2675, %v2673
        %v2768 = vpack.c.b16 %v2678, %v2676
        %v2769 = vpack.c.b16 %v2679, %v2677
        %v2770 = vpack.c.b16 %v2682, %v2680
        %v2771 = vpack.c.b16 %v2683, %v2681
        %v2772 = vpack.c.b16 %v2686, %v2684
        %v2773 = vpack.c.b16 %v2687, %v2685
        %v2774 = vpack.c.b16 %v2690, %v2688
        %v2775 = vpack.c.b16 %v2691, %v2689
        %v2776 = vpack.c.b16 %v2694, %v2692
        %v2777 = vpack.c.b16 %v2695, %v2693
        %v2778 = vpack.c.b16 %v2698, %v2696
        %v2779 = vpack.c.b16 %v2699, %v2697
        %v2780 = vpack.c.b16 %v2702, %v2700
        %v2781 = vpack.c.b16 %v2703, %v2701
        %v2782 = vpack.c.b16 %v2706, %v2704
        %v2783 = vpack.c.b16 %v2707, %v2705
        %v2784 = vpack.c.b16 %v2710, %v2708
        %v2785 = vpack.c.b16 %v2711, %v2709
        %v2786 = vpack.c.b16 %v2714, %v2712
        %v2787 = vpack.c.b16 %v2715, %v2713
        %v2788 = vpack.c.b16 %v2718, %v2716
        %v2789 = vpack.c.b16 %v2719, %v2717
        %v2790 = vpack.c.b16 %v2722, %v2720
        %v2791 = vpack.c.b16 %v2723, %v2721
        %v2792 = vpack.c.b16 %v2726, %v2724
        %v2793 = vpack.c.b16 %v2727, %v2725
        %v2794 = vpack.c.b16 %v2730, %v2728
        %v2795 = vpack.c.b16 %v2731, %v2729
        %2860 = vmatprep.subr.bf16.mxu0 %v2733
        %2861 = vmatpush1.bf16.msra.mxu0 %v2732
        %2862 = vmatprep.subr.bf16.mxu0 %v2735
        %2863 = vmatpush1.bf16.msra.mxu0 %v2734
        %2864 = vmatprep.subr.bf16.mxu0 %v2737
        %2865 = vmatpush1.bf16.msra.mxu0 %v2736
        %2866 = vmatprep.subr.bf16.mxu0 %v2739
        %2867 = vmatpush1.bf16.msra.mxu0 %v2738
        %2868 = vmatprep.subr.bf16.mxu0 %v2741
        %2869 = vmatpush1.bf16.msra.mxu0 %v2740
        %2870 = vmatprep.subr.bf16.mxu0 %v2743
        %2871 = vmatpush1.bf16.msra.mxu0 %v2742
        %2872 = vmatprep.subr.bf16.mxu0 %v2745
        %2873 = vmatpush1.bf16.msra.mxu0 %v2744
        %2874 = vmatprep.subr.bf16.mxu0 %v2747
        %2875 = vmatpush1.bf16.msra.mxu0 %v2746
        %2876 = vmatprep.subr.bf16.mxu0 %v2749
        %2877 = vmatpush1.bf16.msra.mxu0 %v2748
        %2878 = vmatprep.subr.bf16.mxu0 %v2751
        %2879 = vmatpush1.bf16.msra.mxu0 %v2750
        %2880 = vmatprep.subr.bf16.mxu0 %v2753
        %2881 = vmatpush1.bf16.msra.mxu0 %v2752
        %2882 = vmatprep.subr.bf16.mxu0 %v2755
        %2883 = vmatpush1.bf16.msra.mxu0 %v2754
        %2884 = vmatprep.subr.bf16.mxu0 %v2757
        %2885 = vmatpush1.bf16.msra.mxu0 %v2756
        %2886 = vmatprep.subr.bf16.mxu0 %v2759
        %2887 = vmatpush1.bf16.msra.mxu0 %v2758
        %2888 = vmatprep.subr.bf16.mxu0 %v2761
        %2889 = vmatpush1.bf16.msra.mxu0 %v2760
        %2890 = vmatprep.subr.bf16.mxu0 %v2763
        %2891 = vmatpush1.bf16.msra.mxu0 %v2762
        %2892 = vmatprep.mubr.bf16.mxu0 %v2461
        %2893 = vmatmul.mubr.bf16.gmra.mrb[0].mxu0 %v2460
        %v2894 = vpop.f32.mrb[0].mxu0
        %v2895 = vadd.f32 %v2533, %v2894
        %v2896 = vpop.f32.mrb[0].mxu0
        %v2897 = vadd.f32 %v2537, %v2896
        %v2898 = vpop.f32.mrb[0].mxu0
        %v2899 = vpop.f32.mrb[0].mxu0
        %2900 = vdwg.mxu0
        %2901 = vmatprep.subr.bf16.mxu0 %v2765
        %2902 = vmatpush1.bf16.msra.mxu0 %v2764
        %2903 = vmatprep.subr.bf16.mxu0 %v2767
        %2904 = vmatpush1.bf16.msra.mxu0 %v2766
        %2905 = vmatprep.subr.bf16.mxu0 %v2769
        %2906 = vmatpush1.bf16.msra.mxu0 %v2768
        %2907 = vmatprep.subr.bf16.mxu0 %v2771
        %2908 = vmatpush1.bf16.msra.mxu0 %v2770
        %2909 = vmatprep.subr.bf16.mxu0 %v2773
        %2910 = vmatpush1.bf16.msra.mxu0 %v2772
        %2911 = vmatprep.subr.bf16.mxu0 %v2775
        %2912 = vmatpush1.bf16.msra.mxu0 %v2774
        %2913 = vmatprep.subr.bf16.mxu0 %v2777
        %2914 = vmatpush1.bf16.msra.mxu0 %v2776
        %2915 = vmatprep.subr.bf16.mxu0 %v2779
        %2916 = vmatpush1.bf16.msra.mxu0 %v2778
        %2917 = vmatprep.subr.bf16.mxu0 %v2781
        %2918 = vmatpush1.bf16.msra.mxu0 %v2780
        %2919 = vmatprep.subr.bf16.mxu0 %v2783
        %2920 = vmatpush1.bf16.msra.mxu0 %v2782
        %2921 = vmatprep.subr.bf16.mxu0 %v2785
        %2922 = vmatpush1.bf16.msra.mxu0 %v2784
        %2923 = vmatprep.subr.bf16.mxu0 %v2787
        %2924 = vmatpush1.bf16.msra.mxu0 %v2786
        %2925 = vmatprep.subr.bf16.mxu0 %v2789
        %2926 = vmatpush1.bf16.msra.mxu0 %v2788
        %2927 = vmatprep.subr.bf16.mxu0 %v2791
        %2928 = vmatpush1.bf16.msra.mxu0 %v2790
        %2929 = vmatprep.subr.bf16.mxu0 %v2793
        %2930 = vmatpush1.bf16.msra.mxu0 %v2792
        %2931 = vmatprep.subr.bf16.mxu0 %v2795
        %2932 = vmatpush1.bf16.msra.mxu0 %v2794
        %2933 = vmatprep.mubr.bf16.mxu0 %v2463
        %2934 = vmatmul.mubr.bf16.gmra.mrb[0].mxu0 %v2462
        %v2935 = vpop.f32.mrb[0].mxu0
        %v2936 = vadd.f32 %v2895, %v2935
        %v2937 = vpop.f32.mrb[0].mxu0
        %v2938 = vadd.f32 %v2897, %v2937
        %v2939 = vpop.f32.mrb[0].mxu0
        %v2940 = vpop.f32.mrb[0].mxu0
        %2941 = vdwg.mxu0
        %v2942 = vmax.f32 %v2936, 0.0
        %v2943 = vmax.f32 %v2938, 0.0
        %v2944 = vpack.c.bf16 %v2942, %v2942
        %v2945 = vpack.c.bf16 %v2943, %v2943
        %v2946 = vld [vmem:[%s6] sm:$0xf]
        %v2947 = vld [vmem:[%s6 + $0x4] sm:$0xf]
        %v2948 = vld [vmem:[%s6 + $0x8] sm:$0xf]
        %v2949 = vld [vmem:[%s6 + $0xc] sm:$0xf]
        %v2950 = vld [vmem:[%s6 + $0x10] sm:$0xf]
        %v2951 = vld [vmem:[%s6 + $0x14] sm:$0xf]
        %v2952 = vld [vmem:[%s6 + $0x18] sm:$0xf]
        %v2953 = vld [vmem:[%s6 + $0x1c] sm:$0xf]
        %v2954 = vld [vmem:[%s6 + $0x20] sm:$0xf]
        %v2955 = vld [vmem:[%s6 + $0x24] sm:$0xf]
        %v2956 = vld [vmem:[%s6 + $0x28] sm:$0xf]
        %v2957 = vld [vmem:[%s6 + $0x2c] sm:$0xf]
        %v2958 = vld [vmem:[%s6 + $0x30] sm:$0xf]
        %v2959 = vld [vmem:[%s6 + $0x34] sm:$0xf]
        %v2960 = vld [vmem:[%s6 + $0x38] sm:$0xf]
        %v2961 = vld [vmem:[%s6 + $0x3c] sm:$0xf]
        %v2962 = vld [vmem:[%s6 + $0x40] sm:$0xf]
        %v2963 = vld [vmem:[%s6 + $0x44] sm:$0xf]
        %v2964 = vld [vmem:[%s6 + $0x48] sm:$0xf]
        %v2965 = vld [vmem:[%s6 + $0x4c] sm:$0xf]
        %v2966 = vld [vmem:[%s6 + $0x50] sm:$0xf]
        %v2967 = vld [vmem:[%s6 + $0x54] sm:$0xf]
        %v2968 = vld [vmem:[%s6 + $0x58] sm:$0xf]
        %v2969 = vld [vmem:[%s6 + $0x5c] sm:$0xf]
        %v2970 = vld [vmem:[%s6 + $0x60] sm:$0xf]
        %v2971 = vld [vmem:[%s6 + $0x64] sm:$0xf]
        %v2972 = vld [vmem:[%s6 + $0x68] sm:$0xf]
        %v2973 = vld [vmem:[%s6 + $0x6c] sm:$0xf]
        %v2974 = vld [vmem:[%s6 + $0x70] sm:$0xf]
        %v2975 = vld [vmem:[%s6 + $0x74] sm:$0xf]
        %v2976 = vld [vmem:[%s6 + $0x78] sm:$0xf]
        %v2977 = vld [vmem:[%s6 + $0x7c] sm:$0xf]
        %v2978 = vld [vmem:[%s7] sm:$0x1]
        %v2980 = vlaneseq
        %v2981 = vshrl.u32 %v2980, 7
        %v2982 = vsub.s32 0, %v2981
        %v2983 = vrot.slane %v2978, %v2982
        %v3017 = vunpack.c.l.b16 %v2946
        %v3018 = vunpack.c.l.b16 %v2947
        %v3019 = vunpack.c.l.b16 %v2948
        %v3020 = vunpack.c.l.b16 %v2949
        %v3021 = vunpack.c.l.b16 %v2950
        %v3022 = vunpack.c.l.b16 %v2951
        %v3023 = vunpack.c.l.b16 %v2952
        %v3024 = vunpack.c.l.b16 %v2953
        %v3025 = vunpack.c.l.b16 %v2954
        %v3026 = vunpack.c.l.b16 %v2955
        %v3027 = vunpack.c.l.b16 %v2956
        %v3028 = vunpack.c.l.b16 %v2957
        %v3029 = vunpack.c.l.b16 %v2958
        %v3030 = vunpack.c.l.b16 %v2959
        %v3031 = vunpack.c.l.b16 %v2960
        %v3032 = vunpack.c.l.b16 %v2961
        %v3033 = vunpack.c.l.b16 %v2962
        %v3034 = vunpack.c.l.b16 %v2963
        %v3035 = vunpack.c.l.b16 %v2964
        %v3036 = vunpack.c.l.b16 %v2965
        %v3037 = vunpack.c.l.b16 %v2966
        %v3038 = vunpack.c.l.b16 %v2967
        %v3039 = vunpack.c.l.b16 %v2968
        %v3040 = vunpack.c.l.b16 %v2969
        %v3041 = vunpack.c.l.b16 %v2970
        %v3042 = vunpack.c.l.b16 %v2971
        %v3043 = vunpack.c.l.b16 %v2972
        %v3044 = vunpack.c.l.b16 %v2973
        %v3045 = vunpack.c.l.b16 %v2974
        %v3046 = vunpack.c.l.b16 %v2975
        %v3047 = vunpack.c.l.b16 %v2976
        %v3048 = vunpack.c.l.b16 %v2977
        %v3049 = vpack.c.b16 %v3018, %v3017
        %v3050 = vpack.c.b16 %v3020, %v3019
        %v3051 = vpack.c.b16 %v3022, %v3021
        %v3052 = vpack.c.b16 %v3024, %v3023
        %v3053 = vpack.c.b16 %v3026, %v3025
        %v3054 = vpack.c.b16 %v3028, %v3027
        %v3055 = vpack.c.b16 %v3030, %v3029
        %v3056 = vpack.c.b16 %v3032, %v3031
        %v3057 = vpack.c.b16 %v3034, %v3033
        %v3058 = vpack.c.b16 %v3036, %v3035
        %v3059 = vpack.c.b16 %v3038, %v3037
        %v3060 = vpack.c.b16 %v3040, %v3039
        %v3061 = vpack.c.b16 %v3042, %v3041
        %v3062 = vpack.c.b16 %v3044, %v3043
        %v3063 = vpack.c.b16 %v3046, %v3045
        %v3064 = vpack.c.b16 %v3048, %v3047
        %3081 = vmatprep.subr.bf16.mxu0 0
        %3082 = vmatpush1.bf16.msra.mxu0 %v3049
        %3083 = vmatprep.subr.bf16.mxu0 0
        %3084 = vmatpush1.bf16.msra.mxu0 %v3050
        %3085 = vmatprep.subr.bf16.mxu0 0
        %3086 = vmatpush1.bf16.msra.mxu0 %v3051
        %3087 = vmatprep.subr.bf16.mxu0 0
        %3088 = vmatpush1.bf16.msra.mxu0 %v3052
        %3089 = vmatprep.subr.bf16.mxu0 0
        %3090 = vmatpush1.bf16.msra.mxu0 %v3053
        %3091 = vmatprep.subr.bf16.mxu0 0
        %3092 = vmatpush1.bf16.msra.mxu0 %v3054
        %3093 = vmatprep.subr.bf16.mxu0 0
        %3094 = vmatpush1.bf16.msra.mxu0 %v3055
        %3095 = vmatprep.subr.bf16.mxu0 0
        %3096 = vmatpush1.bf16.msra.mxu0 %v3056
        %3097 = vmatprep.subr.bf16.mxu0 0
        %3098 = vmatpush1.bf16.msra.mxu0 %v3057
        %3099 = vmatprep.subr.bf16.mxu0 0
        %3100 = vmatpush1.bf16.msra.mxu0 %v3058
        %3101 = vmatprep.subr.bf16.mxu0 0
        %3102 = vmatpush1.bf16.msra.mxu0 %v3059
        %3103 = vmatprep.subr.bf16.mxu0 0
        %3104 = vmatpush1.bf16.msra.mxu0 %v3060
        %3105 = vmatprep.subr.bf16.mxu0 0
        %3106 = vmatpush1.bf16.msra.mxu0 %v3061
        %3107 = vmatprep.subr.bf16.mxu0 0
        %3108 = vmatpush1.bf16.msra.mxu0 %v3062
        %3109 = vmatprep.subr.bf16.mxu0 0
        %3110 = vmatpush1.bf16.msra.mxu0 %v3063
        %3111 = vmatprep.subr.bf16.mxu0 0
        %3112 = vmatpush1.bf16.msra.mxu0 %v3064
        %3113 = vmatprep.mubr.bf16.mxu0 %v2945
        %3114 = vmatmul.mubr.bf16.gmra.mrb[0].mxu0 %v2944
        %v3115 = vpop.f32.mrb[0].mxu0
        %v3116 = vadd.f32 %v2983, %v3115
        %v3117 = vpop.f32.mrb[0].mxu0
        %v3118 = vpop.f32.mrb[0].mxu0
        %v3119 = vpop.f32.mrb[0].mxu0
        %3120 = vdwg.mxu0
        %v3121 = vmax.f32 %v3116, 0.0
        %v3122 = vld [vmem:[#allocation6] sm:$0x3]
        %v3123 = vld [vmem:[%s8] sm:$0xff]
        %v3124 = vld [vmem:[%s8 + $0x8] sm:$0xff]
        %v3125 = vld [vmem:[%s8 + $0x10] sm:$0xff]
        %v3126 = vld [vmem:[%s8 + $0x18] sm:$0xff]
        %v3127 = vld [vmem:[%s8 + $0x20] sm:$0xff]
        %v3128 = vld [vmem:[%s8 + $0x28] sm:$0xff]
        %v3129 = vld [vmem:[%s8 + $0x30] sm:$0xff]
        %v3130 = vld [vmem:[%s8 + $0x38] sm:$0xff]
        %v3131 = vld [vmem:[%s8 + $0x40] sm:$0xff]
        %v3132 = vld [vmem:[%s8 + $0x48] sm:$0xff]
        %v3133 = vld [vmem:[%s8 + $0x50] sm:$0xff]
        %v3134 = vld [vmem:[%s8 + $0x58] sm:$0xff]
        %v3135 = vld [vmem:[%s9] sm:$0x7]
        %v3137 = vlaneseq
        %v3138 = vshrl.u32 %v3137, 7
        %v3139 = vsub.s32 0, %v3138
        %v3140 = vrot.slane %v3135, %v3139
        %v3141 = vlaneseq
        %v3142 = vshrl.u32 %v3141, 7
        %v3143 = vsub.s32 1, %v3142
        %v3144 = vrot.slane %v3135, %v3143
        %v3145 = vlaneseq
        %v3146 = vshrl.u32 %v3145, 7
        %v3147 = vsub.s32 2, %v3146
        %v3148 = vrot.slane %v3135, %v3147
        %vm3152 = vcmask 261120
        %v3154 = vsel %vm3152, %v3121, 0
        %3156 = vmatprep.subr.mxu0 %v3124
        %3157 = vmatpush1.msra.mxu0 %v3123
        %3158 = vmatprep.subr.mxu0 %v3127
        %3159 = vmatpush1.msra.mxu0 %v3126
        %3160 = vmatprep.subr.mxu0 %v3130
        %3161 = vmatpush1.msra.mxu0 %v3129
        %3162 = vmatprep.subr.mxu0 %v3133
        %3163 = vmatpush1.msra.mxu0 %v3132
        %3164 = vmatprep.subr.mxu0 0.0
        %3165 = vmatpush1.msra.mxu0 0.0
        %3166 = vmatprep.subr.mxu0 0.0
        %3167 = vmatpush1.msra.mxu0 0.0
        %3168 = vmatprep.subr.mxu0 0.0
        %3169 = vmatpush1.msra.mxu0 0.0
        %3170 = vmatprep.subr.mxu0 0.0
        %3171 = vmatpush1.msra.mxu0 0.0
        %3172 = vmatprep.subr.mxu0 0.0
        %3173 = vmatpush1.msra.mxu0 0.0
        %3174 = vmatprep.subr.mxu0 0.0
        %3175 = vmatpush1.msra.mxu0 0.0
        %3176 = vmatprep.subr.mxu0 0.0
        %3177 = vmatpush1.msra.mxu0 0.0
        %3178 = vmatprep.subr.mxu0 0.0
        %3179 = vmatpush1.msra.mxu0 0.0
        %3180 = vmatprep.subr.mxu0 0.0
        %3181 = vmatpush1.msra.mxu0 0.0
        %3182 = vmatprep.subr.mxu0 0.0
        %3183 = vmatpush1.msra.mxu0 0.0
        %3184 = vmatprep.subr.mxu0 0.0
        %3185 = vmatpush1.msra.mxu0 0.0
        %3186 = vmatprep.subr.mxu0 0.0
        %3187 = vmatpush1.msra.mxu0 0.0
        %3188 = vmatprep.subr.mxu0 0.0
        %3189 = vmatpush1.msra.mxu0 0.0
        %3190 = vmatprep.subr.mxu0 0.0
        %3191 = vmatpush1.msra.mxu0 0.0
        %3192 = vmatprep.subr.mxu0 0.0
        %3193 = vmatpush1.msra.mxu0 0.0
        %3194 = vmatprep.subr.mxu0 0.0
        %3195 = vmatpush1.msra.mxu0 0.0
        %3196 = vmatprep.subr.mxu0 0.0
        %3197 = vmatpush1.msra.mxu0 0.0
        %3198 = vmatprep.subr.mxu0 0.0
        %3199 = vmatpush1.msra.mxu0 0.0
        %3200 = vmatprep.subr.mxu0 0.0
        %3201 = vmatpush1.msra.mxu0 0.0
        %3202 = vmatprep.subr.mxu0 0.0
        %3203 = vmatpush1.msra.mxu0 0.0
        %3204 = vmatprep.subr.mxu0 0.0
        %3205 = vmatpush1.msra.mxu0 0.0
        %3206 = vmatprep.subr.mxu0 0.0
        %3207 = vmatpush1.msra.mxu0 0.0
        %3208 = vmatprep.subr.mxu0 0.0
        %3209 = vmatpush1.msra.mxu0 0.0
        %3210 = vmatprep.subr.mxu0 0.0
        %3211 = vmatpush1.msra.mxu0 0.0
        %3212 = vmatprep.subr.mxu0 0.0
        %3213 = vmatpush1.msra.mxu0 0.0
        %3214 = vmatprep.subr.mxu0 0.0
        %3215 = vmatpush1.msra.mxu0 0.0
        %3216 = vmatprep.subr.mxu0 0.0
        %3217 = vmatpush1.msra.mxu0 0.0
        %3218 = vmatprep.subr.mxu0 0.0
        %3219 = vmatpush1.msra.mxu0 0.0
        %3220 = vmatprep.mubr.f32.mxu0 0.0
        %3221 = vmatmul.mubr.f32.gmra.mrb[0].mxu0 %v3154
        %v3222 = vpop.f32.mrb[0].mxu0
        %v3223 = vadd.f32 %v3140, %v3222
        %v3224 = vpop.f32.mrb[0].mxu0
        %v3225 = vadd.f32 %v3144, %v3224
        %3226 = vdwg.mxu0
        %3227 = vmatprep.subr.mxu0 0.0
        %3228 = vmatpush1.msra.mxu0 %v3125
        %3229 = vmatprep.subr.mxu0 0.0
        %3230 = vmatpush1.msra.mxu0 %v3128
        %3231 = vmatprep.subr.mxu0 0.0
        %3232 = vmatpush1.msra.mxu0 %v3131
        %3233 = vmatprep.subr.mxu0 0.0
        %3234 = vmatpush1.msra.mxu0 %v3134
        %3235 = vmatprep.subr.mxu0 0.0
        %3236 = vmatpush1.msra.mxu0 0.0
        %3237 = vmatprep.subr.mxu0 0.0
        %3238 = vmatpush1.msra.mxu0 0.0
        %3239 = vmatprep.subr.mxu0 0.0
        %3240 = vmatpush1.msra.mxu0 0.0
        %3241 = vmatprep.subr.mxu0 0.0
        %3242 = vmatpush1.msra.mxu0 0.0
        %3243 = vmatprep.subr.mxu0 0.0
        %3244 = vmatpush1.msra.mxu0 0.0
        %3245 = vmatprep.subr.mxu0 0.0
        %3246 = vmatpush1.msra.mxu0 0.0
        %3247 = vmatprep.subr.mxu0 0.0
        %3248 = vmatpush1.msra.mxu0 0.0
        %3249 = vmatprep.subr.mxu0 0.0
        %3250 = vmatpush1.msra.mxu0 0.0
        %3251 = vmatprep.subr.mxu0 0.0
        %3252 = vmatpush1.msra.mxu0 0.0
        %3253 = vmatprep.subr.mxu0 0.0
        %3254 = vmatpush1.msra.mxu0 0.0
        %3255 = vmatprep.subr.mxu0 0.0
        %3256 = vmatpush1.msra.mxu0 0.0
        %3257 = vmatprep.subr.mxu0 0.0
        %3258 = vmatpush1.msra.mxu0 0.0
        %3259 = vmatprep.subr.mxu0 0.0
        %3260 = vmatpush1.msra.mxu0 0.0
        %3261 = vmatprep.subr.mxu0 0.0
        %3262 = vmatpush1.msra.mxu0 0.0
        %3263 = vmatprep.subr.mxu0 0.0
        %3264 = vmatpush1.msra.mxu0 0.0
        %3265 = vmatprep.subr.mxu0 0.0
        %3266 = vmatpush1.msra.mxu0 0.0
        %3267 = vmatprep.subr.mxu0 0.0
        %3268 = vmatpush1.msra.mxu0 0.0
        %3269 = vmatprep.subr.mxu0 0.0
        %3270 = vmatpush1.msra.mxu0 0.0
        %3271 = vmatprep.subr.mxu0 0.0
        %3272 = vmatpush1.msra.mxu0 0.0
        %3273 = vmatprep.subr.mxu0 0.0
        %3274 = vmatpush1.msra.mxu0 0.0
        %3275 = vmatprep.subr.mxu0 0.0
        %3276 = vmatpush1.msra.mxu0 0.0
        %3277 = vmatprep.subr.mxu0 0.0
        %3278 = vmatpush1.msra.mxu0 0.0
        %3279 = vmatprep.subr.mxu0 0.0
        %3280 = vmatpush1.msra.mxu0 0.0
        %3281 = vmatprep.subr.mxu0 0.0
        %3282 = vmatpush1.msra.mxu0 0.0
        %3283 = vmatprep.subr.mxu0 0.0
        %3284 = vmatpush1.msra.mxu0 0.0
        %3285 = vmatprep.subr.mxu0 0.0
        %3286 = vmatpush1.msra.mxu0 0.0
        %3287 = vmatprep.subr.mxu0 0.0
        %3288 = vmatpush1.msra.mxu0 0.0
        %3289 = vmatprep.subr.mxu0 0.0
        %3290 = vmatpush1.msra.mxu0 0.0
        %3291 = vmatprep.mubr.f32.mxu0 0.0
        %3292 = vmatmul.mubr.f32.gmra.mrb[0].mxu0 %v3154
        %v3293 = vpop.f32.mrb[0].mxu0
        %v3294 = vadd.f32 %v3148, %v3293
        %v3295 = vpop.f32.mrb[0].mxu0
        %3296 = vdwg.mxu0
        %v3297 = vld [vmem:[%s10] sm:$0xff]
        %v3298 = vld [vmem:[%s10 + $0x8] sm:$0xff]
        %v3299 = vld [vmem:[%s10 + $0x10] sm:$0xff]
        %v3300 = vld [vmem:[%s10 + $0x18] sm:$0xff]
        %v3301 = vld [vmem:[%s10 + $0x20] sm:$0xff]
        %v3302 = vld [vmem:[%s10 + $0x28] sm:$0xff]
        %v3303 = vld [vmem:[%s10 + $0x30] sm:$0xff]
        %v3304 = vld [vmem:[%s10 + $0x38] sm:$0xff]
        %v3305 = vld [vmem:[%s10 + $0x40] sm:$0xff]
        %v3306 = vld [vmem:[%s10 + $0x48] sm:$0xff]
        %v3307 = vld [vmem:[%s10 + $0x50] sm:$0xff]
        %v3308 = vld [vmem:[%s10 + $0x58] sm:$0xff]
        %v3309 = vld [vmem:[%s10 + $0x60] sm:$0xff]
        %v3310 = vld [vmem:[%s10 + $0x68] sm:$0xff]
        %v3311 = vld [vmem:[%s10 + $0x70] sm:$0xff]
        %v3312 = vld [vmem:[%s10 + $0x78] sm:$0xff]
        %v3313 = vld [vmem:[%s10 + $0x80] sm:$0xff]
        %v3314 = vld [vmem:[%s10 + $0x88] sm:$0xff]
        %v3315 = vld [vmem:[%s10 + $0x90] sm:$0xff]
        %v3316 = vld [vmem:[%s10 + $0x98] sm:$0xff]
        %v3317 = vld [vmem:[%s10 + $0xa0] sm:$0xff]
        %v3318 = vld [vmem:[%s10 + $0xa8] sm:$0xff]
        %v3319 = vld [vmem:[%s10 + $0xb0] sm:$0xff]
        %v3320 = vld [vmem:[%s10 + $0xb8] sm:$0xff]
        %v3321 = vld [vmem:[%s10 + $0xc0] sm:$0xff]
        %v3322 = vld [vmem:[%s10 + $0xc8] sm:$0xff]
        %v3323 = vld [vmem:[%s10 + $0xd0] sm:$0xff]
        %v3324 = vld [vmem:[%s10 + $0xd8] sm:$0xff]
        %v3325 = vld [vmem:[%s10 + $0xe0] sm:$0xff]
        %v3326 = vld [vmem:[%s10 + $0xe8] sm:$0xff]
        %v3327 = vld [vmem:[%s10 + $0xf0] sm:$0xff]
        %v3328 = vld [vmem:[%s10 + $0xf8] sm:$0xff]
        %v3329 = vld [vmem:[%s10 + $0x100] sm:$0xff]
        %v3330 = vld [vmem:[%s10 + $0x108] sm:$0xff]
        %v3331 = vld [vmem:[%s10 + $0x110] sm:$0xff]
        %v3332 = vld [vmem:[%s10 + $0x118] sm:$0xff]
        %v3333 = vld [vmem:[%s10 + $0x120] sm:$0xff]
        %v3334 = vld [vmem:[%s10 + $0x128] sm:$0xff]
        %v3335 = vld [vmem:[%s10 + $0x130] sm:$0xff]
        %v3336 = vld [vmem:[%s10 + $0x138] sm:$0xff]
        %v3337 = vld [vmem:[%s10 + $0x140] sm:$0xff]
        %v3338 = vld [vmem:[%s10 + $0x148] sm:$0xff]
        %v3339 = vld [vmem:[%s10 + $0x150] sm:$0xff]
        %v3340 = vld [vmem:[%s10 + $0x158] sm:$0xff]
        %v3341 = vld [vmem:[%s10 + $0x160] sm:$0xff]
        %v3342 = vld [vmem:[%s10 + $0x168] sm:$0xff]
        %v3343 = vld [vmem:[%s10 + $0x170] sm:$0xff]
        %v3344 = vld [vmem:[%s10 + $0x178] sm:$0xff]
        %v3345 = vld [vmem:[%s11] sm:$0x7]
        %v3347 = vlaneseq
        %v3348 = vshrl.u32 %v3347, 7
        %v3349 = vsub.s32 0, %v3348
        %v3350 = vrot.slane %v3345, %v3349
        %v3351 = vlaneseq
        %v3352 = vshrl.u32 %v3351, 7
        %v3353 = vsub.s32 1, %v3352
        %v3354 = vrot.slane %v3345, %v3353
        %v3355 = vlaneseq
        %v3356 = vshrl.u32 %v3355, 7
        %v3357 = vsub.s32 2, %v3356
        %v3358 = vrot.slane %v3345, %v3357
        %3362 = vmatprep.subr.mxu0 %v3298
        %3363 = vmatpush1.msra.mxu0 %v3297
        %3364 = vmatprep.subr.mxu0 %v3301
        %3365 = vmatpush1.msra.mxu0 %v3300
        %3366 = vmatprep.subr.mxu0 %v3304
        %3367 = vmatpush1.msra.mxu0 %v3303
        %3368 = vmatprep.subr.mxu0 %v3307
        %3369 = vmatpush1.msra.mxu0 %v3306
        %3370 = vmatprep.subr.mxu0 %v3310
        %3371 = vmatpush1.msra.mxu0 %v3309
        %3372 = vmatprep.subr.mxu0 %v3313
        %3373 = vmatpush1.msra.mxu0 %v3312
        %3374 = vmatprep.subr.mxu0 %v3316
        %3375 = vmatpush1.msra.mxu0 %v3315
        %3376 = vmatprep.subr.mxu0 %v3319
        %3377 = vmatpush1.msra.mxu0 %v3318
        %3378 = vmatprep.subr.mxu0 %v3322
        %3379 = vmatpush1.msra.mxu0 %v3321
        %3380 = vmatprep.subr.mxu0 %v3325
        %3381 = vmatpush1.msra.mxu0 %v3324
        %3382 = vmatprep.subr.mxu0 %v3328
        %3383 = vmatpush1.msra.mxu0 %v3327
        %3384 = vmatprep.subr.mxu0 %v3331
        %3385 = vmatpush1.msra.mxu0 %v3330
        %3386 = vmatprep.subr.mxu0 %v3334
        %3387 = vmatpush1.msra.mxu0 %v3333
        %3388 = vmatprep.subr.mxu0 %v3337
        %3389 = vmatpush1.msra.mxu0 %v3336
        %3390 = vmatprep.subr.mxu0 %v3340
        %3391 = vmatpush1.msra.mxu0 %v3339
        %3392 = vmatprep.subr.mxu0 %v3343
        %3393 = vmatpush1.msra.mxu0 %v3342
        %3394 = vmatprep.subr.mxu0 0.0
        %3395 = vmatpush1.msra.mxu0 0.0
        %3396 = vmatprep.subr.mxu0 0.0
        %3397 = vmatpush1.msra.mxu0 0.0
        %3398 = vmatprep.subr.mxu0 0.0
        %3399 = vmatpush1.msra.mxu0 0.0
        %3400 = vmatprep.subr.mxu0 0.0
        %3401 = vmatpush1.msra.mxu0 0.0
        %3402 = vmatprep.subr.mxu0 0.0
        %3403 = vmatpush1.msra.mxu0 0.0
        %3404 = vmatprep.subr.mxu0 0.0
        %3405 = vmatpush1.msra.mxu0 0.0
        %3406 = vmatprep.subr.mxu0 0.0
        %3407 = vmatpush1.msra.mxu0 0.0
        %3408 = vmatprep.subr.mxu0 0.0
        %3409 = vmatpush1.msra.mxu0 0.0
        %3410 = vmatprep.subr.mxu0 0.0
        %3411 = vmatpush1.msra.mxu0 0.0
        %3412 = vmatprep.subr.mxu0 0.0
        %3413 = vmatpush1.msra.mxu0 0.0
        %3414 = vmatprep.subr.mxu0 0.0
        %3415 = vmatpush1.msra.mxu0 0.0
        %3416 = vmatprep.subr.mxu0 0.0
        %3417 = vmatpush1.msra.mxu0 0.0
        %3418 = vmatprep.subr.mxu0 0.0
        %3419 = vmatpush1.msra.mxu0 0.0
        %3420 = vmatprep.subr.mxu0 0.0
        %3421 = vmatpush1.msra.mxu0 0.0
        %3422 = vmatprep.subr.mxu0 0.0
        %3423 = vmatpush1.msra.mxu0 0.0
        %3424 = vmatprep.subr.mxu0 0.0
        %3425 = vmatpush1.msra.mxu0 0.0
        %3426 = vmatprep.mubr.f32.mxu0 0.0
        %3427 = vmatmul.mubr.f32.gmra.mrb[0].mxu0 %v3122
        %v3428 = vpop.f32.mrb[0].mxu0
        %v3429 = vadd.f32 %v3350, %v3428
        %v3430 = vpop.f32.mrb[0].mxu0
        %v3431 = vadd.f32 %v3354, %v3430
        %3432 = vdwg.mxu0
        %3433 = vmatprep.subr.mxu0 0.0
        %3434 = vmatpush1.msra.mxu0 %v3299
        %3435 = vmatprep.subr.mxu0 0.0
        %3436 = vmatpush1.msra.mxu0 %v3302
        %3437 = vmatprep.subr.mxu0 0.0
        %3438 = vmatpush1.msra.mxu0 %v3305
        %3439 = vmatprep.subr.mxu0 0.0
        %3440 = vmatpush1.msra.mxu0 %v3308
        %3441 = vmatprep.subr.mxu0 0.0
        %3442 = vmatpush1.msra.mxu0 %v3311
        %3443 = vmatprep.subr.mxu0 0.0
        %3444 = vmatpush1.msra.mxu0 %v3314
        %3445 = vmatprep.subr.mxu0 0.0
        %3446 = vmatpush1.msra.mxu0 %v3317
        %3447 = vmatprep.subr.mxu0 0.0
        %3448 = vmatpush1.msra.mxu0 %v3320
        %3449 = vmatprep.subr.mxu0 0.0
        %3450 = vmatpush1.msra.mxu0 %v3323
        %3451 = vmatprep.subr.mxu0 0.0
        %3452 = vmatpush1.msra.mxu0 %v3326
        %3453 = vmatprep.subr.mxu0 0.0
        %3454 = vmatpush1.msra.mxu0 %v3329
        %3455 = vmatprep.subr.mxu0 0.0
        %3456 = vmatpush1.msra.mxu0 %v3332
        %3457 = vmatprep.subr.mxu0 0.0
        %3458 = vmatpush1.msra.mxu0 %v3335
        %3459 = vmatprep.subr.mxu0 0.0
        %3460 = vmatpush1.msra.mxu0 %v3338
        %3461 = vmatprep.subr.mxu0 0.0
        %3462 = vmatpush1.msra.mxu0 %v3341
        %3463 = vmatprep.subr.mxu0 0.0
        %3464 = vmatpush1.msra.mxu0 %v3344
        %3465 = vmatprep.subr.mxu0 0.0
        %3466 = vmatpush1.msra.mxu0 0.0
        %3467 = vmatprep.subr.mxu0 0.0
        %3468 = vmatpush1.msra.mxu0 0.0
        %3469 = vmatprep.subr.mxu0 0.0
        %3470 = vmatpush1.msra.mxu0 0.0
        %3471 = vmatprep.subr.mxu0 0.0
        %3472 = vmatpush1.msra.mxu0 0.0
        %3473 = vmatprep.subr.mxu0 0.0
        %3474 = vmatpush1.msra.mxu0 0.0
        %3475 = vmatprep.subr.mxu0 0.0
        %3476 = vmatpush1.msra.mxu0 0.0
        %3477 = vmatprep.subr.mxu0 0.0
        %3478 = vmatpush1.msra.mxu0 0.0
        %3479 = vmatprep.subr.mxu0 0.0
        %3480 = vmatpush1.msra.mxu0 0.0
        %3481 = vmatprep.subr.mxu0 0.0
        %3482 = vmatpush1.msra.mxu0 0.0
        %3483 = vmatprep.subr.mxu0 0.0
        %3484 = vmatpush1.msra.mxu0 0.0
        %3485 = vmatprep.subr.mxu0 0.0
        %3486 = vmatpush1.msra.mxu0 0.0
        %3487 = vmatprep.subr.mxu0 0.0
        %3488 = vmatpush1.msra.mxu0 0.0
        %3489 = vmatprep.subr.mxu0 0.0
        %3490 = vmatpush1.msra.mxu0 0.0
        %3491 = vmatprep.subr.mxu0 0.0
        %3492 = vmatpush1.msra.mxu0 0.0
        %3493 = vmatprep.subr.mxu0 0.0
        %3494 = vmatpush1.msra.mxu0 0.0
        %3495 = vmatprep.subr.mxu0 0.0
        %3496 = vmatpush1.msra.mxu0 0.0
        %3497 = vmatprep.mubr.f32.mxu0 0.0
        %3498 = vmatmul.mubr.f32.gmra.mrb[0].mxu0 %v3122
        %v3499 = vpop.f32.mrb[0].mxu0
        %v3500 = vadd.f32 %v3358, %v3499
        %v3501 = vpop.f32.mrb[0].mxu0
        %3502 = vdwg.mxu0
        %v3503 = vadd.f32 %v3223, %v3429
        %v3504 = vxor.u32 %v3503, 2147483648
        %v3505 = vmul.f32 %v3504, 1.442695
        %v3506 = vpow.pop %v3505
        %v3507 = vadd.f32 %v3506, 1.0
        %v3508 = vrcp.pop %v3507
        %v3509 = vmul.f32 1.0, %v3508
        %v3510 = vadd.f32 %v3225, %v3431
        %v3511 = vxor.u32 %v3510, 2147483648
        %v3512 = vmul.f32 %v3511, 1.442695
        %v3513 = vpow.pop %v3512
        %v3514 = vadd.f32 %v3513, 1.0
        %v3515 = vrcp.pop %v3514
        %v3516 = vmul.f32 1.0, %v3515
        %v3517 = vmul.f32 %v3509, %v3500
        %v3518 = vadd.f32 %v3294, %v3517
        %v3519 = vtanh.pop %v3518
        %v3520 = vsub.f32 %v3122, %v3519
        %v3521 = vmul.f32 %v3516, %v3520
        %v3522 = vadd.f32 %v3519, %v3521
        %3523 = vst [vmem:[#allocation6] sm:$0x3] %v3522
        %v3524 = vld [vmem:[%s12] sm:$0x1]
        %v3526 = vlaneseq
        %v3527 = vshrl.u32 %v3526, 7
        %v3528 = vsub.s32 0, %v3527
        %v3529 = vrot.slane %v3524, %v3528
        %v3531 = vmul.f32 %v3522, %v3529
        %vm3532 = vcmask 1041408
        %v3533 = vsel %vm3532, %v3531, 0.0
        %3534 = vadd.xlane.f32.xlu0 %v3533
        %v3535 = vpop.xlane.xlu0 %3534
        %v3536 = vld [vmem:[#allocation2] sm:$0x1]
        %v3538 = vlaneseq
        %v3539 = vshrl.u32 %v3538, 7
        %v3540 = vsub.s32 0, %v3539
        %v3541 = vrot.slane %v3536, %v3540
        %v3543 = vadd.f32 %v3535, %v3541
        %vm3544 = vcmask 1024
        %3545 = vst.msk [vmem:[%s508] sm:$0x3] %vm3544, %v3543
        %p3546 = scmp.lt.s32.totalorder %s31, 7
        %s3547 = scalar_select %p3546, %s31, 7
        %s3548 = smul.addr %s3547, 2
        %s3549 = scalar_lea.vmem %s14, %s3548
        // Predicated region
        $region85: #{value_rnn_rollout.1} parent=75 // pred_check
          %p3550 = pneg %p348
        $region86: #{value_rnn_rollout.1} parent=75 // pred_check_branch
          %3552 = sbr.rel (%p3550) target = $region88
        $region87: #{value_rnn_rollout.1} parent=75 // pred_region
          _
        $region88: #{value_rnn_rollout.1} parent=75 // pred_fallthru
          _
        // Predicated region
        $region89: #{value_rnn_rollout.1} parent=75 // pred_check
          %p3553 = pneg %p369
        $region90: #{value_rnn_rollout.1} parent=75 // pred_check_branch
          %3555 = sbr.rel (%p3553) target = $region92
        $region91: #{value_rnn_rollout.1} parent=75 // pred_region
          %s3557 = ssub.s32 32, 32
          %3558 = vsyncadd [#allocation5], %s3557
          %s3560 = sshll.u32 [#allocation6], 4
          %s3561 = int_to_ptr.vmem [resolvable:$true] %s3560
          %3563 = dma.vmem_to_hbm [thread:$0]  %s3561, 32, %s15, [#allocation5]
        $region92: #{value_rnn_rollout.1} parent=75 // pred_fallthru
          _
        // Predicated region
        $region93: #{value_rnn_rollout.1} parent=75 // pred_check
          %p3564 = pneg %p369
        $region94: #{value_rnn_rollout.1} parent=75 // pred_check_branch
          %3566 = sbr.rel (%p3564) target = $region96
        $region95: #{value_rnn_rollout.1} parent=75 // pred_region
          %3567 = dma.done [#allocation5], 32
        $region96: #{value_rnn_rollout.1} parent=75 // pred_fallthru
          _
      $region76: #{value_rnn_rollout.1} parent=5 // pred_fallthru
        _
      %p3568 = scmp.le.s32.totalorder 2, %s26
      // Predicated region
      $region97: #{value_rnn_rollout.1} parent=5 // pred_check
        %p3569 = pneg %p3568
      $region98: #{value_rnn_rollout.1} parent=5 // pred_check_branch
        %3571 = sbr.rel (%p3569) target = $region100
      $region99: #{value_rnn_rollout.1} parent=5 // pred_region
        %s3572 = ssub.s32 %s26, 2
        // Predicated region
        $region101: #{value_rnn_rollout.1} parent=99 // pred_check
          %p3573 = pneg %p354
        $region102: #{value_rnn_rollout.1} parent=99 // pred_check_branch
          %3575 = sbr.rel (%p3573) target = $region104
        $region103: #{value_rnn_rollout.1} parent=99 // pred_region
          %p3576 = scmp.lt.s32.totalorder %s32, 7
          %s3577 = scalar_select %p3576, %s32, 7
          %s3578 = smul.addr %s3577, 2
          %s3579 = scalar_lea.vmem %s14, %s3578
        $region104: #{value_rnn_rollout.1} parent=99 // pred_fallthru
          _
      $region100: #{value_rnn_rollout.1} parent=5 // pred_fallthru
        _
    $region6: #{value_rnn_rollout.1} parent=1 // loop_footer
      %s30 = sadd.s32 1, %s26
    $region7: #{value_rnn_rollout.1} parent=1 // loop_footer_branch
      %25 = sbr.rel target = $region3
    $region8: #{value_rnn_rollout.1} parent=1 // loop_exit
      _
    %3580 = vsyncpa [#allocation4], 1
    %s3581 = scalar_lea.sflag [#allocation4], 1
    %3582 = vsyncpa %s3581, 1
    %3583 = vsyncpa [#allocation5], 1
    %s3584 = scalar_lea.sflag [#allocation5], 1
    %3585 = vsyncpa %s3584, 1

</llo_original>
